<compile_context>
chip_gen: v7x
topology: tpu7x:2x2x1
jax: 0.10.0
libtpu: 0.0.40
codegen_flags: <defaults>
</compile_context>

<pallas_src>
import jax
import jax.numpy as jnp
import numpy as np
from jax import lax
from jax.experimental import pallas as pl
from jax.experimental.pallas import tpu as pltpu

EPS = 1e-6          # module EPS
BN_EPS = 1e-5       # nn.BatchNorm1d default eps
NEG_SLOPE = 0.2


# ---------------------------------------------------------------------------
# kernel-side math (N on lanes, channels on sublanes, xyz kept as a 3-tuple)
# ---------------------------------------------------------------------------
def _bmm(w_b, x):
    """Batched channel matmul: w_b [B,Cout,Cin] @ x [B,Cin,N] -> [B,Cout,N].

    Keeps N on the MXU result minor (lane) dim."""
    return lax.dot_general(w_b, x, (((2,), (1,)), ((0,), (0,))),
                           preferred_element_type=jnp.float32)


def _roll1(a):
    """torch.roll(a, 1, dims=1) along the channel (sublane) axis."""
    return jnp.concatenate([a[:, -1:], a[:, :-1]], axis=1)


def _vn_reflection_layer(x3, ad_b, b_b):
    """VNReflectionLinearLeakyReLU + VNBatchNorm('norm').

    x3:   3-tuple of [B, Cin, N] (xyz components)
    ad_b: [B, 2*Cout, 2*Cin]  (A and map_to_dir weights fused along Cout)
    b_b:  [B, Cout, 2*Cin]
    Returns a 3-tuple of [B, Cout, N]."""
    x0, x1, x2 = x3
    cout = b_b.shape[1]

    # mean over channels, cross every channel with the mean, concat channels
    m0 = jnp.mean(x0, axis=1, keepdims=True)
    m1 = jnp.mean(x1, axis=1, keepdims=True)
    m2 = jnp.mean(x2, axis=1, keepdims=True)
    xc0 = jnp.concatenate([x0, x1 * m2 - x2 * m1], axis=1)    # [B, 2Cin, N]
    xc1 = jnp.concatenate([x1, x2 * m0 - x0 * m2], axis=1)
    xc2 = jnp.concatenate([x2, x0 * m1 - x1 * m0], axis=1)

    # un = roll(xc, 1, channel);  cr = cross(un, xc) / ||un||   (EUP rsqrt)
    un0, un1, un2 = _roll1(xc0), _roll1(xc1), _roll1(xc2)
    inv_un = lax.rsqrt(un0 * un0 + un1 * un1 + un2 * un2 + EPS)
    cr0 = (un1 * xc2 - un2 * xc1) * inv_un
    cr1 = (un2 * xc0 - un0 * xc2) * inv_un
    cr2 = (un0 * xc1 - un1 * xc0) * inv_un

    # fused A|map_to_dir matmul on xc, B matmul on cr  (2 matmuls per component)
    ad0, ad1, ad2 = _bmm(ad_b, xc0), _bmm(ad_b, xc1), _bmm(ad_b, xc2)
    p0 = ad0[:, :cout] + _bmm(b_b, cr0)
    p1 = ad1[:, :cout] + _bmm(b_b, cr1)
    p2 = ad2[:, :cout] + _bmm(b_b, cr2)
    d0, d1, d2 = ad0[:, cout:], ad1[:, cout:], ad2[:, cout:]

    # VNBatchNorm(mode='norm'): training-mode batch stats, identity affine.
    pn = jnp.sqrt(p0 * p0 + p1 * p1 + p2 * p2 + EPS)          # [B, Cout, N]
    mean = jnp.mean(pn, axis=(0, 2), keepdims=True)
    var = jnp.mean(jnp.square(pn - mean), axis=(0, 2), keepdims=True)
    # folded scale, computed once on [B,Cout,N] (not per xyz component)
    scale = (pn - mean) * lax.rsqrt(var + BN_EPS) / (pn + EPS)
    p0, p1, p2 = p0 * scale, p1 * scale, p2 * scale

    # VN leaky-relu:  out = p - (1-slope) * [dot<0] * dot/(||d||^2+EPS) * d
    dot = p0 * d0 + p1 * d1 + p2 * d2
    dns = d0 * d0 + d1 * d1 + d2 * d2
    coef = (1.0 - NEG_SLOPE) * jnp.where(dot >= 0, 0.0, dot / (dns + EPS))
    return (p0 - coef * d0, p1 - coef * d1, p2 - coef * d2)


def _vn_std_feature_kernel(x_ref, ad1_ref, b1_ref, ad2_ref, b2_ref, wl_ref,
                           xstd_ref, z_ref):
    B = x_ref.shape[0]
    bcast = lambda w: jnp.broadcast_to(w, (B,) + w.shape)     # hoisted, reused 3x
    ad1_b, b1_b = bcast(ad1_ref[...]), bcast(b1_ref[...])
    ad2_b, b2_b = bcast(ad2_ref[...]), bcast(b2_ref[...])
    wl_b = bcast(wl_ref[...])

    xv = x_ref[...]                                           # [B, 3, C, N]
    x3 = (xv[:, 0], xv[:, 1], xv[:, 2])                       # each [B, C, N]

    z3 = _vn_reflection_layer(x3, ad1_b, b1_b)
    z3 = _vn_reflection_layer(z3, ad2_b, b2_b)

    # vn_lin: z0[b, j, k, n] = sum_c wl[k, c] * z[b, j, c, n]  -> [B, 3, 3, N]
    zlin = tuple(_bmm(wl_b, zj) for zj in z3)                 # 3 x [B, 3, N]
    for j in range(3):
        z_ref[:, j, :, :] = zlin[j].astype(z_ref.dtype)

    # x_std[b, c, k, n] = sum_j x[b, j, c, n] * z0[b, j, k, n]
    # (emitted in the internal [B, 3(k), C, N] layout; wrapper swaps the two
    #  middle major dims back to [B, C, 3, N])
    for k in range(3):
        acc = (x3[0] * zlin[0][:, k:k + 1]
               + x3[1] * zlin[1][:, k:k + 1]
               + x3[2] * zlin[2][:, k:k + 1])                 # [B, C, N]
        xstd_ref[:, k, :, :] = acc.astype(xstd_ref.dtype)


# ---------------------------------------------------------------------------
# wrapper: PyTorch convention x [B,C,3,N] -> (x_std [B,C,3,N], z0 [B,3,3,N])
# ---------------------------------------------------------------------------
def vn_std_feature(x_bc3n, params):
    B, C, three, N = x_bc3n.shape
    assert three == 3
    ad1, b1, ad2, b2, wl = params

    # [B, C, 3, N] -> [B, 3, C, N]: swap of the two middle (major) dims only,
    # the lane (N) axis is untouched.
    x_l = jnp.transpose(x_bc3n, (0, 2, 1, 3))

    vmem = lambda: pl.BlockSpec(memory_space=pltpu.MemorySpace.VMEM)
    x_std_l, z0 = pl.pallas_call(
        _vn_std_feature_kernel,
        out_shape=(jax.ShapeDtypeStruct((B, 3, C, N), jnp.float32),
                   jax.ShapeDtypeStruct((B, 3, 3, N), jnp.float32)),
        in_specs=[vmem() for _ in range(6)],
        out_specs=(vmem(), vmem()),
        compiler_params=pltpu.CompilerParams(vmem_limit_bytes=64 << 20),
    )(x_l, ad1, b1, ad2, b2, wl)

    x_std = jnp.transpose(x_std_l, (0, 2, 1, 3))              # -> [B, C, 3, N]
    return x_std, z0                                          # z0 already [B,3,3,N]


def pack_params(a1, b1, d1, a2, b2, d2, wl):
    """Fuse each layer's A and map_to_dir weights along Cout (shared input)."""
    return (jnp.concatenate([a1, d1], axis=0), b1,
            jnp.concatenate([a2, d2], axis=0), b2, wl)


# ---------------------------------------------------------------------------
# faithful pure-JAX reference (PyTorch-style math, [B, C, 3, N] layout)
# ---------------------------------------------------------------------------
def _lin(x, w):
    """nn.Linear(bias=False) over the channel axis (axis=1) of [B,C,3,N]."""
    return jnp.einsum('bcjn,oc->bojn', x, w)


def _ref_layer(x, a, b, d):
    x_mean = jnp.broadcast_to(jnp.mean(x, axis=1, keepdims=True), x.shape)
    x_cross = jnp.cross(x, x_mean, axis=2)
    xc = jnp.concatenate([x, x_cross], axis=1)
    avn = _lin(xc, a)
    un = jnp.roll(xc, 1, axis=1)
    cross = jnp.cross(un, xc, axis=2)
    norm = jnp.sqrt(jnp.sum(un * un, axis=2, keepdims=True) + EPS)
    bcross = _lin(cross / norm, b)
    p = avn + bcross
    pn = jnp.sqrt(jnp.sum(p * p, axis=2) + EPS)               # [B, Cout, N]
    mean = jnp.mean(pn, axis=(0, 2), keepdims=True)
    var = jnp.mean((pn - mean) ** 2, axis=(0, 2), keepdims=True)
    pn_bn = (pn - mean) / jnp.sqrt(var + BN_EPS)
    p = p / (pn[:, :, None] + EPS) * pn_bn[:, :, None]
    dmap = _lin(xc, d)
    dot = jnp.sum(p * dmap, axis=2, keepdims=True)
    mask = (dot >= 0).astype(p.dtype)
    dns = jnp.sum(dmap * dmap, axis=2, keepdims=True)
    return NEG_SLOPE * p + (1 - NEG_SLOPE) * (
        mask * p + (1 - mask) * (p - dot / (dns + EPS) * dmap))


def _ref_forward(x, a1, b1, d1, a2, b2, d2, wl):
    z = _ref_layer(x, a1, b1, d1)
    z = _ref_layer(z, a2, b2, d2)
    z0 = _lin(z, wl)                                          # [B, 3(out), 3(vec), N]
    z0 = jnp.transpose(z0, (0, 2, 1, 3))                      # [B, 3(vec), 3(out), N]
    x_std = jnp.einsum('bijm,bjkm->bikm', x, z0)
    return x_std, z0


# ---------------------------------------------------------------------------
# deterministic parameter init (nn.Linear-style uniform(-1/sqrt(fan_in), ...))
# Weights kept in PyTorch [Cout, Cin] orientation (no transposes needed).
# ---------------------------------------------------------------------------
def init_params(key, in_channels):
    c = in_channels
    c2, c4 = c // 2, c // 4

    def uni(k, shape, fan_in):
        bound = 1.0 / np.sqrt(fan_in)
        return jax.random.uniform(k, shape, jnp.float32, -bound, bound)

    ks = jax.random.split(key, 7)
    a1 = uni(ks[0], (c2, 2 * c), 2 * c)      # vn1.A
    b1 = uni(ks[1], (c2, 2 * c), 2 * c)      # vn1.B
    d1 = uni(ks[2], (c2, 2 * c), 2 * c)      # vn1.map_to_dir
    a2 = uni(ks[3], (c4, 2 * c2), 2 * c2)    # vn2.A
    b2 = uni(ks[4], (c4, 2 * c2), 2 * c2)    # vn2.B
    d2 = uni(ks[5], (c4, 2 * c2), 2 * c2)    # vn2.map_to_dir
    wl = uni(ks[6], (3, c4), c4)             # vn_lin
    return a1, b1, d1, a2, b2, d2, wl


if __name__ == "__main__":
    key = jax.random.PRNGKey(0)
    k_x, k_p = jax.random.split(key)

    B, C, N = 2, 8, 256                      # in_channels=8 -> hidden 4 -> 2
    x = jax.random.normal(k_x, (B, C, 3, N), jnp.float32)
    a1, b1, d1, a2, b2, d2, wl = init_params(k_p, C)
    params = pack_params(a1, b1, d1, a2, b2, d2, wl)

    fwd = jax.jit(vn_std_feature)
    x_std, z0 = fwd(x, params)
    jax.block_until_ready((x_std, z0))

    assert x_std.shape == (B, C, 3, N) and z0.shape == (B, 3, 3, N)

    # faithful pure-JAX reference (torch-style math) to validate the kernel
    ref_xstd, ref_z0 = _ref_forward(x, a1, b1, d1, a2, b2, d2, wl)
    np.testing.assert_allclose(np.asarray(x_std), np.asarray(ref_xstd),
                               rtol=1e-3, atol=1e-3)
    np.testing.assert_allclose(np.asarray(z0), np.asarray(ref_z0),
                               rtol=1e-3, atol=1e-3)

    print("KERNEL_OK")
</pallas_src>

<mosaic_0001>
module attributes {stable_mosaic.version = 11 : i64} {
  func.func @_vn_std_feature_kernel(%arg0: memref<2x3x8x256xf32, #tpu.memory_space<vmem>>, %arg1: memref<8x16xf32, #tpu.memory_space<vmem>>, %arg2: memref<4x16xf32, #tpu.memory_space<vmem>>, %arg3: memref<4x8xf32, #tpu.memory_space<vmem>>, %arg4: memref<2x8xf32, #tpu.memory_space<vmem>>, %arg5: memref<3x2xf32, #tpu.memory_space<vmem>>, %arg6: memref<2x3x8x256xf32, #tpu.memory_space<vmem>>, %arg7: memref<2x3x3x256xf32, #tpu.memory_space<vmem>>) attributes {dimension_semantics = [], scalar_prefetch = 0 : i64, scratch_operands = 0 : i64, tpu.core_type = #tpu.core_type<tc>} {
    %c0 = arith.constant 0 : index
    %c0_0 = arith.constant 0 : index
    %0 = vector.load %arg1[%c0, %c0_0] : memref<8x16xf32, #tpu.memory_space<vmem>>, vector<8x16xf32>
    %1 = vector.shape_cast %0 : vector<8x16xf32> to vector<1x8x16xf32>
    %2 = vector.broadcast %1 : vector<1x8x16xf32> to vector<2x8x16xf32>
    %c0_1 = arith.constant 0 : index
    %c0_2 = arith.constant 0 : index
    %3 = vector.load %arg2[%c0_1, %c0_2] : memref<4x16xf32, #tpu.memory_space<vmem>>, vector<4x16xf32>
    %4 = vector.shape_cast %3 : vector<4x16xf32> to vector<1x4x16xf32>
    %5 = vector.broadcast %4 : vector<1x4x16xf32> to vector<2x4x16xf32>
    %c0_3 = arith.constant 0 : index
    %c0_4 = arith.constant 0 : index
    %6 = vector.load %arg3[%c0_3, %c0_4] : memref<4x8xf32, #tpu.memory_space<vmem>>, vector<4x8xf32>
    %7 = vector.shape_cast %6 : vector<4x8xf32> to vector<1x4x8xf32>
    %8 = vector.broadcast %7 : vector<1x4x8xf32> to vector<2x4x8xf32>
    %c0_5 = arith.constant 0 : index
    %c0_6 = arith.constant 0 : index
    %9 = vector.load %arg4[%c0_5, %c0_6] : memref<2x8xf32, #tpu.memory_space<vmem>>, vector<2x8xf32>
    %10 = vector.shape_cast %9 : vector<2x8xf32> to vector<1x2x8xf32>
    %11 = vector.broadcast %10 : vector<1x2x8xf32> to vector<2x2x8xf32>
    %c0_7 = arith.constant 0 : index
    %c0_8 = arith.constant 0 : index
    %12 = vector.load %arg5[%c0_7, %c0_8] : memref<3x2xf32, #tpu.memory_space<vmem>>, vector<3x2xf32>
    %13 = vector.shape_cast %12 : vector<3x2xf32> to vector<1x3x2xf32>
    %14 = vector.broadcast %13 : vector<1x3x2xf32> to vector<2x3x2xf32>
    %c0_9 = arith.constant 0 : index
    %c0_10 = arith.constant 0 : index
    %c0_11 = arith.constant 0 : index
    %c0_12 = arith.constant 0 : index
    %15 = vector.load %arg0[%c0_9, %c0_10, %c0_11, %c0_12] : memref<2x3x8x256xf32, #tpu.memory_space<vmem>>, vector<2x3x8x256xf32>
    %16 = vector.extract_strided_slice %15 {offsets = [0, 0, 0, 0], sizes = [2, 1, 8, 256], strides = [1, 1, 1, 1]} : vector<2x3x8x256xf32> to vector<2x1x8x256xf32>
    %17 = vector.shape_cast %16 : vector<2x1x8x256xf32> to vector<2x8x256xf32>
    %18 = vector.extract_strided_slice %15 {offsets = [0, 1, 0, 0], sizes = [2, 1, 8, 256], strides = [1, 1, 1, 1]} : vector<2x3x8x256xf32> to vector<2x1x8x256xf32>
    %19 = vector.shape_cast %18 : vector<2x1x8x256xf32> to vector<2x8x256xf32>
    %20 = vector.extract_strided_slice %15 {offsets = [0, 2, 0, 0], sizes = [2, 1, 8, 256], strides = [1, 1, 1, 1]} : vector<2x3x8x256xf32> to vector<2x1x8x256xf32>
    %21 = vector.shape_cast %20 : vector<2x1x8x256xf32> to vector<2x8x256xf32>
    %cst = arith.constant dense<0.000000e+00> : vector<2x256xf32>
    %22 = vector.multi_reduction <add>, %17, %cst [1] : vector<2x8x256xf32> to vector<2x256xf32>
    %23 = vector.shape_cast %22 : vector<2x256xf32> to vector<2x1x256xf32>
    %cst_13 = arith.constant 8.000000e+00 : f32
    %24 = vector.broadcast %cst_13 : f32 to vector<2x1x256xf32>
    %25 = arith.divf %23, %24 : vector<2x1x256xf32>
    %cst_14 = arith.constant dense<0.000000e+00> : vector<2x256xf32>
    %26 = vector.multi_reduction <add>, %19, %cst_14 [1] : vector<2x8x256xf32> to vector<2x256xf32>
    %27 = vector.shape_cast %26 : vector<2x256xf32> to vector<2x1x256xf32>
    %cst_15 = arith.constant 8.000000e+00 : f32
    %28 = vector.broadcast %cst_15 : f32 to vector<2x1x256xf32>
    %29 = arith.divf %27, %28 : vector<2x1x256xf32>
    %cst_16 = arith.constant dense<0.000000e+00> : vector<2x256xf32>
    %30 = vector.multi_reduction <add>, %21, %cst_16 [1] : vector<2x8x256xf32> to vector<2x256xf32>
    %31 = vector.shape_cast %30 : vector<2x256xf32> to vector<2x1x256xf32>
    %cst_17 = arith.constant 8.000000e+00 : f32
    %32 = vector.broadcast %cst_17 : f32 to vector<2x1x256xf32>
    %33 = arith.divf %31, %32 : vector<2x1x256xf32>
    %34 = vector.broadcast %33 : vector<2x1x256xf32> to vector<2x8x256xf32>
    %35 = arith.mulf %19, %34 : vector<2x8x256xf32>
    %36 = vector.broadcast %29 : vector<2x1x256xf32> to vector<2x8x256xf32>
    %37 = arith.mulf %21, %36 : vector<2x8x256xf32>
    %38 = arith.subf %35, %37 : vector<2x8x256xf32>
    %39 = tpu.concatenate %17, %38 in 1 : vector<2x8x256xf32>, vector<2x8x256xf32> -> vector<2x16x256xf32>
    %40 = vector.broadcast %25 : vector<2x1x256xf32> to vector<2x8x256xf32>
    %41 = arith.mulf %21, %40 : vector<2x8x256xf32>
    %42 = vector.broadcast %33 : vector<2x1x256xf32> to vector<2x8x256xf32>
    %43 = arith.mulf %17, %42 : vector<2x8x256xf32>
    %44 = arith.subf %41, %43 : vector<2x8x256xf32>
    %45 = tpu.concatenate %19, %44 in 1 : vector<2x8x256xf32>, vector<2x8x256xf32> -> vector<2x16x256xf32>
    %46 = vector.broadcast %29 : vector<2x1x256xf32> to vector<2x8x256xf32>
    %47 = arith.mulf %17, %46 : vector<2x8x256xf32>
    %48 = vector.broadcast %25 : vector<2x1x256xf32> to vector<2x8x256xf32>
    %49 = arith.mulf %19, %48 : vector<2x8x256xf32>
    %50 = arith.subf %47, %49 : vector<2x8x256xf32>
    %51 = tpu.concatenate %21, %50 in 1 : vector<2x8x256xf32>, vector<2x8x256xf32> -> vector<2x16x256xf32>
    %52 = vector.extract_strided_slice %39 {offsets = [0, 15, 0], sizes = [2, 1, 256], strides = [1, 1, 1]} : vector<2x16x256xf32> to vector<2x1x256xf32>
    %53 = vector.extract_strided_slice %39 {offsets = [0, 0, 0], sizes = [2, 15, 256], strides = [1, 1, 1]} : vector<2x16x256xf32> to vector<2x15x256xf32>
    %54 = tpu.concatenate %52, %53 in 1 : vector<2x1x256xf32>, vector<2x15x256xf32> -> vector<2x16x256xf32>
    %55 = vector.extract_strided_slice %45 {offsets = [0, 15, 0], sizes = [2, 1, 256], strides = [1, 1, 1]} : vector<2x16x256xf32> to vector<2x1x256xf32>
    %56 = vector.extract_strided_slice %45 {offsets = [0, 0, 0], sizes = [2, 15, 256], strides = [1, 1, 1]} : vector<2x16x256xf32> to vector<2x15x256xf32>
    %57 = tpu.concatenate %55, %56 in 1 : vector<2x1x256xf32>, vector<2x15x256xf32> -> vector<2x16x256xf32>
    %58 = vector.extract_strided_slice %51 {offsets = [0, 15, 0], sizes = [2, 1, 256], strides = [1, 1, 1]} : vector<2x16x256xf32> to vector<2x1x256xf32>
    %59 = vector.extract_strided_slice %51 {offsets = [0, 0, 0], sizes = [2, 15, 256], strides = [1, 1, 1]} : vector<2x16x256xf32> to vector<2x15x256xf32>
    %60 = tpu.concatenate %58, %59 in 1 : vector<2x1x256xf32>, vector<2x15x256xf32> -> vector<2x16x256xf32>
    %61 = arith.mulf %54, %54 : vector<2x16x256xf32>
    %62 = arith.mulf %57, %57 : vector<2x16x256xf32>
    %63 = arith.addf %61, %62 : vector<2x16x256xf32>
    %64 = arith.mulf %60, %60 : vector<2x16x256xf32>
    %65 = arith.addf %63, %64 : vector<2x16x256xf32>
    %cst_18 = arith.constant 9.99999997E-7 : f32
    %66 = vector.broadcast %cst_18 : f32 to vector<2x16x256xf32>
    %67 = arith.addf %65, %66 : vector<2x16x256xf32>
    %68 = math.rsqrt %67 : vector<2x16x256xf32>
    %69 = arith.mulf %57, %51 : vector<2x16x256xf32>
    %70 = arith.mulf %60, %45 : vector<2x16x256xf32>
    %71 = arith.subf %69, %70 : vector<2x16x256xf32>
    %72 = arith.mulf %71, %68 : vector<2x16x256xf32>
    %73 = arith.mulf %60, %39 : vector<2x16x256xf32>
    %74 = arith.mulf %54, %51 : vector<2x16x256xf32>
    %75 = arith.subf %73, %74 : vector<2x16x256xf32>
    %76 = arith.mulf %75, %68 : vector<2x16x256xf32>
    %77 = arith.mulf %54, %45 : vector<2x16x256xf32>
    %78 = arith.mulf %57, %39 : vector<2x16x256xf32>
    %79 = arith.subf %77, %78 : vector<2x16x256xf32>
    %80 = arith.mulf %79, %68 : vector<2x16x256xf32>
    %cst_19 = arith.constant dense<0.000000e+00> : vector<2x8x256xf32>
    %81 = tpu.matmul %2, %39, %cst_19 {dimension_numbers = #tpu.dot_dimension_numbers<[2], [1], [1], [2], [0, 0, 0, 1, 1, 2], [0], [0]>} : vector<2x8x16xf32>, vector<2x16x256xf32>, vector<2x8x256xf32> -> vector<2x8x256xf32>
    %cst_20 = arith.constant dense<0.000000e+00> : vector<2x8x256xf32>
    %82 = tpu.matmul %2, %45, %cst_20 {dimension_numbers = #tpu.dot_dimension_numbers<[2], [1], [1], [2], [0, 0, 0, 1, 1, 2], [0], [0]>} : vector<2x8x16xf32>, vector<2x16x256xf32>, vector<2x8x256xf32> -> vector<2x8x256xf32>
    %cst_21 = arith.constant dense<0.000000e+00> : vector<2x8x256xf32>
    %83 = tpu.matmul %2, %51, %cst_21 {dimension_numbers = #tpu.dot_dimension_numbers<[2], [1], [1], [2], [0, 0, 0, 1, 1, 2], [0], [0]>} : vector<2x8x16xf32>, vector<2x16x256xf32>, vector<2x8x256xf32> -> vector<2x8x256xf32>
    %84 = vector.extract_strided_slice %81 {offsets = [0, 0, 0], sizes = [2, 4, 256], strides = [1, 1, 1]} : vector<2x8x256xf32> to vector<2x4x256xf32>
    %cst_22 = arith.constant dense<0.000000e+00> : vector<2x4x256xf32>
    %85 = tpu.matmul %5, %72, %cst_22 {dimension_numbers = #tpu.dot_dimension_numbers<[2], [1], [1], [2], [0, 0, 0, 1, 1, 2], [0], [0]>} : vector<2x4x16xf32>, vector<2x16x256xf32>, vector<2x4x256xf32> -> vector<2x4x256xf32>
    %86 = arith.addf %84, %85 : vector<2x4x256xf32>
    %87 = vector.extract_strided_slice %82 {offsets = [0, 0, 0], sizes = [2, 4, 256], strides = [1, 1, 1]} : vector<2x8x256xf32> to vector<2x4x256xf32>
    %cst_23 = arith.constant dense<0.000000e+00> : vector<2x4x256xf32>
    %88 = tpu.matmul %5, %76, %cst_23 {dimension_numbers = #tpu.dot_dimension_numbers<[2], [1], [1], [2], [0, 0, 0, 1, 1, 2], [0], [0]>} : vector<2x4x16xf32>, vector<2x16x256xf32>, vector<2x4x256xf32> -> vector<2x4x256xf32>
    %89 = arith.addf %87, %88 : vector<2x4x256xf32>
    %90 = vector.extract_strided_slice %83 {offsets = [0, 0, 0], sizes = [2, 4, 256], strides = [1, 1, 1]} : vector<2x8x256xf32> to vector<2x4x256xf32>
    %cst_24 = arith.constant dense<0.000000e+00> : vector<2x4x256xf32>
    %91 = tpu.matmul %5, %80, %cst_24 {dimension_numbers = #tpu.dot_dimension_numbers<[2], [1], [1], [2], [0, 0, 0, 1, 1, 2], [0], [0]>} : vector<2x4x16xf32>, vector<2x16x256xf32>, vector<2x4x256xf32> -> vector<2x4x256xf32>
    %92 = arith.addf %90, %91 : vector<2x4x256xf32>
    %93 = vector.extract_strided_slice %81 {offsets = [0, 4, 0], sizes = [2, 4, 256], strides = [1, 1, 1]} : vector<2x8x256xf32> to vector<2x4x256xf32>
    %94 = vector.extract_strided_slice %82 {offsets = [0, 4, 0], sizes = [2, 4, 256], strides = [1, 1, 1]} : vector<2x8x256xf32> to vector<2x4x256xf32>
    %95 = vector.extract_strided_slice %83 {offsets = [0, 4, 0], sizes = [2, 4, 256], strides = [1, 1, 1]} : vector<2x8x256xf32> to vector<2x4x256xf32>
    %96 = arith.mulf %86, %86 : vector<2x4x256xf32>
    %97 = arith.mulf %89, %89 : vector<2x4x256xf32>
    %98 = arith.addf %96, %97 : vector<2x4x256xf32>
    %99 = arith.mulf %92, %92 : vector<2x4x256xf32>
    %100 = arith.addf %98, %99 : vector<2x4x256xf32>
    %cst_25 = arith.constant 9.99999997E-7 : f32
    %101 = vector.broadcast %cst_25 : f32 to vector<2x4x256xf32>
    %102 = arith.addf %100, %101 : vector<2x4x256xf32>
    %103 = math.sqrt %102 : vector<2x4x256xf32>
    %cst_26 = arith.constant dense<0.000000e+00> : vector<4xf32>
    %104 = vector.multi_reduction <add>, %103, %cst_26 [0, 2] : vector<2x4x256xf32> to vector<4xf32>
    %105 = vector.shape_cast %104 : vector<4xf32> to vector<1x4x1xf32>
    %cst_27 = arith.constant 5.120000e+02 : f32
    %106 = vector.broadcast %cst_27 : f32 to vector<1x4x1xf32>
    %107 = arith.divf %105, %106 : vector<1x4x1xf32>
    %108 = vector.broadcast %107 : vector<1x4x1xf32> to vector<2x4x256xf32>
    %109 = arith.subf %103, %108 : vector<2x4x256xf32>
    %110 = arith.mulf %109, %109 : vector<2x4x256xf32>
    %cst_28 = arith.constant dense<0.000000e+00> : vector<4xf32>
    %111 = vector.multi_reduction <add>, %110, %cst_28 [0, 2] : vector<2x4x256xf32> to vector<4xf32>
    %112 = vector.shape_cast %111 : vector<4xf32> to vector<1x4x1xf32>
    %cst_29 = arith.constant 5.120000e+02 : f32
    %113 = vector.broadcast %cst_29 : f32 to vector<1x4x1xf32>
    %114 = arith.divf %112, %113 : vector<1x4x1xf32>
    %115 = vector.broadcast %107 : vector<1x4x1xf32> to vector<2x4x256xf32>
    %116 = arith.subf %103, %115 : vector<2x4x256xf32>
    %cst_30 = arith.constant 9.99999974E-6 : f32
    %117 = vector.broadcast %cst_30 : f32 to vector<1x4x1xf32>
    %118 = arith.addf %114, %117 : vector<1x4x1xf32>
    %119 = math.rsqrt %118 : vector<1x4x1xf32>
    %120 = vector.broadcast %119 : vector<1x4x1xf32> to vector<2x4x256xf32>
    %121 = arith.mulf %116, %120 : vector<2x4x256xf32>
    %cst_31 = arith.constant 9.99999997E-7 : f32
    %122 = vector.broadcast %cst_31 : f32 to vector<2x4x256xf32>
    %123 = arith.addf %103, %122 : vector<2x4x256xf32>
    %124 = arith.divf %121, %123 : vector<2x4x256xf32>
    %125 = arith.mulf %86, %124 : vector<2x4x256xf32>
    %126 = arith.mulf %89, %124 : vector<2x4x256xf32>
    %127 = arith.mulf %92, %124 : vector<2x4x256xf32>
    %128 = arith.mulf %125, %93 : vector<2x4x256xf32>
    %129 = arith.mulf %126, %94 : vector<2x4x256xf32>
    %130 = arith.addf %128, %129 : vector<2x4x256xf32>
    %131 = arith.mulf %127, %95 : vector<2x4x256xf32>
    %132 = arith.addf %130, %131 : vector<2x4x256xf32>
    %133 = arith.mulf %93, %93 : vector<2x4x256xf32>
    %134 = arith.mulf %94, %94 : vector<2x4x256xf32>
    %135 = arith.addf %133, %134 : vector<2x4x256xf32>
    %136 = arith.mulf %95, %95 : vector<2x4x256xf32>
    %137 = arith.addf %135, %136 : vector<2x4x256xf32>
    %cst_32 = arith.constant 0.000000e+00 : f32
    %138 = vector.broadcast %cst_32 : f32 to vector<2x4x256xf32>
    %139 = arith.cmpf oge, %132, %138 : vector<2x4x256xf32>
    %cst_33 = arith.constant 9.99999997E-7 : f32
    %140 = vector.broadcast %cst_33 : f32 to vector<2x4x256xf32>
    %141 = arith.addf %137, %140 : vector<2x4x256xf32>
    %142 = arith.divf %132, %141 : vector<2x4x256xf32>
    %cst_34 = arith.constant 0.000000e+00 : f32
    %143 = vector.broadcast %cst_34 : f32 to vector<2x4x256xf32>
    %144 = arith.select %139, %143, %142 : vector<2x4x256xi1>, vector<2x4x256xf32>
    %cst_35 = arith.constant 8.000000e-01 : f32
    %145 = vector.broadcast %cst_35 : f32 to vector<2x4x256xf32>
    %146 = arith.mulf %145, %144 : vector<2x4x256xf32>
    %147 = arith.mulf %146, %93 : vector<2x4x256xf32>
    %148 = arith.subf %125, %147 : vector<2x4x256xf32>
    %149 = arith.mulf %146, %94 : vector<2x4x256xf32>
    %150 = arith.subf %126, %149 : vector<2x4x256xf32>
    %151 = arith.mulf %146, %95 : vector<2x4x256xf32>
    %152 = arith.subf %127, %151 : vector<2x4x256xf32>
    %cst_36 = arith.constant dense<0.000000e+00> : vector<2x256xf32>
    %153 = vector.multi_reduction <add>, %148, %cst_36 [1] : vector<2x4x256xf32> to vector<2x256xf32>
    %154 = vector.shape_cast %153 : vector<2x256xf32> to vector<2x1x256xf32>
    %cst_37 = arith.constant 4.000000e+00 : f32
    %155 = vector.broadcast %cst_37 : f32 to vector<2x1x256xf32>
    %156 = arith.divf %154, %155 : vector<2x1x256xf32>
    %cst_38 = arith.constant dense<0.000000e+00> : vector<2x256xf32>
    %157 = vector.multi_reduction <add>, %150, %cst_38 [1] : vector<2x4x256xf32> to vector<2x256xf32>
    %158 = vector.shape_cast %157 : vector<2x256xf32> to vector<2x1x256xf32>
    %cst_39 = arith.constant 4.000000e+00 : f32
    %159 = vector.broadcast %cst_39 : f32 to vector<2x1x256xf32>
    %160 = arith.divf %158, %159 : vector<2x1x256xf32>
    %cst_40 = arith.constant dense<0.000000e+00> : vector<2x256xf32>
    %161 = vector.multi_reduction <add>, %152, %cst_40 [1] : vector<2x4x256xf32> to vector<2x256xf32>
    %162 = vector.shape_cast %161 : vector<2x256xf32> to vector<2x1x256xf32>
    %cst_41 = arith.constant 4.000000e+00 : f32
    %163 = vector.broadcast %cst_41 : f32 to vector<2x1x256xf32>
    %164 = arith.divf %162, %163 : vector<2x1x256xf32>
    %165 = vector.broadcast %164 : vector<2x1x256xf32> to vector<2x4x256xf32>
    %166 = arith.mulf %150, %165 : vector<2x4x256xf32>
    %167 = vector.broadcast %160 : vector<2x1x256xf32> to vector<2x4x256xf32>
    %168 = arith.mulf %152, %167 : vector<2x4x256xf32>
    %169 = arith.subf %166, %168 : vector<2x4x256xf32>
    %170 = tpu.concatenate %148, %169 in 1 : vector<2x4x256xf32>, vector<2x4x256xf32> -> vector<2x8x256xf32>
    %171 = vector.broadcast %156 : vector<2x1x256xf32> to vector<2x4x256xf32>
    %172 = arith.mulf %152, %171 : vector<2x4x256xf32>
    %173 = vector.broadcast %164 : vector<2x1x256xf32> to vector<2x4x256xf32>
    %174 = arith.mulf %148, %173 : vector<2x4x256xf32>
    %175 = arith.subf %172, %174 : vector<2x4x256xf32>
    %176 = tpu.concatenate %150, %175 in 1 : vector<2x4x256xf32>, vector<2x4x256xf32> -> vector<2x8x256xf32>
    %177 = vector.broadcast %160 : vector<2x1x256xf32> to vector<2x4x256xf32>
    %178 = arith.mulf %148, %177 : vector<2x4x256xf32>
    %179 = vector.broadcast %156 : vector<2x1x256xf32> to vector<2x4x256xf32>
    %180 = arith.mulf %150, %179 : vector<2x4x256xf32>
    %181 = arith.subf %178, %180 : vector<2x4x256xf32>
    %182 = tpu.concatenate %152, %181 in 1 : vector<2x4x256xf32>, vector<2x4x256xf32> -> vector<2x8x256xf32>
    %183 = vector.extract_strided_slice %170 {offsets = [0, 7, 0], sizes = [2, 1, 256], strides = [1, 1, 1]} : vector<2x8x256xf32> to vector<2x1x256xf32>
    %184 = vector.extract_strided_slice %170 {offsets = [0, 0, 0], sizes = [2, 7, 256], strides = [1, 1, 1]} : vector<2x8x256xf32> to vector<2x7x256xf32>
    %185 = tpu.concatenate %183, %184 in 1 : vector<2x1x256xf32>, vector<2x7x256xf32> -> vector<2x8x256xf32>
    %186 = vector.extract_strided_slice %176 {offsets = [0, 7, 0], sizes = [2, 1, 256], strides = [1, 1, 1]} : vector<2x8x256xf32> to vector<2x1x256xf32>
    %187 = vector.extract_strided_slice %176 {offsets = [0, 0, 0], sizes = [2, 7, 256], strides = [1, 1, 1]} : vector<2x8x256xf32> to vector<2x7x256xf32>
    %188 = tpu.concatenate %186, %187 in 1 : vector<2x1x256xf32>, vector<2x7x256xf32> -> vector<2x8x256xf32>
    %189 = vector.extract_strided_slice %182 {offsets = [0, 7, 0], sizes = [2, 1, 256], strides = [1, 1, 1]} : vector<2x8x256xf32> to vector<2x1x256xf32>
    %190 = vector.extract_strided_slice %182 {offsets = [0, 0, 0], sizes = [2, 7, 256], strides = [1, 1, 1]} : vector<2x8x256xf32> to vector<2x7x256xf32>
    %191 = tpu.concatenate %189, %190 in 1 : vector<2x1x256xf32>, vector<2x7x256xf32> -> vector<2x8x256xf32>
    %192 = arith.mulf %185, %185 : vector<2x8x256xf32>
    %193 = arith.mulf %188, %188 : vector<2x8x256xf32>
    %194 = arith.addf %192, %193 : vector<2x8x256xf32>
    %195 = arith.mulf %191, %191 : vector<2x8x256xf32>
    %196 = arith.addf %194, %195 : vector<2x8x256xf32>
    %cst_42 = arith.constant 9.99999997E-7 : f32
    %197 = vector.broadcast %cst_42 : f32 to vector<2x8x256xf32>
    %198 = arith.addf %196, %197 : vector<2x8x256xf32>
    %199 = math.rsqrt %198 : vector<2x8x256xf32>
    %200 = arith.mulf %188, %182 : vector<2x8x256xf32>
    %201 = arith.mulf %191, %176 : vector<2x8x256xf32>
    %202 = arith.subf %200, %201 : vector<2x8x256xf32>
    %203 = arith.mulf %202, %199 : vector<2x8x256xf32>
    %204 = arith.mulf %191, %170 : vector<2x8x256xf32>
    %205 = arith.mulf %185, %182 : vector<2x8x256xf32>
    %206 = arith.subf %204, %205 : vector<2x8x256xf32>
    %207 = arith.mulf %206, %199 : vector<2x8x256xf32>
    %208 = arith.mulf %185, %176 : vector<2x8x256xf32>
    %209 = arith.mulf %188, %170 : vector<2x8x256xf32>
    %210 = arith.subf %208, %209 : vector<2x8x256xf32>
    %211 = arith.mulf %210, %199 : vector<2x8x256xf32>
    %cst_43 = arith.constant dense<0.000000e+00> : vector<2x4x256xf32>
    %212 = tpu.matmul %8, %170, %cst_43 {dimension_numbers = #tpu.dot_dimension_numbers<[2], [1], [1], [2], [0, 0, 0, 1, 1, 2], [0], [0]>} : vector<2x4x8xf32>, vector<2x8x256xf32>, vector<2x4x256xf32> -> vector<2x4x256xf32>
    %cst_44 = arith.constant dense<0.000000e+00> : vector<2x4x256xf32>
    %213 = tpu.matmul %8, %176, %cst_44 {dimension_numbers = #tpu.dot_dimension_numbers<[2], [1], [1], [2], [0, 0, 0, 1, 1, 2], [0], [0]>} : vector<2x4x8xf32>, vector<2x8x256xf32>, vector<2x4x256xf32> -> vector<2x4x256xf32>
    %cst_45 = arith.constant dense<0.000000e+00> : vector<2x4x256xf32>
    %214 = tpu.matmul %8, %182, %cst_45 {dimension_numbers = #tpu.dot_dimension_numbers<[2], [1], [1], [2], [0, 0, 0, 1, 1, 2], [0], [0]>} : vector<2x4x8xf32>, vector<2x8x256xf32>, vector<2x4x256xf32> -> vector<2x4x256xf32>
    %215 = vector.extract_strided_slice %212 {offsets = [0, 0, 0], sizes = [2, 2, 256], strides = [1, 1, 1]} : vector<2x4x256xf32> to vector<2x2x256xf32>
    %cst_46 = arith.constant dense<0.000000e+00> : vector<2x2x256xf32>
    %216 = tpu.matmul %11, %203, %cst_46 {dimension_numbers = #tpu.dot_dimension_numbers<[2], [1], [1], [2], [0, 0, 0, 1, 1, 2], [0], [0]>} : vector<2x2x8xf32>, vector<2x8x256xf32>, vector<2x2x256xf32> -> vector<2x2x256xf32>
    %217 = arith.addf %215, %216 : vector<2x2x256xf32>
    %218 = vector.extract_strided_slice %213 {offsets = [0, 0, 0], sizes = [2, 2, 256], strides = [1, 1, 1]} : vector<2x4x256xf32> to vector<2x2x256xf32>
    %cst_47 = arith.constant dense<0.000000e+00> : vector<2x2x256xf32>
    %219 = tpu.matmul %11, %207, %cst_47 {dimension_numbers = #tpu.dot_dimension_numbers<[2], [1], [1], [2], [0, 0, 0, 1, 1, 2], [0], [0]>} : vector<2x2x8xf32>, vector<2x8x256xf32>, vector<2x2x256xf32> -> vector<2x2x256xf32>
    %220 = arith.addf %218, %219 : vector<2x2x256xf32>
    %221 = vector.extract_strided_slice %214 {offsets = [0, 0, 0], sizes = [2, 2, 256], strides = [1, 1, 1]} : vector<2x4x256xf32> to vector<2x2x256xf32>
    %cst_48 = arith.constant dense<0.000000e+00> : vector<2x2x256xf32>
    %222 = tpu.matmul %11, %211, %cst_48 {dimension_numbers = #tpu.dot_dimension_numbers<[2], [1], [1], [2], [0, 0, 0, 1, 1, 2], [0], [0]>} : vector<2x2x8xf32>, vector<2x8x256xf32>, vector<2x2x256xf32> -> vector<2x2x256xf32>
    %223 = arith.addf %221, %222 : vector<2x2x256xf32>
    %224 = vector.extract_strided_slice %212 {offsets = [0, 2, 0], sizes = [2, 2, 256], strides = [1, 1, 1]} : vector<2x4x256xf32> to vector<2x2x256xf32>
    %225 = vector.extract_strided_slice %213 {offsets = [0, 2, 0], sizes = [2, 2, 256], strides = [1, 1, 1]} : vector<2x4x256xf32> to vector<2x2x256xf32>
    %226 = vector.extract_strided_slice %214 {offsets = [0, 2, 0], sizes = [2, 2, 256], strides = [1, 1, 1]} : vector<2x4x256xf32> to vector<2x2x256xf32>
    %227 = arith.mulf %217, %217 : vector<2x2x256xf32>
    %228 = arith.mulf %220, %220 : vector<2x2x256xf32>
    %229 = arith.addf %227, %228 : vector<2x2x256xf32>
    %230 = arith.mulf %223, %223 : vector<2x2x256xf32>
    %231 = arith.addf %229, %230 : vector<2x2x256xf32>
    %cst_49 = arith.constant 9.99999997E-7 : f32
    %232 = vector.broadcast %cst_49 : f32 to vector<2x2x256xf32>
    %233 = arith.addf %231, %232 : vector<2x2x256xf32>
    %234 = math.sqrt %233 : vector<2x2x256xf32>
    %cst_50 = arith.constant dense<0.000000e+00> : vector<2xf32>
    %235 = vector.multi_reduction <add>, %234, %cst_50 [0, 2] : vector<2x2x256xf32> to vector<2xf32>
    %236 = vector.shape_cast %235 : vector<2xf32> to vector<1x2x1xf32>
    %cst_51 = arith.constant 5.120000e+02 : f32
    %237 = vector.broadcast %cst_51 : f32 to vector<1x2x1xf32>
    %238 = arith.divf %236, %237 : vector<1x2x1xf32>
    %239 = vector.broadcast %238 : vector<1x2x1xf32> to vector<2x2x256xf32>
    %240 = arith.subf %234, %239 : vector<2x2x256xf32>
    %241 = arith.mulf %240, %240 : vector<2x2x256xf32>
    %cst_52 = arith.constant dense<0.000000e+00> : vector<2xf32>
    %242 = vector.multi_reduction <add>, %241, %cst_52 [0, 2] : vector<2x2x256xf32> to vector<2xf32>
    %243 = vector.shape_cast %242 : vector<2xf32> to vector<1x2x1xf32>
    %cst_53 = arith.constant 5.120000e+02 : f32
    %244 = vector.broadcast %cst_53 : f32 to vector<1x2x1xf32>
    %245 = arith.divf %243, %244 : vector<1x2x1xf32>
    %246 = vector.broadcast %238 : vector<1x2x1xf32> to vector<2x2x256xf32>
    %247 = arith.subf %234, %246 : vector<2x2x256xf32>
    %cst_54 = arith.constant 9.99999974E-6 : f32
    %248 = vector.broadcast %cst_54 : f32 to vector<1x2x1xf32>
    %249 = arith.addf %245, %248 : vector<1x2x1xf32>
    %250 = math.rsqrt %249 : vector<1x2x1xf32>
    %251 = vector.broadcast %250 : vector<1x2x1xf32> to vector<2x2x256xf32>
    %252 = arith.mulf %247, %251 : vector<2x2x256xf32>
    %cst_55 = arith.constant 9.99999997E-7 : f32
    %253 = vector.broadcast %cst_55 : f32 to vector<2x2x256xf32>
    %254 = arith.addf %234, %253 : vector<2x2x256xf32>
    %255 = arith.divf %252, %254 : vector<2x2x256xf32>
    %256 = arith.mulf %217, %255 : vector<2x2x256xf32>
    %257 = arith.mulf %220, %255 : vector<2x2x256xf32>
    %258 = arith.mulf %223, %255 : vector<2x2x256xf32>
    %259 = arith.mulf %256, %224 : vector<2x2x256xf32>
    %260 = arith.mulf %257, %225 : vector<2x2x256xf32>
    %261 = arith.addf %259, %260 : vector<2x2x256xf32>
    %262 = arith.mulf %258, %226 : vector<2x2x256xf32>
    %263 = arith.addf %261, %262 : vector<2x2x256xf32>
    %264 = arith.mulf %224, %224 : vector<2x2x256xf32>
    %265 = arith.mulf %225, %225 : vector<2x2x256xf32>
    %266 = arith.addf %264, %265 : vector<2x2x256xf32>
    %267 = arith.mulf %226, %226 : vector<2x2x256xf32>
    %268 = arith.addf %266, %267 : vector<2x2x256xf32>
    %cst_56 = arith.constant 0.000000e+00 : f32
    %269 = vector.broadcast %cst_56 : f32 to vector<2x2x256xf32>
    %270 = arith.cmpf oge, %263, %269 : vector<2x2x256xf32>
    %cst_57 = arith.constant 9.99999997E-7 : f32
    %271 = vector.broadcast %cst_57 : f32 to vector<2x2x256xf32>
    %272 = arith.addf %268, %271 : vector<2x2x256xf32>
    %273 = arith.divf %263, %272 : vector<2x2x256xf32>
    %cst_58 = arith.constant 0.000000e+00 : f32
    %274 = vector.broadcast %cst_58 : f32 to vector<2x2x256xf32>
    %275 = arith.select %270, %274, %273 : vector<2x2x256xi1>, vector<2x2x256xf32>
    %cst_59 = arith.constant 8.000000e-01 : f32
    %276 = vector.broadcast %cst_59 : f32 to vector<2x2x256xf32>
    %277 = arith.mulf %276, %275 : vector<2x2x256xf32>
    %278 = arith.mulf %277, %224 : vector<2x2x256xf32>
    %279 = arith.subf %256, %278 : vector<2x2x256xf32>
    %280 = arith.mulf %277, %225 : vector<2x2x256xf32>
    %281 = arith.subf %257, %280 : vector<2x2x256xf32>
    %282 = arith.mulf %277, %226 : vector<2x2x256xf32>
    %283 = arith.subf %258, %282 : vector<2x2x256xf32>
    %cst_60 = arith.constant dense<0.000000e+00> : vector<2x3x256xf32>
    %284 = tpu.matmul %14, %279, %cst_60 {dimension_numbers = #tpu.dot_dimension_numbers<[2], [1], [1], [2], [0, 0, 0, 1, 1, 2], [0], [0]>} : vector<2x3x2xf32>, vector<2x2x256xf32>, vector<2x3x256xf32> -> vector<2x3x256xf32>
    %cst_61 = arith.constant dense<0.000000e+00> : vector<2x3x256xf32>
    %285 = tpu.matmul %14, %281, %cst_61 {dimension_numbers = #tpu.dot_dimension_numbers<[2], [1], [1], [2], [0, 0, 0, 1, 1, 2], [0], [0]>} : vector<2x3x2xf32>, vector<2x2x256xf32>, vector<2x3x256xf32> -> vector<2x3x256xf32>
    %cst_62 = arith.constant dense<0.000000e+00> : vector<2x3x256xf32>
    %286 = tpu.matmul %14, %283, %cst_62 {dimension_numbers = #tpu.dot_dimension_numbers<[2], [1], [1], [2], [0, 0, 0, 1, 1, 2], [0], [0]>} : vector<2x3x2xf32>, vector<2x2x256xf32>, vector<2x3x256xf32> -> vector<2x3x256xf32>
    %c0_63 = arith.constant 0 : index
    %c0_64 = arith.constant 0 : index
    %c0_65 = arith.constant 0 : index
    %c0_66 = arith.constant 0 : index
    %287 = vector.load %arg7[%c0_63, %c0_64, %c0_65, %c0_66] : memref<2x3x3x256xf32, #tpu.memory_space<vmem>>, vector<2x1x3x256xf32>
    %288 = vector.shape_cast %287 : vector<2x1x3x256xf32> to vector<2x3x256xf32>
    %289 = vector.shape_cast %284 : vector<2x3x256xf32> to vector<2x1x3x256xf32>
    tpu.vector_store %arg7[%c0_63, %c0_64, %c0_65, %c0_66], %289 {strides = array<i32>} : memref<2x3x3x256xf32, #tpu.memory_space<vmem>>, vector<2x1x3x256xf32>,
    %c0_67 = arith.constant 0 : index
    %c1 = arith.constant 1 : index
    %c0_68 = arith.constant 0 : index
    %c0_69 = arith.constant 0 : index
    %290 = vector.load %arg7[%c0_67, %c1, %c0_68, %c0_69] : memref<2x3x3x256xf32, #tpu.memory_space<vmem>>, vector<2x1x3x256xf32>
    %291 = vector.shape_cast %290 : vector<2x1x3x256xf32> to vector<2x3x256xf32>
    %292 = vector.shape_cast %285 : vector<2x3x256xf32> to vector<2x1x3x256xf32>
    tpu.vector_store %arg7[%c0_67, %c1, %c0_68, %c0_69], %292 {strides = array<i32>} : memref<2x3x3x256xf32, #tpu.memory_space<vmem>>, vector<2x1x3x256xf32>,
    %c0_70 = arith.constant 0 : index
    %c2 = arith.constant 2 : index
    %c0_71 = arith.constant 0 : index
    %c0_72 = arith.constant 0 : index
    %293 = vector.load %arg7[%c0_70, %c2, %c0_71, %c0_72] : memref<2x3x3x256xf32, #tpu.memory_space<vmem>>, vector<2x1x3x256xf32>
    %294 = vector.shape_cast %293 : vector<2x1x3x256xf32> to vector<2x3x256xf32>
    %295 = vector.shape_cast %286 : vector<2x3x256xf32> to vector<2x1x3x256xf32>
    tpu.vector_store %arg7[%c0_70, %c2, %c0_71, %c0_72], %295 {strides = array<i32>} : memref<2x3x3x256xf32, #tpu.memory_space<vmem>>, vector<2x1x3x256xf32>,
    %296 = vector.extract_strided_slice %284 {offsets = [0, 0, 0], sizes = [2, 1, 256], strides = [1, 1, 1]} : vector<2x3x256xf32> to vector<2x1x256xf32>
    %297 = vector.broadcast %296 : vector<2x1x256xf32> to vector<2x8x256xf32>
    %298 = arith.mulf %17, %297 : vector<2x8x256xf32>
    %299 = vector.extract_strided_slice %285 {offsets = [0, 0, 0], sizes = [2, 1, 256], strides = [1, 1, 1]} : vector<2x3x256xf32> to vector<2x1x256xf32>
    %300 = vector.broadcast %299 : vector<2x1x256xf32> to vector<2x8x256xf32>
    %301 = arith.mulf %19, %300 : vector<2x8x256xf32>
    %302 = arith.addf %298, %301 : vector<2x8x256xf32>
    %303 = vector.extract_strided_slice %286 {offsets = [0, 0, 0], sizes = [2, 1, 256], strides = [1, 1, 1]} : vector<2x3x256xf32> to vector<2x1x256xf32>
    %304 = vector.broadcast %303 : vector<2x1x256xf32> to vector<2x8x256xf32>
    %305 = arith.mulf %21, %304 : vector<2x8x256xf32>
    %306 = arith.addf %302, %305 : vector<2x8x256xf32>
    %c0_73 = arith.constant 0 : index
    %c0_74 = arith.constant 0 : index
    %c0_75 = arith.constant 0 : index
    %c0_76 = arith.constant 0 : index
    %307 = vector.load %arg6[%c0_73, %c0_74, %c0_75, %c0_76] : memref<2x3x8x256xf32, #tpu.memory_space<vmem>>, vector<2x1x8x256xf32>
    %308 = vector.shape_cast %307 : vector<2x1x8x256xf32> to vector<2x8x256xf32>
    %309 = vector.shape_cast %306 : vector<2x8x256xf32> to vector<2x1x8x256xf32>
    tpu.vector_store %arg6[%c0_73, %c0_74, %c0_75, %c0_76], %309 {strides = array<i32>} : memref<2x3x8x256xf32, #tpu.memory_space<vmem>>, vector<2x1x8x256xf32>,
    %310 = vector.extract_strided_slice %284 {offsets = [0, 1, 0], sizes = [2, 1, 256], strides = [1, 1, 1]} : vector<2x3x256xf32> to vector<2x1x256xf32>
    %311 = vector.broadcast %310 : vector<2x1x256xf32> to vector<2x8x256xf32>
    %312 = arith.mulf %17, %311 : vector<2x8x256xf32>
    %313 = vector.extract_strided_slice %285 {offsets = [0, 1, 0], sizes = [2, 1, 256], strides = [1, 1, 1]} : vector<2x3x256xf32> to vector<2x1x256xf32>
    %314 = vector.broadcast %313 : vector<2x1x256xf32> to vector<2x8x256xf32>
    %315 = arith.mulf %19, %314 : vector<2x8x256xf32>
    %316 = arith.addf %312, %315 : vector<2x8x256xf32>
    %317 = vector.extract_strided_slice %286 {offsets = [0, 1, 0], sizes = [2, 1, 256], strides = [1, 1, 1]} : vector<2x3x256xf32> to vector<2x1x256xf32>
    %318 = vector.broadcast %317 : vector<2x1x256xf32> to vector<2x8x256xf32>
    %319 = arith.mulf %21, %318 : vector<2x8x256xf32>
    %320 = arith.addf %316, %319 : vector<2x8x256xf32>
    %c0_77 = arith.constant 0 : index
    %c1_78 = arith.constant 1 : index
    %c0_79 = arith.constant 0 : index
    %c0_80 = arith.constant 0 : index
    %321 = vector.load %arg6[%c0_77, %c1_78, %c0_79, %c0_80] : memref<2x3x8x256xf32, #tpu.memory_space<vmem>>, vector<2x1x8x256xf32>
    %322 = vector.shape_cast %321 : vector<2x1x8x256xf32> to vector<2x8x256xf32>
    %323 = vector.shape_cast %320 : vector<2x8x256xf32> to vector<2x1x8x256xf32>
    tpu.vector_store %arg6[%c0_77, %c1_78, %c0_79, %c0_80], %323 {strides = array<i32>} : memref<2x3x8x256xf32, #tpu.memory_space<vmem>>, vector<2x1x8x256xf32>,
    %324 = vector.extract_strided_slice %284 {offsets = [0, 2, 0], sizes = [2, 1, 256], strides = [1, 1, 1]} : vector<2x3x256xf32> to vector<2x1x256xf32>
    %325 = vector.broadcast %324 : vector<2x1x256xf32> to vector<2x8x256xf32>
    %326 = arith.mulf %17, %325 : vector<2x8x256xf32>
    %327 = vector.extract_strided_slice %285 {offsets = [0, 2, 0], sizes = [2, 1, 256], strides = [1, 1, 1]} : vector<2x3x256xf32> to vector<2x1x256xf32>
    %328 = vector.broadcast %327 : vector<2x1x256xf32> to vector<2x8x256xf32>
    %329 = arith.mulf %19, %328 : vector<2x8x256xf32>
    %330 = arith.addf %326, %329 : vector<2x8x256xf32>
    %331 = vector.extract_strided_slice %286 {offsets = [0, 2, 0], sizes = [2, 1, 256], strides = [1, 1, 1]} : vector<2x3x256xf32> to vector<2x1x256xf32>
    %332 = vector.broadcast %331 : vector<2x1x256xf32> to vector<2x8x256xf32>
    %333 = arith.mulf %21, %332 : vector<2x8x256xf32>
    %334 = arith.addf %330, %333 : vector<2x8x256xf32>
    %c0_81 = arith.constant 0 : index
    %c2_82 = arith.constant 2 : index
    %c0_83 = arith.constant 0 : index
    %c0_84 = arith.constant 0 : index
    %335 = vector.load %arg6[%c0_81, %c2_82, %c0_83, %c0_84] : memref<2x3x8x256xf32, #tpu.memory_space<vmem>>, vector<2x1x8x256xf32>
    %336 = vector.shape_cast %335 : vector<2x1x8x256xf32> to vector<2x8x256xf32>
    %337 = vector.shape_cast %334 : vector<2x8x256xf32> to vector<2x1x8x256xf32>
    tpu.vector_store %arg6[%c0_81, %c2_82, %c0_83, %c0_84], %337 {strides = array<i32>} : memref<2x3x8x256xf32, #tpu.memory_space<vmem>>, vector<2x1x8x256xf32>,
    return
  }
}

</mosaic_0001>

<llo_original>
// kernel: vn_std_feature.1
$region0: #{vn_std_feature.1}
  #allocation0 [shape = 'u32[]', space=smem, size = 0x4, offset = 0x4, fixed_abs, tag = 'smem constant byte address 0x4 - core index']
  #allocation1 [shape = 'u32[144,128]{1,0:T(1,128)}', space=vmem, size = 0x12000, scoped, tag = 'internal scratch']
  %s0 = inlined_call_operand.hbm [shape: f32[2,3,8,256], index: 0, kind: input, shape index: {}]
  %s1 = inlined_call_operand.hbm [shape: f32[8,16], index: 1, kind: input, shape index: {}]
  %s2 = inlined_call_operand.hbm [shape: f32[4,16], index: 2, kind: input, shape index: {}]
  %s3 = inlined_call_operand.hbm [shape: f32[4,8], index: 3, kind: input, shape index: {}]
  %s4 = inlined_call_operand.hbm [shape: f32[2,8], index: 4, kind: input, shape index: {}]
  %s5 = inlined_call_operand.hbm [shape: f32[3,2], index: 5, kind: input, shape index: {}]
  %s6 = inlined_call_operand.hbm [shape: f32[2,3,8,256], index: 6, kind: output, shape index: {0}]
  %s7 = inlined_call_operand.hbm [shape: f32[2,3,3,256], index: 7, kind: output, shape index: {1}]
  %8 = xla_tuple %s6, %s7
  %s9 = sld [smem:[#allocation0]]
  $region66: #{vn_std_feature.1} parent=0
    _
  %s11 = ssub.s32 1, %s9
  %s12 = scalar_select 0, %s11, %s9
  $region1: #{vn_std_feature.1} parent=0
    #allocation2 [shape = 'u8[49152]{0}', space=vmem, size = 0xc000, scoped, tag = 'input window, operand 0, single buffered']
    #allocation3 [shape = 's32[1]{0}', space=sflag, size = 0x4, scoped, tag = 'scoped memory for vn_std_feature.1']
    #allocation4 [shape = 's32[1]{0}', space=sflag, size = 0x4, scoped, tag = 'scoped memory for vn_std_feature.1']
    #allocation5 [shape = 'u8[4096]{0}', space=vmem, size = 0x1000, scoped, tag = 'input window, operand 1, single buffered']
    #allocation6 [shape = 's32[1]{0}', space=sflag, size = 0x4, scoped, tag = 'scoped memory for vn_std_feature.1']
    #allocation7 [shape = 'u8[2048]{0}', space=vmem, size = 0x800, scoped, tag = 'input window, operand 2, single buffered']
    #allocation8 [shape = 'u8[2048]{0}', space=vmem, size = 0x800, scoped, tag = 'input window, operand 3, single buffered']
    #allocation9 [shape = 's32[1]{0}', space=sflag, size = 0x4, scoped, tag = 'scoped memory for vn_std_feature.1']
    #allocation10 [shape = 'u8[1024]{0}', space=vmem, size = 0x400, scoped, tag = 'input window, operand 4, single buffered']
    #allocation11 [shape = 'u8[2048]{0}', space=vmem, size = 0x800, scoped, tag = 'input window, operand 5, single buffered']
    #allocation12 [shape = 's32[1]{0}', space=sflag, size = 0x4, scoped, tag = 'scoped memory for vn_std_feature.1']
    #allocation13 [shape = 'u8[49152]{0}', space=vmem, size = 0xc000, scoped, tag = 'output window, operand 0, single buffered']
    #allocation14 [shape = 'u8[24576]{0}', space=vmem, size = 0x6000, scoped, tag = 'output window, operand 1, single buffered']
    #allocation15 [shape = 's32[1]{0}', space=sflag, size = 0x4, scoped, tag = 'scoped memory for vn_std_feature.1']
    %13 = vsyncpa [#allocation3], 0
    %14 = vsyncpa [#allocation6], 0
    %15 = vsyncpa [#allocation9], 0
    %16 = vsyncpa [#allocation12], 0
    %17 = vsyncpa [#allocation4], 0
    %18 = vsyncpa [#allocation15], 0
    // Predicated region
    $region2: #{vn_std_feature.1} parent=1 // pred_check
      _
    $region3: #{vn_std_feature.1} parent=1 // pred_check_branch
      %20 = sbr.rel (0) target = $region5
    $region4: #{vn_std_feature.1} parent=1 // pred_region
      %s22 = ssub.s32 1536, 1536
      %23 = vsyncadd [#allocation3], %s22
      %s24 = sshll.u32 [#allocation2], 4
      %s25 = int_to_ptr.vmem [resolvable:$true] %s24
      %30 = dma.hbm_to_vmem [thread:$0]  %s0, 1536, %s25, [#allocation3], 256, 256, 16
    $region5: #{vn_std_feature.1} parent=1 // pred_fallthru
      _
    // Predicated region
    $region6: #{vn_std_feature.1} parent=1 // pred_check
      _
    $region7: #{vn_std_feature.1} parent=1 // pred_check_branch
      %32 = sbr.rel (0) target = $region9
    $region8: #{vn_std_feature.1} parent=1 // pred_region
      %s34 = ssub.s32 128, 128
      %35 = vsyncadd [#allocation6], %s34
      %s37 = sshll.u32 [#allocation5], 4
      %s38 = int_to_ptr.vmem [resolvable:$true] %s37
      %40 = dma.hbm_to_vmem [thread:$0]  %s1, 128, %s38, [#allocation6]
    $region9: #{vn_std_feature.1} parent=1 // pred_fallthru
      _
    // Predicated region
    $region10: #{vn_std_feature.1} parent=1 // pred_check
      _
    $region11: #{vn_std_feature.1} parent=1 // pred_check_branch
      %42 = sbr.rel (0) target = $region13
    $region12: #{vn_std_feature.1} parent=1 // pred_region
      %s44 = ssub.s32 64, 64
      %45 = vsyncadd [#allocation6], %s44
      %s47 = sshll.u32 [#allocation7], 4
      %s48 = int_to_ptr.vmem [resolvable:$true] %s47
      %50 = dma.hbm_to_vmem [thread:$0]  %s2, 64, %s48, [#allocation6]
    $region13: #{vn_std_feature.1} parent=1 // pred_fallthru
      _
    // Predicated region
    $region14: #{vn_std_feature.1} parent=1 // pred_check
      _
    $region15: #{vn_std_feature.1} parent=1 // pred_check_branch
      %52 = sbr.rel (0) target = $region17
    $region16: #{vn_std_feature.1} parent=1 // pred_region
      %s54 = ssub.s32 64, 64
      %55 = vsyncadd [#allocation9], %s54
      %s57 = sshll.u32 [#allocation8], 4
      %s58 = int_to_ptr.vmem [resolvable:$true] %s57
      %60 = dma.hbm_to_vmem [thread:$0]  %s3, 64, %s58, [#allocation9]
    $region17: #{vn_std_feature.1} parent=1 // pred_fallthru
      _
    // Predicated region
    $region18: #{vn_std_feature.1} parent=1 // pred_check
      _
    $region19: #{vn_std_feature.1} parent=1 // pred_check_branch
      %62 = sbr.rel (0) target = $region21
    $region20: #{vn_std_feature.1} parent=1 // pred_region
      %s64 = ssub.s32 32, 32
      %65 = vsyncadd [#allocation9], %s64
      %s67 = sshll.u32 [#allocation10], 4
      %s68 = int_to_ptr.vmem [resolvable:$true] %s67
      %70 = dma.hbm_to_vmem [thread:$0]  %s4, 32, %s68, [#allocation9]
    $region21: #{vn_std_feature.1} parent=1 // pred_fallthru
      _
    // Predicated region
    $region22: #{vn_std_feature.1} parent=1 // pred_check
      _
    $region23: #{vn_std_feature.1} parent=1 // pred_check_branch
      %72 = sbr.rel (0) target = $region25
    $region24: #{vn_std_feature.1} parent=1 // pred_region
      %s74 = ssub.s32 64, 64
      %75 = vsyncadd [#allocation12], %s74
      %s77 = sshll.u32 [#allocation11], 4
      %s78 = int_to_ptr.vmem [resolvable:$true] %s77
      %80 = dma.hbm_to_vmem [thread:$0]  %s5, 64, %s78, [#allocation12]
    $region25: #{vn_std_feature.1} parent=1 // pred_fallthru
      _
    // Predicated region
    $region26: #{vn_std_feature.1} parent=1 // pred_check
      _
    $region27: #{vn_std_feature.1} parent=1 // pred_check_branch
      %82 = sbr.rel (0) target = $region29
    $region28: #{vn_std_feature.1} parent=1 // pred_region
      %83 = dma.done [#allocation3], 1536
    $region29: #{vn_std_feature.1} parent=1 // pred_fallthru
      _
    // Predicated region
    $region30: #{vn_std_feature.1} parent=1 // pred_check
      _
    $region31: #{vn_std_feature.1} parent=1 // pred_check_branch
      %85 = sbr.rel (0) target = $region33
    $region32: #{vn_std_feature.1} parent=1 // pred_region
      %86 = dma.done [#allocation6], 128
    $region33: #{vn_std_feature.1} parent=1 // pred_fallthru
      _
    // Predicated region
    $region34: #{vn_std_feature.1} parent=1 // pred_check
      _
    $region35: #{vn_std_feature.1} parent=1 // pred_check_branch
      %88 = sbr.rel (0) target = $region37
    $region36: #{vn_std_feature.1} parent=1 // pred_region
      %89 = dma.done [#allocation6], 64
    $region37: #{vn_std_feature.1} parent=1 // pred_fallthru
      _
    // Predicated region
    $region38: #{vn_std_feature.1} parent=1 // pred_check
      _
    $region39: #{vn_std_feature.1} parent=1 // pred_check_branch
      %91 = sbr.rel (0) target = $region41
    $region40: #{vn_std_feature.1} parent=1 // pred_region
      %92 = dma.done [#allocation9], 64
    $region41: #{vn_std_feature.1} parent=1 // pred_fallthru
      _
    // Predicated region
    $region42: #{vn_std_feature.1} parent=1 // pred_check
      _
    $region43: #{vn_std_feature.1} parent=1 // pred_check_branch
      %94 = sbr.rel (0) target = $region45
    $region44: #{vn_std_feature.1} parent=1 // pred_region
      %95 = dma.done [#allocation9], 32
    $region45: #{vn_std_feature.1} parent=1 // pred_fallthru
      _
    // Predicated region
    $region46: #{vn_std_feature.1} parent=1 // pred_check
      _
    $region47: #{vn_std_feature.1} parent=1 // pred_check_branch
      %97 = sbr.rel (0) target = $region49
    $region48: #{vn_std_feature.1} parent=1 // pred_region
      %98 = dma.done [#allocation12], 64
    $region49: #{vn_std_feature.1} parent=1 // pred_fallthru
      _
    %v99 = vld [vmem:[#allocation5] sm:$0xff]
    %v100 = vld [vmem:[#allocation7] sm:$0xf]
    %v101 = vld [vmem:[#allocation8] sm:$0xf]
    %v102 = vld [vmem:[#allocation10] sm:$0x3]
    %v103 = vld [vmem:[#allocation11] sm:$0x7]
    %v104 = vld [vmem:[#allocation2] sm:$0xff]
    %v105 = vld [vmem:[#allocation2 + $0x8] sm:$0xff]
    %v106 = vld [vmem:[#allocation2 + $0x10] sm:$0xff]
    %v107 = vld [vmem:[#allocation2 + $0x18] sm:$0xff]
    %v108 = vld [vmem:[#allocation2 + $0x20] sm:$0xff]
    %v109 = vld [vmem:[#allocation2 + $0x28] sm:$0xff]
    %v110 = vld [vmem:[#allocation2 + $0x30] sm:$0xff]
    %v111 = vld [vmem:[#allocation2 + $0x38] sm:$0xff]
    %v112 = vld [vmem:[#allocation2 + $0x40] sm:$0xff]
    %v113 = vld [vmem:[#allocation2 + $0x48] sm:$0xff]
    %v114 = vld [vmem:[#allocation2 + $0x50] sm:$0xff]
    %v115 = vld [vmem:[#allocation2 + $0x58] sm:$0xff]
    %v116 = vrot.slane %v104, 4
    %v117 = vadd.f32 %v104, %v116
    %v118 = vrot.slane %v117, 2
    %v119 = vadd.f32 %v117, %v118
    %v120 = vrot.slane %v119, 1
    %v121 = vadd.f32 %v119, %v120
    %v122 = vrot.slane %v105, 4
    %v123 = vadd.f32 %v105, %v122
    %v124 = vrot.slane %v123, 2
    %v125 = vadd.f32 %v123, %v124
    %v126 = vrot.slane %v125, 1
    %v127 = vadd.f32 %v125, %v126
    %v128 = vrot.slane %v110, 4
    %v129 = vadd.f32 %v110, %v128
    %v130 = vrot.slane %v129, 2
    %v131 = vadd.f32 %v129, %v130
    %v132 = vrot.slane %v131, 1
    %v133 = vadd.f32 %v131, %v132
    %v134 = vrot.slane %v111, 4
    %v135 = vadd.f32 %v111, %v134
    %v136 = vrot.slane %v135, 2
    %v137 = vadd.f32 %v135, %v136
    %v138 = vrot.slane %v137, 1
    %v139 = vadd.f32 %v137, %v138
    %v140 = vrcp.pop 8.0
    %v141 = vmul.f32 %v121, %v140
    %v142 = vmul.f32 %v127, %v140
    %v143 = vmul.f32 %v133, %v140
    %v144 = vmul.f32 %v139, %v140
    %v145 = vrot.slane %v106, 4
    %v146 = vadd.f32 %v106, %v145
    %v147 = vrot.slane %v146, 2
    %v148 = vadd.f32 %v146, %v147
    %v149 = vrot.slane %v148, 1
    %v150 = vadd.f32 %v148, %v149
    %v151 = vrot.slane %v107, 4
    %v152 = vadd.f32 %v107, %v151
    %v153 = vrot.slane %v152, 2
    %v154 = vadd.f32 %v152, %v153
    %v155 = vrot.slane %v154, 1
    %v156 = vadd.f32 %v154, %v155
    %v157 = vrot.slane %v112, 4
    %v158 = vadd.f32 %v112, %v157
    %v159 = vrot.slane %v158, 2
    %v160 = vadd.f32 %v158, %v159
    %v161 = vrot.slane %v160, 1
    %v162 = vadd.f32 %v160, %v161
    %v163 = vrot.slane %v113, 4
    %v164 = vadd.f32 %v113, %v163
    %v165 = vrot.slane %v164, 2
    %v166 = vadd.f32 %v164, %v165
    %v167 = vrot.slane %v166, 1
    %v168 = vadd.f32 %v166, %v167
    %v169 = vmul.f32 %v150, %v140
    %v170 = vmul.f32 %v156, %v140
    %v171 = vmul.f32 %v162, %v140
    %v172 = vmul.f32 %v168, %v140
    %v173 = vrot.slane %v108, 4
    %v174 = vadd.f32 %v108, %v173
    %v175 = vrot.slane %v174, 2
    %v176 = vadd.f32 %v174, %v175
    %v177 = vrot.slane %v176, 1
    %v178 = vadd.f32 %v176, %v177
    %v179 = vrot.slane %v109, 4
    %v180 = vadd.f32 %v109, %v179
    %v181 = vrot.slane %v180, 2
    %v182 = vadd.f32 %v180, %v181
    %v183 = vrot.slane %v182, 1
    %v184 = vadd.f32 %v182, %v183
    %v185 = vrot.slane %v114, 4
    %v186 = vadd.f32 %v114, %v185
    %v187 = vrot.slane %v186, 2
    %v188 = vadd.f32 %v186, %v187
    %v189 = vrot.slane %v188, 1
    %v190 = vadd.f32 %v188, %v189
    %v191 = vrot.slane %v115, 4
    %v192 = vadd.f32 %v115, %v191
    %v193 = vrot.slane %v192, 2
    %v194 = vadd.f32 %v192, %v193
    %v195 = vrot.slane %v194, 1
    %v196 = vadd.f32 %v194, %v195
    %v197 = vmul.f32 %v178, %v140
    %v198 = vmul.f32 %v184, %v140
    %v199 = vmul.f32 %v190, %v140
    %v200 = vmul.f32 %v196, %v140
    %v201 = vmul.f32 %v106, %v197
    %v202 = vmul.f32 %v107, %v198
    %v203 = vmul.f32 %v112, %v199
    %v204 = vmul.f32 %v113, %v200
    %v205 = vmul.f32 %v108, %v169
    %v206 = vmul.f32 %v109, %v170
    %v207 = vmul.f32 %v114, %v171
    %v208 = vmul.f32 %v115, %v172
    %v209 = vsub.f32 %v201, %v205
    %v210 = vsub.f32 %v202, %v206
    %v211 = vsub.f32 %v203, %v207
    %v212 = vsub.f32 %v204, %v208
    %v213 = vmul.f32 %v108, %v141
    %v214 = vmul.f32 %v109, %v142
    %v215 = vmul.f32 %v114, %v143
    %v216 = vmul.f32 %v115, %v144
    %v217 = vmul.f32 %v104, %v197
    %v218 = vmul.f32 %v105, %v198
    %v219 = vmul.f32 %v110, %v199
    %v220 = vmul.f32 %v111, %v200
    %v221 = vsub.f32 %v213, %v217
    %v222 = vsub.f32 %v214, %v218
    %v223 = vsub.f32 %v215, %v219
    %v224 = vsub.f32 %v216, %v220
    %v225 = vmul.f32 %v104, %v169
    %v226 = vmul.f32 %v105, %v170
    %v227 = vmul.f32 %v110, %v171
    %v228 = vmul.f32 %v111, %v172
    %v229 = vmul.f32 %v106, %v141
    %v230 = vmul.f32 %v107, %v142
    %v231 = vmul.f32 %v112, %v143
    %v232 = vmul.f32 %v113, %v144
    %v233 = vsub.f32 %v225, %v229
    %v234 = vsub.f32 %v226, %v230
    %v235 = vsub.f32 %v227, %v231
    %v236 = vsub.f32 %v228, %v232
    %v241 = vrot.slane %v209, 7
    %v242 = vrot.slane %v210, 7
    %v243 = vrot.slane %v211, 7
    %v244 = vrot.slane %v212, 7
    %vm253 = vcmask 1040384
    %v254 = vrot.slane %v104, 7
    %v255 = vrot.slane %v105, 7
    %v256 = vsel %vm253, %v254, %v241
    %v257 = vsel %vm253, %v255, %v242
    %v258 = vrot.slane %v110, 7
    %v259 = vrot.slane %v111, 7
    %v260 = vsel %vm253, %v258, %v243
    %v261 = vsel %vm253, %v259, %v244
    %v270 = vsel %vm253, %v241, %v254
    %v271 = vsel %vm253, %v242, %v255
    %v272 = vsel %vm253, %v243, %v258
    %v273 = vsel %vm253, %v244, %v259
    %v278 = vrot.slane %v221, 7
    %v279 = vrot.slane %v222, 7
    %v280 = vrot.slane %v223, 7
    %v281 = vrot.slane %v224, 7
    %v290 = vrot.slane %v106, 7
    %v291 = vrot.slane %v107, 7
    %v292 = vsel %vm253, %v290, %v278
    %v293 = vsel %vm253, %v291, %v279
    %v294 = vrot.slane %v112, 7
    %v295 = vrot.slane %v113, 7
    %v296 = vsel %vm253, %v294, %v280
    %v297 = vsel %vm253, %v295, %v281
    %v306 = vsel %vm253, %v278, %v290
    %v307 = vsel %vm253, %v279, %v291
    %v308 = vsel %vm253, %v280, %v294
    %v309 = vsel %vm253, %v281, %v295
    %v314 = vrot.slane %v233, 7
    %v315 = vrot.slane %v234, 7
    %v316 = vrot.slane %v235, 7
    %v317 = vrot.slane %v236, 7
    %v326 = vrot.slane %v108, 7
    %v327 = vrot.slane %v109, 7
    %v328 = vsel %vm253, %v326, %v314
    %v329 = vsel %vm253, %v327, %v315
    %v330 = vrot.slane %v114, 7
    %v331 = vrot.slane %v115, 7
    %v332 = vsel %vm253, %v330, %v316
    %v333 = vsel %vm253, %v331, %v317
    %v342 = vsel %vm253, %v314, %v326
    %v343 = vsel %vm253, %v315, %v327
    %v344 = vsel %vm253, %v316, %v330
    %v345 = vsel %vm253, %v317, %v331
    %v346 = vmul.f32 %v270, %v270
    %v347 = vmul.f32 %v271, %v271
    %v348 = vmul.f32 %v256, %v256
    %v349 = vmul.f32 %v257, %v257
    %v350 = vmul.f32 %v272, %v272
    %v351 = vmul.f32 %v273, %v273
    %v352 = vmul.f32 %v260, %v260
    %v353 = vmul.f32 %v261, %v261
    %v354 = vmul.f32 %v306, %v306
    %v355 = vmul.f32 %v307, %v307
    %v356 = vmul.f32 %v292, %v292
    %v357 = vmul.f32 %v293, %v293
    %v358 = vmul.f32 %v308, %v308
    %v359 = vmul.f32 %v309, %v309
    %v360 = vmul.f32 %v296, %v296
    %v361 = vmul.f32 %v297, %v297
    %v362 = vadd.f32 %v346, %v354
    %v363 = vadd.f32 %v347, %v355
    %v364 = vadd.f32 %v348, %v356
    %v365 = vadd.f32 %v349, %v357
    %v366 = vadd.f32 %v350, %v358
    %v367 = vadd.f32 %v351, %v359
    %v368 = vadd.f32 %v352, %v360
    %v369 = vadd.f32 %v353, %v361
    %v370 = vmul.f32 %v342, %v342
    %v371 = vmul.f32 %v343, %v343
    %v372 = vmul.f32 %v328, %v328
    %v373 = vmul.f32 %v329, %v329
    %v374 = vmul.f32 %v344, %v344
    %v375 = vmul.f32 %v345, %v345
    %v376 = vmul.f32 %v332, %v332
    %v377 = vmul.f32 %v333, %v333
    %v378 = vadd.f32 %v362, %v370
    %v379 = vadd.f32 %v363, %v371
    %v380 = vadd.f32 %v364, %v372
    %v381 = vadd.f32 %v365, %v373
    %v382 = vadd.f32 %v366, %v374
    %v383 = vadd.f32 %v367, %v375
    %v384 = vadd.f32 %v368, %v376
    %v385 = vadd.f32 %v369, %v377
    %v386 = vadd.f32 %v378, 1e-06
    %v387 = vadd.f32 %v379, 1e-06
    %v388 = vadd.f32 %v380, 1e-06
    %v389 = vadd.f32 %v381, 1e-06
    %v390 = vadd.f32 %v382, 1e-06
    %v391 = vadd.f32 %v383, 1e-06
    %v392 = vadd.f32 %v384, 1e-06
    %v393 = vadd.f32 %v385, 1e-06
    %v394 = vrsqrt.pop %v386
    %v395 = vrsqrt.pop %v387
    %v396 = vrsqrt.pop %v388
    %v397 = vrsqrt.pop %v389
    %v398 = vrsqrt.pop %v390
    %v399 = vrsqrt.pop %v391
    %v400 = vrsqrt.pop %v392
    %v401 = vrsqrt.pop %v393
    %v402 = vmul.f32 %v306, %v108
    %v403 = vmul.f32 %v307, %v109
    %v404 = vmul.f32 %v292, %v233
    %v405 = vmul.f32 %v293, %v234
    %v406 = vmul.f32 %v308, %v114
    %v407 = vmul.f32 %v309, %v115
    %v408 = vmul.f32 %v296, %v235
    %v409 = vmul.f32 %v297, %v236
    %v410 = vmul.f32 %v342, %v106
    %v411 = vmul.f32 %v343, %v107
    %v412 = vmul.f32 %v328, %v221
    %v413 = vmul.f32 %v329, %v222
    %v414 = vmul.f32 %v344, %v112
    %v415 = vmul.f32 %v345, %v113
    %v416 = vmul.f32 %v332, %v223
    %v417 = vmul.f32 %v333, %v224
    %v418 = vsub.f32 %v402, %v410
    %v419 = vsub.f32 %v403, %v411
    %v420 = vsub.f32 %v404, %v412
    %v421 = vsub.f32 %v405, %v413
    %v422 = vsub.f32 %v406, %v414
    %v423 = vsub.f32 %v407, %v415
    %v424 = vsub.f32 %v408, %v416
    %v425 = vsub.f32 %v409, %v417
    %v426 = vmul.f32 %v418, %v394
    %v427 = vmul.f32 %v419, %v395
    %v428 = vmul.f32 %v420, %v396
    %v429 = vmul.f32 %v421, %v397
    %v430 = vmul.f32 %v422, %v398
    %v431 = vmul.f32 %v423, %v399
    %v432 = vmul.f32 %v424, %v400
    %v433 = vmul.f32 %v425, %v401
    %v434 = vmul.f32 %v342, %v104
    %v435 = vmul.f32 %v343, %v105
    %v436 = vmul.f32 %v328, %v209
    %v437 = vmul.f32 %v329, %v210
    %v438 = vmul.f32 %v344, %v110
    %v439 = vmul.f32 %v345, %v111
    %v440 = vmul.f32 %v332, %v211
    %v441 = vmul.f32 %v333, %v212
    %v442 = vmul.f32 %v270, %v108
    %v443 = vmul.f32 %v271, %v109
    %v444 = vmul.f32 %v256, %v233
    %v445 = vmul.f32 %v257, %v234
    %v446 = vmul.f32 %v272, %v114
    %v447 = vmul.f32 %v273, %v115
    %v448 = vmul.f32 %v260, %v235
    %v449 = vmul.f32 %v261, %v236
    %v450 = vsub.f32 %v434, %v442
    %v451 = vsub.f32 %v435, %v443
    %v452 = vsub.f32 %v436, %v444
    %v453 = vsub.f32 %v437, %v445
    %v454 = vsub.f32 %v438, %v446
    %v455 = vsub.f32 %v439, %v447
    %v456 = vsub.f32 %v440, %v448
    %v457 = vsub.f32 %v441, %v449
    %v458 = vmul.f32 %v450, %v394
    %v459 = vmul.f32 %v451, %v395
    %v460 = vmul.f32 %v452, %v396
    %v461 = vmul.f32 %v453, %v397
    %v462 = vmul.f32 %v454, %v398
    %v463 = vmul.f32 %v455, %v399
    %v464 = vmul.f32 %v456, %v400
    %v465 = vmul.f32 %v457, %v401
    %v466 = vmul.f32 %v270, %v106
    %v467 = vmul.f32 %v271, %v107
    %v468 = vmul.f32 %v256, %v221
    %v469 = vmul.f32 %v257, %v222
    %v470 = vmul.f32 %v272, %v112
    %v471 = vmul.f32 %v273, %v113
    %v472 = vmul.f32 %v260, %v223
    %v473 = vmul.f32 %v261, %v224
    %v474 = vmul.f32 %v306, %v104
    %v475 = vmul.f32 %v307, %v105
    %v476 = vmul.f32 %v292, %v209
    %v477 = vmul.f32 %v293, %v210
    %v478 = vmul.f32 %v308, %v110
    %v479 = vmul.f32 %v309, %v111
    %v480 = vmul.f32 %v296, %v211
    %v481 = vmul.f32 %v297, %v212
    %v482 = vsub.f32 %v466, %v474
    %v483 = vsub.f32 %v467, %v475
    %v484 = vsub.f32 %v468, %v476
    %v485 = vsub.f32 %v469, %v477
    %v486 = vsub.f32 %v470, %v478
    %v487 = vsub.f32 %v471, %v479
    %v488 = vsub.f32 %v472, %v480
    %v489 = vsub.f32 %v473, %v481
    %v490 = vmul.f32 %v482, %v394
    %v491 = vmul.f32 %v483, %v395
    %v492 = vmul.f32 %v484, %v396
    %v493 = vmul.f32 %v485, %v397
    %v494 = vmul.f32 %v486, %v398
    %v495 = vmul.f32 %v487, %v399
    %v496 = vmul.f32 %v488, %v400
    %v497 = vmul.f32 %v489, %v401
    %vm498 = vcmask 130048
    %v500 = vsel %vm498, %v99, 0
    %502 = vmatprep.subr.mxu0 %v105
    %503 = vmatpush1.msra.mxu0 %v104
    %504 = vmatprep.subr.mxu0 %v210
    %505 = vmatpush1.msra.mxu0 %v209
    %506 = vmatprep.subr.mxu0 0.0
    %507 = vmatpush1.msra.mxu0 0.0
    %508 = vmatprep.subr.mxu0 0.0
    %509 = vmatpush1.msra.mxu0 0.0
    %510 = vmatprep.subr.mxu0 0.0
    %511 = vmatpush1.msra.mxu0 0.0
    %512 = vmatprep.subr.mxu0 0.0
    %513 = vmatpush1.msra.mxu0 0.0
    %514 = vmatprep.subr.mxu0 0.0
    %515 = vmatpush1.msra.mxu0 0.0
    %516 = vmatprep.subr.mxu0 0.0
    %517 = vmatpush1.msra.mxu0 0.0
    %518 = vmatprep.subr.mxu0 0.0
    %519 = vmatpush1.msra.mxu0 0.0
    %520 = vmatprep.subr.mxu0 0.0
    %521 = vmatpush1.msra.mxu0 0.0
    %522 = vmatprep.subr.mxu0 0.0
    %523 = vmatpush1.msra.mxu0 0.0
    %524 = vmatprep.subr.mxu0 0.0
    %525 = vmatpush1.msra.mxu0 0.0
    %526 = vmatprep.subr.mxu0 0.0
    %527 = vmatpush1.msra.mxu0 0.0
    %528 = vmatprep.subr.mxu0 0.0
    %529 = vmatpush1.msra.mxu0 0.0
    %530 = vmatprep.subr.mxu0 0.0
    %531 = vmatpush1.msra.mxu0 0.0
    %532 = vmatprep.subr.mxu0 0.0
    %533 = vmatpush1.msra.mxu0 0.0
    %534 = vmatprep.subr.mxu0 0.0
    %535 = vmatpush1.msra.mxu0 0.0
    %536 = vmatprep.subr.mxu0 0.0
    %537 = vmatpush1.msra.mxu0 0.0
    %538 = vmatprep.subr.mxu0 0.0
    %539 = vmatpush1.msra.mxu0 0.0
    %540 = vmatprep.subr.mxu0 0.0
    %541 = vmatpush1.msra.mxu0 0.0
    %542 = vmatprep.subr.mxu0 0.0
    %543 = vmatpush1.msra.mxu0 0.0
    %544 = vmatprep.subr.mxu0 0.0
    %545 = vmatpush1.msra.mxu0 0.0
    %546 = vmatprep.subr.mxu0 0.0
    %547 = vmatpush1.msra.mxu0 0.0
    %548 = vmatprep.subr.mxu0 0.0
    %549 = vmatpush1.msra.mxu0 0.0
    %550 = vmatprep.subr.mxu0 0.0
    %551 = vmatpush1.msra.mxu0 0.0
    %552 = vmatprep.subr.mxu0 0.0
    %553 = vmatpush1.msra.mxu0 0.0
    %554 = vmatprep.subr.mxu0 0.0
    %555 = vmatpush1.msra.mxu0 0.0
    %556 = vmatprep.subr.mxu0 0.0
    %557 = vmatpush1.msra.mxu0 0.0
    %558 = vmatprep.subr.mxu0 0.0
    %559 = vmatpush1.msra.mxu0 0.0
    %560 = vmatprep.subr.mxu0 0.0
    %561 = vmatpush1.msra.mxu0 0.0
    %562 = vmatprep.subr.mxu0 0.0
    %563 = vmatpush1.msra.mxu0 0.0
    %564 = vmatprep.subr.mxu0 0.0
    %565 = vmatpush1.msra.mxu0 0.0
    %566 = vmatprep.mubr.f32.mxu0 0.0
    %567 = vmatmul.mubr.f32.gmra.mrb[0].mxu0 %v500
    %v568 = vpop.f32.mrb[0].mxu0
    %v569 = vadd.f32 0.0, %v568
    %v570 = vpop.f32.mrb[0].mxu0
    %v571 = vadd.f32 0.0, %v570
    %572 = vdwg.mxu0
    %573 = vmatprep.subr.mxu0 %v111
    %574 = vmatpush1.msra.mxu0 %v110
    %575 = vmatprep.subr.mxu0 %v212
    %576 = vmatpush1.msra.mxu0 %v211
    %577 = vmatprep.subr.mxu0 0.0
    %578 = vmatpush1.msra.mxu0 0.0
    %579 = vmatprep.subr.mxu0 0.0
    %580 = vmatpush1.msra.mxu0 0.0
    %581 = vmatprep.subr.mxu0 0.0
    %582 = vmatpush1.msra.mxu0 0.0
    %583 = vmatprep.subr.mxu0 0.0
    %584 = vmatpush1.msra.mxu0 0.0
    %585 = vmatprep.subr.mxu0 0.0
    %586 = vmatpush1.msra.mxu0 0.0
    %587 = vmatprep.subr.mxu0 0.0
    %588 = vmatpush1.msra.mxu0 0.0
    %589 = vmatprep.subr.mxu0 0.0
    %590 = vmatpush1.msra.mxu0 0.0
    %591 = vmatprep.subr.mxu0 0.0
    %592 = vmatpush1.msra.mxu0 0.0
    %593 = vmatprep.subr.mxu0 0.0
    %594 = vmatpush1.msra.mxu0 0.0
    %595 = vmatprep.subr.mxu0 0.0
    %596 = vmatpush1.msra.mxu0 0.0
    %597 = vmatprep.subr.mxu0 0.0
    %598 = vmatpush1.msra.mxu0 0.0
    %599 = vmatprep.subr.mxu0 0.0
    %600 = vmatpush1.msra.mxu0 0.0
    %601 = vmatprep.subr.mxu0 0.0
    %602 = vmatpush1.msra.mxu0 0.0
    %603 = vmatprep.subr.mxu0 0.0
    %604 = vmatpush1.msra.mxu0 0.0
    %605 = vmatprep.subr.mxu0 0.0
    %606 = vmatpush1.msra.mxu0 0.0
    %607 = vmatprep.subr.mxu0 0.0
    %608 = vmatpush1.msra.mxu0 0.0
    %609 = vmatprep.subr.mxu0 0.0
    %610 = vmatpush1.msra.mxu0 0.0
    %611 = vmatprep.subr.mxu0 0.0
    %612 = vmatpush1.msra.mxu0 0.0
    %613 = vmatprep.subr.mxu0 0.0
    %614 = vmatpush1.msra.mxu0 0.0
    %615 = vmatprep.subr.mxu0 0.0
    %616 = vmatpush1.msra.mxu0 0.0
    %617 = vmatprep.subr.mxu0 0.0
    %618 = vmatpush1.msra.mxu0 0.0
    %619 = vmatprep.subr.mxu0 0.0
    %620 = vmatpush1.msra.mxu0 0.0
    %621 = vmatprep.subr.mxu0 0.0
    %622 = vmatpush1.msra.mxu0 0.0
    %623 = vmatprep.subr.mxu0 0.0
    %624 = vmatpush1.msra.mxu0 0.0
    %625 = vmatprep.subr.mxu0 0.0
    %626 = vmatpush1.msra.mxu0 0.0
    %627 = vmatprep.subr.mxu0 0.0
    %628 = vmatpush1.msra.mxu0 0.0
    %629 = vmatprep.subr.mxu0 0.0
    %630 = vmatpush1.msra.mxu0 0.0
    %631 = vmatprep.subr.mxu0 0.0
    %632 = vmatpush1.msra.mxu0 0.0
    %633 = vmatprep.subr.mxu0 0.0
    %634 = vmatpush1.msra.mxu0 0.0
    %635 = vmatprep.subr.mxu0 0.0
    %636 = vmatpush1.msra.mxu0 0.0
    %637 = vmatprep.mubr.f32.mxu0 0.0
    %638 = vmatmul.mubr.f32.gmra.mrb[0].mxu0 %v500
    %v639 = vpop.f32.mrb[0].mxu0
    %v640 = vadd.f32 0.0, %v639
    %v641 = vpop.f32.mrb[0].mxu0
    %v642 = vadd.f32 0.0, %v641
    %643 = vdwg.mxu0
    %644 = vmatprep.subr.mxu0 %v107
    %645 = vmatpush1.msra.mxu0 %v106
    %646 = vmatprep.subr.mxu0 %v222
    %647 = vmatpush1.msra.mxu0 %v221
    %648 = vmatprep.subr.mxu0 0.0
    %649 = vmatpush1.msra.mxu0 0.0
    %650 = vmatprep.subr.mxu0 0.0
    %651 = vmatpush1.msra.mxu0 0.0
    %652 = vmatprep.subr.mxu0 0.0
    %653 = vmatpush1.msra.mxu0 0.0
    %654 = vmatprep.subr.mxu0 0.0
    %655 = vmatpush1.msra.mxu0 0.0
    %656 = vmatprep.subr.mxu0 0.0
    %657 = vmatpush1.msra.mxu0 0.0
    %658 = vmatprep.subr.mxu0 0.0
    %659 = vmatpush1.msra.mxu0 0.0
    %660 = vmatprep.subr.mxu0 0.0
    %661 = vmatpush1.msra.mxu0 0.0
    %662 = vmatprep.subr.mxu0 0.0
    %663 = vmatpush1.msra.mxu0 0.0
    %664 = vmatprep.subr.mxu0 0.0
    %665 = vmatpush1.msra.mxu0 0.0
    %666 = vmatprep.subr.mxu0 0.0
    %667 = vmatpush1.msra.mxu0 0.0
    %668 = vmatprep.subr.mxu0 0.0
    %669 = vmatpush1.msra.mxu0 0.0
    %670 = vmatprep.subr.mxu0 0.0
    %671 = vmatpush1.msra.mxu0 0.0
    %672 = vmatprep.subr.mxu0 0.0
    %673 = vmatpush1.msra.mxu0 0.0
    %674 = vmatprep.subr.mxu0 0.0
    %675 = vmatpush1.msra.mxu0 0.0
    %676 = vmatprep.subr.mxu0 0.0
    %677 = vmatpush1.msra.mxu0 0.0
    %678 = vmatprep.subr.mxu0 0.0
    %679 = vmatpush1.msra.mxu0 0.0
    %680 = vmatprep.subr.mxu0 0.0
    %681 = vmatpush1.msra.mxu0 0.0
    %682 = vmatprep.subr.mxu0 0.0
    %683 = vmatpush1.msra.mxu0 0.0
    %684 = vmatprep.subr.mxu0 0.0
    %685 = vmatpush1.msra.mxu0 0.0
    %686 = vmatprep.subr.mxu0 0.0
    %687 = vmatpush1.msra.mxu0 0.0
    %688 = vmatprep.subr.mxu0 0.0
    %689 = vmatpush1.msra.mxu0 0.0
    %690 = vmatprep.subr.mxu0 0.0
    %691 = vmatpush1.msra.mxu0 0.0
    %692 = vmatprep.subr.mxu0 0.0
    %693 = vmatpush1.msra.mxu0 0.0
    %694 = vmatprep.subr.mxu0 0.0
    %695 = vmatpush1.msra.mxu0 0.0
    %696 = vmatprep.subr.mxu0 0.0
    %697 = vmatpush1.msra.mxu0 0.0
    %698 = vmatprep.subr.mxu0 0.0
    %699 = vmatpush1.msra.mxu0 0.0
    %700 = vmatprep.subr.mxu0 0.0
    %701 = vmatpush1.msra.mxu0 0.0
    %702 = vmatprep.subr.mxu0 0.0
    %703 = vmatpush1.msra.mxu0 0.0
    %704 = vmatprep.subr.mxu0 0.0
    %705 = vmatpush1.msra.mxu0 0.0
    %706 = vmatprep.subr.mxu0 0.0
    %707 = vmatpush1.msra.mxu0 0.0
    %708 = vmatprep.mubr.f32.mxu0 0.0
    %709 = vmatmul.mubr.f32.gmra.mrb[0].mxu0 %v500
    %v710 = vpop.f32.mrb[0].mxu0
    %v711 = vadd.f32 0.0, %v710
    %v712 = vpop.f32.mrb[0].mxu0
    %v713 = vadd.f32 0.0, %v712
    %714 = vdwg.mxu0
    %715 = vmatprep.subr.mxu0 %v113
    %716 = vmatpush1.msra.mxu0 %v112
    %717 = vmatprep.subr.mxu0 %v224
    %718 = vmatpush1.msra.mxu0 %v223
    %719 = vmatprep.subr.mxu0 0.0
    %720 = vmatpush1.msra.mxu0 0.0
    %721 = vmatprep.subr.mxu0 0.0
    %722 = vmatpush1.msra.mxu0 0.0
    %723 = vmatprep.subr.mxu0 0.0
    %724 = vmatpush1.msra.mxu0 0.0
    %725 = vmatprep.subr.mxu0 0.0
    %726 = vmatpush1.msra.mxu0 0.0
    %727 = vmatprep.subr.mxu0 0.0
    %728 = vmatpush1.msra.mxu0 0.0
    %729 = vmatprep.subr.mxu0 0.0
    %730 = vmatpush1.msra.mxu0 0.0
    %731 = vmatprep.subr.mxu0 0.0
    %732 = vmatpush1.msra.mxu0 0.0
    %733 = vmatprep.subr.mxu0 0.0
    %734 = vmatpush1.msra.mxu0 0.0
    %735 = vmatprep.subr.mxu0 0.0
    %736 = vmatpush1.msra.mxu0 0.0
    %737 = vmatprep.subr.mxu0 0.0
    %738 = vmatpush1.msra.mxu0 0.0
    %739 = vmatprep.subr.mxu0 0.0
    %740 = vmatpush1.msra.mxu0 0.0
    %741 = vmatprep.subr.mxu0 0.0
    %742 = vmatpush1.msra.mxu0 0.0
    %743 = vmatprep.subr.mxu0 0.0
    %744 = vmatpush1.msra.mxu0 0.0
    %745 = vmatprep.subr.mxu0 0.0
    %746 = vmatpush1.msra.mxu0 0.0
    %747 = vmatprep.subr.mxu0 0.0
    %748 = vmatpush1.msra.mxu0 0.0
    %749 = vmatprep.subr.mxu0 0.0
    %750 = vmatpush1.msra.mxu0 0.0
    %751 = vmatprep.subr.mxu0 0.0
    %752 = vmatpush1.msra.mxu0 0.0
    %753 = vmatprep.subr.mxu0 0.0
    %754 = vmatpush1.msra.mxu0 0.0
    %755 = vmatprep.subr.mxu0 0.0
    %756 = vmatpush1.msra.mxu0 0.0
    %757 = vmatprep.subr.mxu0 0.0
    %758 = vmatpush1.msra.mxu0 0.0
    %759 = vmatprep.subr.mxu0 0.0
    %760 = vmatpush1.msra.mxu0 0.0
    %761 = vmatprep.subr.mxu0 0.0
    %762 = vmatpush1.msra.mxu0 0.0
    %763 = vmatprep.subr.mxu0 0.0
    %764 = vmatpush1.msra.mxu0 0.0
    %765 = vmatprep.subr.mxu0 0.0
    %766 = vmatpush1.msra.mxu0 0.0
    %767 = vmatprep.subr.mxu0 0.0
    %768 = vmatpush1.msra.mxu0 0.0
    %769 = vmatprep.subr.mxu0 0.0
    %770 = vmatpush1.msra.mxu0 0.0
    %771 = vmatprep.subr.mxu0 0.0
    %772 = vmatpush1.msra.mxu0 0.0
    %773 = vmatprep.subr.mxu0 0.0
    %774 = vmatpush1.msra.mxu0 0.0
    %775 = vmatprep.subr.mxu0 0.0
    %776 = vmatpush1.msra.mxu0 0.0
    %777 = vmatprep.subr.mxu0 0.0
    %778 = vmatpush1.msra.mxu0 0.0
    %779 = vmatprep.mubr.f32.mxu0 0.0
    %780 = vmatmul.mubr.f32.gmra.mrb[0].mxu0 %v500
    %v781 = vpop.f32.mrb[0].mxu0
    %v782 = vadd.f32 0.0, %v781
    %v783 = vpop.f32.mrb[0].mxu0
    %v784 = vadd.f32 0.0, %v783
    %785 = vdwg.mxu0
    %786 = vmatprep.subr.mxu0 %v109
    %787 = vmatpush1.msra.mxu0 %v108
    %788 = vmatprep.subr.mxu0 %v234
    %789 = vmatpush1.msra.mxu0 %v233
    %790 = vmatprep.subr.mxu0 0.0
    %791 = vmatpush1.msra.mxu0 0.0
    %792 = vmatprep.subr.mxu0 0.0
    %793 = vmatpush1.msra.mxu0 0.0
    %794 = vmatprep.subr.mxu0 0.0
    %795 = vmatpush1.msra.mxu0 0.0
    %796 = vmatprep.subr.mxu0 0.0
    %797 = vmatpush1.msra.mxu0 0.0
    %798 = vmatprep.subr.mxu0 0.0
    %799 = vmatpush1.msra.mxu0 0.0
    %800 = vmatprep.subr.mxu0 0.0
    %801 = vmatpush1.msra.mxu0 0.0
    %802 = vmatprep.subr.mxu0 0.0
    %803 = vmatpush1.msra.mxu0 0.0
    %804 = vmatprep.subr.mxu0 0.0
    %805 = vmatpush1.msra.mxu0 0.0
    %806 = vmatprep.subr.mxu0 0.0
    %807 = vmatpush1.msra.mxu0 0.0
    %808 = vmatprep.subr.mxu0 0.0
    %809 = vmatpush1.msra.mxu0 0.0
    %810 = vmatprep.subr.mxu0 0.0
    %811 = vmatpush1.msra.mxu0 0.0
    %812 = vmatprep.subr.mxu0 0.0
    %813 = vmatpush1.msra.mxu0 0.0
    %814 = vmatprep.subr.mxu0 0.0
    %815 = vmatpush1.msra.mxu0 0.0
    %816 = vmatprep.subr.mxu0 0.0
    %817 = vmatpush1.msra.mxu0 0.0
    %818 = vmatprep.subr.mxu0 0.0
    %819 = vmatpush1.msra.mxu0 0.0
    %820 = vmatprep.subr.mxu0 0.0
    %821 = vmatpush1.msra.mxu0 0.0
    %822 = vmatprep.subr.mxu0 0.0
    %823 = vmatpush1.msra.mxu0 0.0
    %824 = vmatprep.subr.mxu0 0.0
    %825 = vmatpush1.msra.mxu0 0.0
    %826 = vmatprep.subr.mxu0 0.0
    %827 = vmatpush1.msra.mxu0 0.0
    %828 = vmatprep.subr.mxu0 0.0
    %829 = vmatpush1.msra.mxu0 0.0
    %830 = vmatprep.subr.mxu0 0.0
    %831 = vmatpush1.msra.mxu0 0.0
    %832 = vmatprep.subr.mxu0 0.0
    %833 = vmatpush1.msra.mxu0 0.0
    %834 = vmatprep.subr.mxu0 0.0
    %835 = vmatpush1.msra.mxu0 0.0
    %836 = vmatprep.subr.mxu0 0.0
    %837 = vmatpush1.msra.mxu0 0.0
    %838 = vmatprep.subr.mxu0 0.0
    %839 = vmatpush1.msra.mxu0 0.0
    %840 = vmatprep.subr.mxu0 0.0
    %841 = vmatpush1.msra.mxu0 0.0
    %842 = vmatprep.subr.mxu0 0.0
    %843 = vmatpush1.msra.mxu0 0.0
    %844 = vmatprep.subr.mxu0 0.0
    %845 = vmatpush1.msra.mxu0 0.0
    %846 = vmatprep.subr.mxu0 0.0
    %847 = vmatpush1.msra.mxu0 0.0
    %848 = vmatprep.subr.mxu0 0.0
    %849 = vmatpush1.msra.mxu0 0.0
    %850 = vmatprep.mubr.f32.mxu0 0.0
    %851 = vmatmul.mubr.f32.gmra.mrb[0].mxu0 %v500
    %v852 = vpop.f32.mrb[0].mxu0
    %v853 = vadd.f32 0.0, %v852
    %v854 = vpop.f32.mrb[0].mxu0
    %v855 = vadd.f32 0.0, %v854
    %856 = vdwg.mxu0
    %857 = vmatprep.subr.mxu0 %v115
    %858 = vmatpush1.msra.mxu0 %v114
    %859 = vmatprep.subr.mxu0 %v236
    %860 = vmatpush1.msra.mxu0 %v235
    %861 = vmatprep.subr.mxu0 0.0
    %862 = vmatpush1.msra.mxu0 0.0
    %863 = vmatprep.subr.mxu0 0.0
    %864 = vmatpush1.msra.mxu0 0.0
    %865 = vmatprep.subr.mxu0 0.0
    %866 = vmatpush1.msra.mxu0 0.0
    %867 = vmatprep.subr.mxu0 0.0
    %868 = vmatpush1.msra.mxu0 0.0
    %869 = vmatprep.subr.mxu0 0.0
    %870 = vmatpush1.msra.mxu0 0.0
    %871 = vmatprep.subr.mxu0 0.0
    %872 = vmatpush1.msra.mxu0 0.0
    %873 = vmatprep.subr.mxu0 0.0
    %874 = vmatpush1.msra.mxu0 0.0
    %875 = vmatprep.subr.mxu0 0.0
    %876 = vmatpush1.msra.mxu0 0.0
    %877 = vmatprep.subr.mxu0 0.0
    %878 = vmatpush1.msra.mxu0 0.0
    %879 = vmatprep.subr.mxu0 0.0
    %880 = vmatpush1.msra.mxu0 0.0
    %881 = vmatprep.subr.mxu0 0.0
    %882 = vmatpush1.msra.mxu0 0.0
    %883 = vmatprep.subr.mxu0 0.0
    %884 = vmatpush1.msra.mxu0 0.0
    %885 = vmatprep.subr.mxu0 0.0
    %886 = vmatpush1.msra.mxu0 0.0
    %887 = vmatprep.subr.mxu0 0.0
    %888 = vmatpush1.msra.mxu0 0.0
    %889 = vmatprep.subr.mxu0 0.0
    %890 = vmatpush1.msra.mxu0 0.0
    %891 = vmatprep.subr.mxu0 0.0
    %892 = vmatpush1.msra.mxu0 0.0
    %893 = vmatprep.subr.mxu0 0.0
    %894 = vmatpush1.msra.mxu0 0.0
    %895 = vmatprep.subr.mxu0 0.0
    %896 = vmatpush1.msra.mxu0 0.0
    %897 = vmatprep.subr.mxu0 0.0
    %898 = vmatpush1.msra.mxu0 0.0
    %899 = vmatprep.subr.mxu0 0.0
    %900 = vmatpush1.msra.mxu0 0.0
    %901 = vmatprep.subr.mxu0 0.0
    %902 = vmatpush1.msra.mxu0 0.0
    %903 = vmatprep.subr.mxu0 0.0
    %904 = vmatpush1.msra.mxu0 0.0
    %905 = vmatprep.subr.mxu0 0.0
    %906 = vmatpush1.msra.mxu0 0.0
    %907 = vmatprep.subr.mxu0 0.0
    %908 = vmatpush1.msra.mxu0 0.0
    %909 = vmatprep.subr.mxu0 0.0
    %910 = vmatpush1.msra.mxu0 0.0
    %911 = vmatprep.subr.mxu0 0.0
    %912 = vmatpush1.msra.mxu0 0.0
    %913 = vmatprep.subr.mxu0 0.0
    %914 = vmatpush1.msra.mxu0 0.0
    %915 = vmatprep.subr.mxu0 0.0
    %916 = vmatpush1.msra.mxu0 0.0
    %917 = vmatprep.subr.mxu0 0.0
    %918 = vmatpush1.msra.mxu0 0.0
    %919 = vmatprep.subr.mxu0 0.0
    %920 = vmatpush1.msra.mxu0 0.0
    %921 = vmatprep.mubr.f32.mxu0 0.0
    %922 = vmatmul.mubr.f32.gmra.mrb[0].mxu0 %v500
    %v923 = vpop.f32.mrb[0].mxu0
    %v924 = vadd.f32 0.0, %v923
    %v925 = vpop.f32.mrb[0].mxu0
    %v926 = vadd.f32 0.0, %v925
    %927 = vdwg.mxu0
    %v929 = vsel %vm498, %v100, 0
    %931 = vmatprep.subr.mxu0 %v427
    %932 = vmatpush1.msra.mxu0 %v426
    %933 = vmatprep.subr.mxu0 %v429
    %934 = vmatpush1.msra.mxu0 %v428
    %935 = vmatprep.subr.mxu0 0.0
    %936 = vmatpush1.msra.mxu0 0.0
    %937 = vmatprep.subr.mxu0 0.0
    %938 = vmatpush1.msra.mxu0 0.0
    %939 = vmatprep.subr.mxu0 0.0
    %940 = vmatpush1.msra.mxu0 0.0
    %941 = vmatprep.subr.mxu0 0.0
    %942 = vmatpush1.msra.mxu0 0.0
    %943 = vmatprep.subr.mxu0 0.0
    %944 = vmatpush1.msra.mxu0 0.0
    %945 = vmatprep.subr.mxu0 0.0
    %946 = vmatpush1.msra.mxu0 0.0
    %947 = vmatprep.subr.mxu0 0.0
    %948 = vmatpush1.msra.mxu0 0.0
    %949 = vmatprep.subr.mxu0 0.0
    %950 = vmatpush1.msra.mxu0 0.0
    %951 = vmatprep.subr.mxu0 0.0
    %952 = vmatpush1.msra.mxu0 0.0
    %953 = vmatprep.subr.mxu0 0.0
    %954 = vmatpush1.msra.mxu0 0.0
    %955 = vmatprep.subr.mxu0 0.0
    %956 = vmatpush1.msra.mxu0 0.0
    %957 = vmatprep.subr.mxu0 0.0
    %958 = vmatpush1.msra.mxu0 0.0
    %959 = vmatprep.subr.mxu0 0.0
    %960 = vmatpush1.msra.mxu0 0.0
    %961 = vmatprep.subr.mxu0 0.0
    %962 = vmatpush1.msra.mxu0 0.0
    %963 = vmatprep.subr.mxu0 0.0
    %964 = vmatpush1.msra.mxu0 0.0
    %965 = vmatprep.subr.mxu0 0.0
    %966 = vmatpush1.msra.mxu0 0.0
    %967 = vmatprep.subr.mxu0 0.0
    %968 = vmatpush1.msra.mxu0 0.0
    %969 = vmatprep.subr.mxu0 0.0
    %970 = vmatpush1.msra.mxu0 0.0
    %971 = vmatprep.subr.mxu0 0.0
    %972 = vmatpush1.msra.mxu0 0.0
    %973 = vmatprep.subr.mxu0 0.0
    %974 = vmatpush1.msra.mxu0 0.0
    %975 = vmatprep.subr.mxu0 0.0
    %976 = vmatpush1.msra.mxu0 0.0
    %977 = vmatprep.subr.mxu0 0.0
    %978 = vmatpush1.msra.mxu0 0.0
    %979 = vmatprep.subr.mxu0 0.0
    %980 = vmatpush1.msra.mxu0 0.0
    %981 = vmatprep.subr.mxu0 0.0
    %982 = vmatpush1.msra.mxu0 0.0
    %983 = vmatprep.subr.mxu0 0.0
    %984 = vmatpush1.msra.mxu0 0.0
    %985 = vmatprep.subr.mxu0 0.0
    %986 = vmatpush1.msra.mxu0 0.0
    %987 = vmatprep.subr.mxu0 0.0
    %988 = vmatpush1.msra.mxu0 0.0
    %989 = vmatprep.subr.mxu0 0.0
    %990 = vmatpush1.msra.mxu0 0.0
    %991 = vmatprep.subr.mxu0 0.0
    %992 = vmatpush1.msra.mxu0 0.0
    %993 = vmatprep.subr.mxu0 0.0
    %994 = vmatpush1.msra.mxu0 0.0
    %995 = vmatprep.mubr.f32.mxu0 0.0
    %996 = vmatmul.mubr.f32.gmra.mrb[0].mxu0 %v929
    %v997 = vpop.f32.mrb[0].mxu0
    %v998 = vadd.f32 0.0, %v997
    %v999 = vpop.f32.mrb[0].mxu0
    %v1000 = vadd.f32 0.0, %v999
    %1001 = vdwg.mxu0
    %1002 = vmatprep.subr.mxu0 %v431
    %1003 = vmatpush1.msra.mxu0 %v430
    %1004 = vmatprep.subr.mxu0 %v433
    %1005 = vmatpush1.msra.mxu0 %v432
    %1006 = vmatprep.subr.mxu0 0.0
    %1007 = vmatpush1.msra.mxu0 0.0
    %1008 = vmatprep.subr.mxu0 0.0
    %1009 = vmatpush1.msra.mxu0 0.0
    %1010 = vmatprep.subr.mxu0 0.0
    %1011 = vmatpush1.msra.mxu0 0.0
    %1012 = vmatprep.subr.mxu0 0.0
    %1013 = vmatpush1.msra.mxu0 0.0
    %1014 = vmatprep.subr.mxu0 0.0
    %1015 = vmatpush1.msra.mxu0 0.0
    %1016 = vmatprep.subr.mxu0 0.0
    %1017 = vmatpush1.msra.mxu0 0.0
    %1018 = vmatprep.subr.mxu0 0.0
    %1019 = vmatpush1.msra.mxu0 0.0
    %1020 = vmatprep.subr.mxu0 0.0
    %1021 = vmatpush1.msra.mxu0 0.0
    %1022 = vmatprep.subr.mxu0 0.0
    %1023 = vmatpush1.msra.mxu0 0.0
    %1024 = vmatprep.subr.mxu0 0.0
    %1025 = vmatpush1.msra.mxu0 0.0
    %1026 = vmatprep.subr.mxu0 0.0
    %1027 = vmatpush1.msra.mxu0 0.0
    %1028 = vmatprep.subr.mxu0 0.0
    %1029 = vmatpush1.msra.mxu0 0.0
    %1030 = vmatprep.subr.mxu0 0.0
    %1031 = vmatpush1.msra.mxu0 0.0
    %1032 = vmatprep.subr.mxu0 0.0
    %1033 = vmatpush1.msra.mxu0 0.0
    %1034 = vmatprep.subr.mxu0 0.0
    %1035 = vmatpush1.msra.mxu0 0.0
    %1036 = vmatprep.subr.mxu0 0.0
    %1037 = vmatpush1.msra.mxu0 0.0
    %1038 = vmatprep.subr.mxu0 0.0
    %1039 = vmatpush1.msra.mxu0 0.0
    %1040 = vmatprep.subr.mxu0 0.0
    %1041 = vmatpush1.msra.mxu0 0.0
    %1042 = vmatprep.subr.mxu0 0.0
    %1043 = vmatpush1.msra.mxu0 0.0
    %1044 = vmatprep.subr.mxu0 0.0
    %1045 = vmatpush1.msra.mxu0 0.0
    %1046 = vmatprep.subr.mxu0 0.0
    %1047 = vmatpush1.msra.mxu0 0.0
    %1048 = vmatprep.subr.mxu0 0.0
    %1049 = vmatpush1.msra.mxu0 0.0
    %1050 = vmatprep.subr.mxu0 0.0
    %1051 = vmatpush1.msra.mxu0 0.0
    %1052 = vmatprep.subr.mxu0 0.0
    %1053 = vmatpush1.msra.mxu0 0.0
    %1054 = vmatprep.subr.mxu0 0.0
    %1055 = vmatpush1.msra.mxu0 0.0
    %1056 = vmatprep.subr.mxu0 0.0
    %1057 = vmatpush1.msra.mxu0 0.0
    %1058 = vmatprep.subr.mxu0 0.0
    %1059 = vmatpush1.msra.mxu0 0.0
    %1060 = vmatprep.subr.mxu0 0.0
    %1061 = vmatpush1.msra.mxu0 0.0
    %1062 = vmatprep.subr.mxu0 0.0
    %1063 = vmatpush1.msra.mxu0 0.0
    %1064 = vmatprep.subr.mxu0 0.0
    %1065 = vmatpush1.msra.mxu0 0.0
    %1066 = vmatprep.mubr.f32.mxu0 0.0
    %1067 = vmatmul.mubr.f32.gmra.mrb[0].mxu0 %v929
    %v1068 = vpop.f32.mrb[0].mxu0
    %v1069 = vadd.f32 0.0, %v1068
    %v1070 = vpop.f32.mrb[0].mxu0
    %v1071 = vadd.f32 0.0, %v1070
    %1072 = vdwg.mxu0
    %v1073 = vadd.f32 %v569, %v998
    %v1074 = vadd.f32 %v571, %v1000
    %v1075 = vadd.f32 %v640, %v1069
    %v1076 = vadd.f32 %v642, %v1071
    %1077 = vmatprep.subr.mxu0 %v459
    %1078 = vmatpush1.msra.mxu0 %v458
    %1079 = vmatprep.subr.mxu0 %v461
    %1080 = vmatpush1.msra.mxu0 %v460
    %1081 = vmatprep.subr.mxu0 0.0
    %1082 = vmatpush1.msra.mxu0 0.0
    %1083 = vmatprep.subr.mxu0 0.0
    %1084 = vmatpush1.msra.mxu0 0.0
    %1085 = vmatprep.subr.mxu0 0.0
    %1086 = vmatpush1.msra.mxu0 0.0
    %1087 = vmatprep.subr.mxu0 0.0
    %1088 = vmatpush1.msra.mxu0 0.0
    %1089 = vmatprep.subr.mxu0 0.0
    %1090 = vmatpush1.msra.mxu0 0.0
    %1091 = vmatprep.subr.mxu0 0.0
    %1092 = vmatpush1.msra.mxu0 0.0
    %1093 = vmatprep.subr.mxu0 0.0
    %1094 = vmatpush1.msra.mxu0 0.0
    %1095 = vmatprep.subr.mxu0 0.0
    %1096 = vmatpush1.msra.mxu0 0.0
    %1097 = vmatprep.subr.mxu0 0.0
    %1098 = vmatpush1.msra.mxu0 0.0
    %1099 = vmatprep.subr.mxu0 0.0
    %1100 = vmatpush1.msra.mxu0 0.0
    %1101 = vmatprep.subr.mxu0 0.0
    %1102 = vmatpush1.msra.mxu0 0.0
    %1103 = vmatprep.subr.mxu0 0.0
    %1104 = vmatpush1.msra.mxu0 0.0
    %1105 = vmatprep.subr.mxu0 0.0
    %1106 = vmatpush1.msra.mxu0 0.0
    %1107 = vmatprep.subr.mxu0 0.0
    %1108 = vmatpush1.msra.mxu0 0.0
    %1109 = vmatprep.subr.mxu0 0.0
    %1110 = vmatpush1.msra.mxu0 0.0
    %1111 = vmatprep.subr.mxu0 0.0
    %1112 = vmatpush1.msra.mxu0 0.0
    %1113 = vmatprep.subr.mxu0 0.0
    %1114 = vmatpush1.msra.mxu0 0.0
    %1115 = vmatprep.subr.mxu0 0.0
    %1116 = vmatpush1.msra.mxu0 0.0
    %1117 = vmatprep.subr.mxu0 0.0
    %1118 = vmatpush1.msra.mxu0 0.0
    %1119 = vmatprep.subr.mxu0 0.0
    %1120 = vmatpush1.msra.mxu0 0.0
    %1121 = vmatprep.subr.mxu0 0.0
    %1122 = vmatpush1.msra.mxu0 0.0
    %1123 = vmatprep.subr.mxu0 0.0
    %1124 = vmatpush1.msra.mxu0 0.0
    %1125 = vmatprep.subr.mxu0 0.0
    %1126 = vmatpush1.msra.mxu0 0.0
    %1127 = vmatprep.subr.mxu0 0.0
    %1128 = vmatpush1.msra.mxu0 0.0
    %1129 = vmatprep.subr.mxu0 0.0
    %1130 = vmatpush1.msra.mxu0 0.0
    %1131 = vmatprep.subr.mxu0 0.0
    %1132 = vmatpush1.msra.mxu0 0.0
    %1133 = vmatprep.subr.mxu0 0.0
    %1134 = vmatpush1.msra.mxu0 0.0
    %1135 = vmatprep.subr.mxu0 0.0
    %1136 = vmatpush1.msra.mxu0 0.0
    %1137 = vmatprep.subr.mxu0 0.0
    %1138 = vmatpush1.msra.mxu0 0.0
    %1139 = vmatprep.subr.mxu0 0.0
    %1140 = vmatpush1.msra.mxu0 0.0
    %1141 = vmatprep.mubr.f32.mxu0 0.0
    %1142 = vmatmul.mubr.f32.gmra.mrb[0].mxu0 %v929
    %v1143 = vpop.f32.mrb[0].mxu0
    %v1144 = vadd.f32 0.0, %v1143
    %v1145 = vpop.f32.mrb[0].mxu0
    %v1146 = vadd.f32 0.0, %v1145
    %1147 = vdwg.mxu0
    %1148 = vmatprep.subr.mxu0 %v463
    %1149 = vmatpush1.msra.mxu0 %v462
    %1150 = vmatprep.subr.mxu0 %v465
    %1151 = vmatpush1.msra.mxu0 %v464
    %1152 = vmatprep.subr.mxu0 0.0
    %1153 = vmatpush1.msra.mxu0 0.0
    %1154 = vmatprep.subr.mxu0 0.0
    %1155 = vmatpush1.msra.mxu0 0.0
    %1156 = vmatprep.subr.mxu0 0.0
    %1157 = vmatpush1.msra.mxu0 0.0
    %1158 = vmatprep.subr.mxu0 0.0
    %1159 = vmatpush1.msra.mxu0 0.0
    %1160 = vmatprep.subr.mxu0 0.0
    %1161 = vmatpush1.msra.mxu0 0.0
    %1162 = vmatprep.subr.mxu0 0.0
    %1163 = vmatpush1.msra.mxu0 0.0
    %1164 = vmatprep.subr.mxu0 0.0
    %1165 = vmatpush1.msra.mxu0 0.0
    %1166 = vmatprep.subr.mxu0 0.0
    %1167 = vmatpush1.msra.mxu0 0.0
    %1168 = vmatprep.subr.mxu0 0.0
    %1169 = vmatpush1.msra.mxu0 0.0
    %1170 = vmatprep.subr.mxu0 0.0
    %1171 = vmatpush1.msra.mxu0 0.0
    %1172 = vmatprep.subr.mxu0 0.0
    %1173 = vmatpush1.msra.mxu0 0.0
    %1174 = vmatprep.subr.mxu0 0.0
    %1175 = vmatpush1.msra.mxu0 0.0
    %1176 = vmatprep.subr.mxu0 0.0
    %1177 = vmatpush1.msra.mxu0 0.0
    %1178 = vmatprep.subr.mxu0 0.0
    %1179 = vmatpush1.msra.mxu0 0.0
    %1180 = vmatprep.subr.mxu0 0.0
    %1181 = vmatpush1.msra.mxu0 0.0
    %1182 = vmatprep.subr.mxu0 0.0
    %1183 = vmatpush1.msra.mxu0 0.0
    %1184 = vmatprep.subr.mxu0 0.0
    %1185 = vmatpush1.msra.mxu0 0.0
    %1186 = vmatprep.subr.mxu0 0.0
    %1187 = vmatpush1.msra.mxu0 0.0
    %1188 = vmatprep.subr.mxu0 0.0
    %1189 = vmatpush1.msra.mxu0 0.0
    %1190 = vmatprep.subr.mxu0 0.0
    %1191 = vmatpush1.msra.mxu0 0.0
    %1192 = vmatprep.subr.mxu0 0.0
    %1193 = vmatpush1.msra.mxu0 0.0
    %1194 = vmatprep.subr.mxu0 0.0
    %1195 = vmatpush1.msra.mxu0 0.0
    %1196 = vmatprep.subr.mxu0 0.0
    %1197 = vmatpush1.msra.mxu0 0.0
    %1198 = vmatprep.subr.mxu0 0.0
    %1199 = vmatpush1.msra.mxu0 0.0
    %1200 = vmatprep.subr.mxu0 0.0
    %1201 = vmatpush1.msra.mxu0 0.0
    %1202 = vmatprep.subr.mxu0 0.0
    %1203 = vmatpush1.msra.mxu0 0.0
    %1204 = vmatprep.subr.mxu0 0.0
    %1205 = vmatpush1.msra.mxu0 0.0
    %1206 = vmatprep.subr.mxu0 0.0
    %1207 = vmatpush1.msra.mxu0 0.0
    %1208 = vmatprep.subr.mxu0 0.0
    %1209 = vmatpush1.msra.mxu0 0.0
    %1210 = vmatprep.subr.mxu0 0.0
    %1211 = vmatpush1.msra.mxu0 0.0
    %1212 = vmatprep.mubr.f32.mxu0 0.0
    %1213 = vmatmul.mubr.f32.gmra.mrb[0].mxu0 %v929
    %v1214 = vpop.f32.mrb[0].mxu0
    %v1215 = vadd.f32 0.0, %v1214
    %v1216 = vpop.f32.mrb[0].mxu0
    %v1217 = vadd.f32 0.0, %v1216
    %1218 = vdwg.mxu0
    %v1219 = vadd.f32 %v711, %v1144
    %v1220 = vadd.f32 %v713, %v1146
    %v1221 = vadd.f32 %v782, %v1215
    %v1222 = vadd.f32 %v784, %v1217
    %1223 = vmatprep.subr.mxu0 %v491
    %1224 = vmatpush1.msra.mxu0 %v490
    %1225 = vmatprep.subr.mxu0 %v493
    %1226 = vmatpush1.msra.mxu0 %v492
    %1227 = vmatprep.subr.mxu0 0.0
    %1228 = vmatpush1.msra.mxu0 0.0
    %1229 = vmatprep.subr.mxu0 0.0
    %1230 = vmatpush1.msra.mxu0 0.0
    %1231 = vmatprep.subr.mxu0 0.0
    %1232 = vmatpush1.msra.mxu0 0.0
    %1233 = vmatprep.subr.mxu0 0.0
    %1234 = vmatpush1.msra.mxu0 0.0
    %1235 = vmatprep.subr.mxu0 0.0
    %1236 = vmatpush1.msra.mxu0 0.0
    %1237 = vmatprep.subr.mxu0 0.0
    %1238 = vmatpush1.msra.mxu0 0.0
    %1239 = vmatprep.subr.mxu0 0.0
    %1240 = vmatpush1.msra.mxu0 0.0
    %1241 = vmatprep.subr.mxu0 0.0
    %1242 = vmatpush1.msra.mxu0 0.0
    %1243 = vmatprep.subr.mxu0 0.0
    %1244 = vmatpush1.msra.mxu0 0.0
    %1245 = vmatprep.subr.mxu0 0.0
    %1246 = vmatpush1.msra.mxu0 0.0
    %1247 = vmatprep.subr.mxu0 0.0
    %1248 = vmatpush1.msra.mxu0 0.0
    %1249 = vmatprep.subr.mxu0 0.0
    %1250 = vmatpush1.msra.mxu0 0.0
    %1251 = vmatprep.subr.mxu0 0.0
    %1252 = vmatpush1.msra.mxu0 0.0
    %1253 = vmatprep.subr.mxu0 0.0
    %1254 = vmatpush1.msra.mxu0 0.0
    %1255 = vmatprep.subr.mxu0 0.0
    %1256 = vmatpush1.msra.mxu0 0.0
    %1257 = vmatprep.subr.mxu0 0.0
    %1258 = vmatpush1.msra.mxu0 0.0
    %1259 = vmatprep.subr.mxu0 0.0
    %1260 = vmatpush1.msra.mxu0 0.0
    %1261 = vmatprep.subr.mxu0 0.0
    %1262 = vmatpush1.msra.mxu0 0.0
    %1263 = vmatprep.subr.mxu0 0.0
    %1264 = vmatpush1.msra.mxu0 0.0
    %1265 = vmatprep.subr.mxu0 0.0
    %1266 = vmatpush1.msra.mxu0 0.0
    %1267 = vmatprep.subr.mxu0 0.0
    %1268 = vmatpush1.msra.mxu0 0.0
    %1269 = vmatprep.subr.mxu0 0.0
    %1270 = vmatpush1.msra.mxu0 0.0
    %1271 = vmatprep.subr.mxu0 0.0
    %1272 = vmatpush1.msra.mxu0 0.0
    %1273 = vmatprep.subr.mxu0 0.0
    %1274 = vmatpush1.msra.mxu0 0.0
    %1275 = vmatprep.subr.mxu0 0.0
    %1276 = vmatpush1.msra.mxu0 0.0
    %1277 = vmatprep.subr.mxu0 0.0
    %1278 = vmatpush1.msra.mxu0 0.0
    %1279 = vmatprep.subr.mxu0 0.0
    %1280 = vmatpush1.msra.mxu0 0.0
    %1281 = vmatprep.subr.mxu0 0.0
    %1282 = vmatpush1.msra.mxu0 0.0
    %1283 = vmatprep.subr.mxu0 0.0
    %1284 = vmatpush1.msra.mxu0 0.0
    %1285 = vmatprep.subr.mxu0 0.0
    %1286 = vmatpush1.msra.mxu0 0.0
    %1287 = vmatprep.mubr.f32.mxu0 0.0
    %1288 = vmatmul.mubr.f32.gmra.mrb[0].mxu0 %v929
    %v1289 = vpop.f32.mrb[0].mxu0
    %v1290 = vadd.f32 0.0, %v1289
    %v1291 = vpop.f32.mrb[0].mxu0
    %v1292 = vadd.f32 0.0, %v1291
    %1293 = vdwg.mxu0
    %1294 = vmatprep.subr.mxu0 %v495
    %1295 = vmatpush1.msra.mxu0 %v494
    %1296 = vmatprep.subr.mxu0 %v497
    %1297 = vmatpush1.msra.mxu0 %v496
    %1298 = vmatprep.subr.mxu0 0.0
    %1299 = vmatpush1.msra.mxu0 0.0
    %1300 = vmatprep.subr.mxu0 0.0
    %1301 = vmatpush1.msra.mxu0 0.0
    %1302 = vmatprep.subr.mxu0 0.0
    %1303 = vmatpush1.msra.mxu0 0.0
    %1304 = vmatprep.subr.mxu0 0.0
    %1305 = vmatpush1.msra.mxu0 0.0
    %1306 = vmatprep.subr.mxu0 0.0
    %1307 = vmatpush1.msra.mxu0 0.0
    %1308 = vmatprep.subr.mxu0 0.0
    %1309 = vmatpush1.msra.mxu0 0.0
    %1310 = vmatprep.subr.mxu0 0.0
    %1311 = vmatpush1.msra.mxu0 0.0
    %1312 = vmatprep.subr.mxu0 0.0
    %1313 = vmatpush1.msra.mxu0 0.0
    %1314 = vmatprep.subr.mxu0 0.0
    %1315 = vmatpush1.msra.mxu0 0.0
    %1316 = vmatprep.subr.mxu0 0.0
    %1317 = vmatpush1.msra.mxu0 0.0
    %1318 = vmatprep.subr.mxu0 0.0
    %1319 = vmatpush1.msra.mxu0 0.0
    %1320 = vmatprep.subr.mxu0 0.0
    %1321 = vmatpush1.msra.mxu0 0.0
    %1322 = vmatprep.subr.mxu0 0.0
    %1323 = vmatpush1.msra.mxu0 0.0
    %1324 = vmatprep.subr.mxu0 0.0
    %1325 = vmatpush1.msra.mxu0 0.0
    %1326 = vmatprep.subr.mxu0 0.0
    %1327 = vmatpush1.msra.mxu0 0.0
    %1328 = vmatprep.subr.mxu0 0.0
    %1329 = vmatpush1.msra.mxu0 0.0
    %1330 = vmatprep.subr.mxu0 0.0
    %1331 = vmatpush1.msra.mxu0 0.0
    %1332 = vmatprep.subr.mxu0 0.0
    %1333 = vmatpush1.msra.mxu0 0.0
    %1334 = vmatprep.subr.mxu0 0.0
    %1335 = vmatpush1.msra.mxu0 0.0
    %1336 = vmatprep.subr.mxu0 0.0
    %1337 = vmatpush1.msra.mxu0 0.0
    %1338 = vmatprep.subr.mxu0 0.0
    %1339 = vmatpush1.msra.mxu0 0.0
    %1340 = vmatprep.subr.mxu0 0.0
    %1341 = vmatpush1.msra.mxu0 0.0
    %1342 = vmatprep.subr.mxu0 0.0
    %1343 = vmatpush1.msra.mxu0 0.0
    %1344 = vmatprep.subr.mxu0 0.0
    %1345 = vmatpush1.msra.mxu0 0.0
    %1346 = vmatprep.subr.mxu0 0.0
    %1347 = vmatpush1.msra.mxu0 0.0
    %1348 = vmatprep.subr.mxu0 0.0
    %1349 = vmatpush1.msra.mxu0 0.0
    %1350 = vmatprep.subr.mxu0 0.0
    %1351 = vmatpush1.msra.mxu0 0.0
    %1352 = vmatprep.subr.mxu0 0.0
    %1353 = vmatpush1.msra.mxu0 0.0
    %1354 = vmatprep.subr.mxu0 0.0
    %1355 = vmatpush1.msra.mxu0 0.0
    %1356 = vmatprep.subr.mxu0 0.0
    %1357 = vmatpush1.msra.mxu0 0.0
    %1358 = vmatprep.mubr.f32.mxu0 0.0
    %1359 = vmatmul.mubr.f32.gmra.mrb[0].mxu0 %v929
    %v1360 = vpop.f32.mrb[0].mxu0
    %v1361 = vadd.f32 0.0, %v1360
    %v1362 = vpop.f32.mrb[0].mxu0
    %v1363 = vadd.f32 0.0, %v1362
    %1364 = vdwg.mxu0
    %v1365 = vadd.f32 %v853, %v1290
    %v1366 = vadd.f32 %v855, %v1292
    %v1367 = vadd.f32 %v924, %v1361
    %v1368 = vadd.f32 %v926, %v1363
    %v1369 = vmul.f32 %v1073, %v1073
    %v1370 = vmul.f32 %v1074, %v1074
    %v1371 = vmul.f32 %v1075, %v1075
    %v1372 = vmul.f32 %v1076, %v1076
    %v1373 = vmul.f32 %v1219, %v1219
    %v1374 = vmul.f32 %v1220, %v1220
    %v1375 = vmul.f32 %v1221, %v1221
    %v1376 = vmul.f32 %v1222, %v1222
    %v1377 = vadd.f32 %v1369, %v1373
    %v1378 = vadd.f32 %v1370, %v1374
    %v1379 = vadd.f32 %v1371, %v1375
    %v1380 = vadd.f32 %v1372, %v1376
    %v1381 = vmul.f32 %v1365, %v1365
    %v1382 = vmul.f32 %v1366, %v1366
    %v1383 = vmul.f32 %v1367, %v1367
    %v1384 = vmul.f32 %v1368, %v1368
    %v1385 = vadd.f32 %v1377, %v1381
    %v1386 = vadd.f32 %v1378, %v1382
    %v1387 = vadd.f32 %v1379, %v1383
    %v1388 = vadd.f32 %v1380, %v1384
    %v1389 = vadd.f32 %v1385, 1e-06
    %v1390 = vadd.f32 %v1386, 1e-06
    %v1391 = vadd.f32 %v1387, 1e-06
    %v1392 = vadd.f32 %v1388, 1e-06
    %v1393 = vrsqrt.pop %v1389
    %v1394 = vmul.f32 %v1389, %v1393
    %vm1395 = vcmp.eq.f32.partialorder %v1389, inf
    %v1396 = vsel %vm1395, %v1389, %v1394
    %vm1397 = vcmp.eq.f32.partialorder %v1389, 0.0
    %v1398 = vand.u32 %v1389, 2147483648
    %v1399 = vsel %vm1397, %v1398, %v1396
    %v1400 = vrsqrt.pop %v1390
    %v1401 = vmul.f32 %v1390, %v1400
    %vm1402 = vcmp.eq.f32.partialorder %v1390, inf
    %v1403 = vsel %vm1402, %v1390, %v1401
    %vm1404 = vcmp.eq.f32.partialorder %v1390, 0.0
    %v1405 = vand.u32 %v1390, 2147483648
    %v1406 = vsel %vm1404, %v1405, %v1403
    %v1407 = vrsqrt.pop %v1391
    %v1408 = vmul.f32 %v1391, %v1407
    %vm1409 = vcmp.eq.f32.partialorder %v1391, inf
    %v1410 = vsel %vm1409, %v1391, %v1408
    %vm1411 = vcmp.eq.f32.partialorder %v1391, 0.0
    %v1412 = vand.u32 %v1391, 2147483648
    %v1413 = vsel %vm1411, %v1412, %v1410
    %v1414 = vrsqrt.pop %v1392
    %v1415 = vmul.f32 %v1392, %v1414
    %vm1416 = vcmp.eq.f32.partialorder %v1392, inf
    %v1417 = vsel %vm1416, %v1392, %v1415
    %vm1418 = vcmp.eq.f32.partialorder %v1392, 0.0
    %v1419 = vand.u32 %v1392, 2147483648
    %v1420 = vsel %vm1418, %v1419, %v1417
    %vm1421 = vcmask 1043456
    %v1422 = vsel %vm1421, %v1399, 0.0
    %v1423 = vsel %vm1421, %v1406, 0.0
    %v1424 = vadd.f32 %v1422, %v1423
    %v1425 = vsel %vm1421, %v1413, 0.0
    %v1426 = vadd.f32 %v1424, %v1425
    %v1427 = vsel %vm1421, %v1420, 0.0
    %v1428 = vadd.f32 %v1426, %v1427
    %1429 = vadd.xlane.f32.xlu0 %v1428
    %v1430 = vpop.xlane.xlu0 %1429
    %v1431 = vrcp.pop 512.0
    %v1432 = vmul.f32 %v1430, %v1431
    %v1433 = vsub.f32 %v1399, %v1432
    %v1434 = vsub.f32 %v1406, %v1432
    %v1435 = vsub.f32 %v1413, %v1432
    %v1436 = vsub.f32 %v1420, %v1432
    %v1437 = vmul.f32 %v1433, %v1433
    %v1438 = vmul.f32 %v1434, %v1434
    %v1439 = vmul.f32 %v1435, %v1435
    %v1440 = vmul.f32 %v1436, %v1436
    %v1441 = vsel %vm1421, %v1437, 0.0
    %v1442 = vsel %vm1421, %v1438, 0.0
    %v1443 = vadd.f32 %v1441, %v1442
    %v1444 = vsel %vm1421, %v1439, 0.0
    %v1445 = vadd.f32 %v1443, %v1444
    %v1446 = vsel %vm1421, %v1440, 0.0
    %v1447 = vadd.f32 %v1445, %v1446
    %1448 = vadd.xlane.f32.xlu0 %v1447
    %v1449 = vpop.xlane.xlu0 %1448
    %v1450 = vmul.f32 %v1449, %v1431
    %v1451 = vadd.f32 %v1450, 1e-05
    %v1452 = vrsqrt.pop %v1451
    %v1453 = vmul.f32 %v1433, %v1452
    %v1454 = vmul.f32 %v1434, %v1452
    %v1455 = vmul.f32 %v1435, %v1452
    %v1456 = vmul.f32 %v1436, %v1452
    %v1457 = vadd.f32 %v1399, 1e-06
    %v1458 = vadd.f32 %v1406, 1e-06
    %v1459 = vadd.f32 %v1413, 1e-06
    %v1460 = vadd.f32 %v1420, 1e-06
    %v1461 = vrcp.pop %v1457
    %v1462 = vmul.f32 %v1453, %v1461
    %v1463 = vrcp.pop %v1458
    %v1464 = vmul.f32 %v1454, %v1463
    %v1465 = vrcp.pop %v1459
    %v1466 = vmul.f32 %v1455, %v1465
    %v1467 = vrcp.pop %v1460
    %v1468 = vmul.f32 %v1456, %v1467
    %v1469 = vmul.f32 %v1073, %v1462
    %v1470 = vmul.f32 %v1074, %v1464
    %v1471 = vmul.f32 %v1075, %v1466
    %v1472 = vmul.f32 %v1076, %v1468
    %v1473 = vmul.f32 %v1219, %v1462
    %v1474 = vmul.f32 %v1220, %v1464
    %v1475 = vmul.f32 %v1221, %v1466
    %v1476 = vmul.f32 %v1222, %v1468
    %v1477 = vmul.f32 %v1365, %v1462
    %v1478 = vmul.f32 %v1366, %v1464
    %v1479 = vmul.f32 %v1367, %v1466
    %v1480 = vmul.f32 %v1368, %v1468
    %v1485 = vrot.slane %v569, 4
    %v1486 = vrot.slane %v571, 4
    %v1487 = vrot.slane %v640, 4
    %v1488 = vrot.slane %v642, 4
    %v1493 = vmul.f32 %v1469, %v1485
    %v1494 = vmul.f32 %v1470, %v1486
    %v1495 = vmul.f32 %v1471, %v1487
    %v1496 = vmul.f32 %v1472, %v1488
    %v1501 = vrot.slane %v711, 4
    %v1502 = vrot.slane %v713, 4
    %v1503 = vrot.slane %v782, 4
    %v1504 = vrot.slane %v784, 4
    %v1509 = vmul.f32 %v1473, %v1501
    %v1510 = vmul.f32 %v1474, %v1502
    %v1511 = vmul.f32 %v1475, %v1503
    %v1512 = vmul.f32 %v1476, %v1504
    %v1513 = vadd.f32 %v1493, %v1509
    %v1514 = vadd.f32 %v1494, %v1510
    %v1515 = vadd.f32 %v1495, %v1511
    %v1516 = vadd.f32 %v1496, %v1512
    %v1521 = vrot.slane %v853, 4
    %v1522 = vrot.slane %v855, 4
    %v1523 = vrot.slane %v924, 4
    %v1524 = vrot.slane %v926, 4
    %v1529 = vmul.f32 %v1477, %v1521
    %v1530 = vmul.f32 %v1478, %v1522
    %v1531 = vmul.f32 %v1479, %v1523
    %v1532 = vmul.f32 %v1480, %v1524
    %v1533 = vadd.f32 %v1513, %v1529
    %v1534 = vadd.f32 %v1514, %v1530
    %v1535 = vadd.f32 %v1515, %v1531
    %v1536 = vadd.f32 %v1516, %v1532
    %v1537 = vmul.f32 %v569, %v569
    %v1538 = vmul.f32 %v571, %v571
    %v1539 = vmul.f32 %v640, %v640
    %v1540 = vmul.f32 %v642, %v642
    %v1541 = vmul.f32 %v711, %v711
    %v1542 = vmul.f32 %v713, %v713
    %v1543 = vmul.f32 %v782, %v782
    %v1544 = vmul.f32 %v784, %v784
    %v1545 = vadd.f32 %v1537, %v1541
    %v1546 = vadd.f32 %v1538, %v1542
    %v1547 = vadd.f32 %v1539, %v1543
    %v1548 = vadd.f32 %v1540, %v1544
    %v1549 = vmul.f32 %v853, %v853
    %v1550 = vmul.f32 %v855, %v855
    %v1551 = vmul.f32 %v924, %v924
    %v1552 = vmul.f32 %v926, %v926
    %v1553 = vadd.f32 %v1545, %v1549
    %v1554 = vadd.f32 %v1546, %v1550
    %v1555 = vadd.f32 %v1547, %v1551
    %v1556 = vadd.f32 %v1548, %v1552
    %vm1557 = vcmp.ge.f32.partialorder %v1533, 0.0
    %vm1558 = vcmp.ge.f32.partialorder %v1534, 0.0
    %vm1559 = vcmp.ge.f32.partialorder %v1535, 0.0
    %vm1560 = vcmp.ge.f32.partialorder %v1536, 0.0
    %v1561 = vadd.f32 %v1553, 1e-06
    %v1562 = vadd.f32 %v1554, 1e-06
    %v1563 = vadd.f32 %v1555, 1e-06
    %v1564 = vadd.f32 %v1556, 1e-06
    %v1569 = vrot.slane %v1561, 4
    %v1570 = vrot.slane %v1562, 4
    %v1571 = vrot.slane %v1563, 4
    %v1572 = vrot.slane %v1564, 4
    %v1577 = vrcp.pop %v1569
    %v1578 = vmul.f32 %v1533, %v1577
    %v1579 = vrcp.pop %v1570
    %v1580 = vmul.f32 %v1534, %v1579
    %v1581 = vrcp.pop %v1571
    %v1582 = vmul.f32 %v1535, %v1581
    %v1583 = vrcp.pop %v1572
    %v1584 = vmul.f32 %v1536, %v1583
    %v1585 = vsel %vm1557, 0.0, %v1578
    %v1586 = vsel %vm1558, 0.0, %v1580
    %v1587 = vsel %vm1559, 0.0, %v1582
    %v1588 = vsel %vm1560, 0.0, %v1584
    %v1589 = vmul.f32 %v1585, 0.8
    %v1590 = vmul.f32 %v1586, 0.8
    %v1591 = vmul.f32 %v1587, 0.8
    %v1592 = vmul.f32 %v1588, 0.8
    %v1593 = vmul.f32 %v1589, %v1485
    %v1594 = vmul.f32 %v1590, %v1486
    %v1595 = vmul.f32 %v1591, %v1487
    %v1596 = vmul.f32 %v1592, %v1488
    %v1597 = vsub.f32 %v1469, %v1593
    %v1598 = vsub.f32 %v1470, %v1594
    %v1599 = vsub.f32 %v1471, %v1595
    %v1600 = vsub.f32 %v1472, %v1596
    %v1601 = vmul.f32 %v1589, %v1501
    %v1602 = vmul.f32 %v1590, %v1502
    %v1603 = vmul.f32 %v1591, %v1503
    %v1604 = vmul.f32 %v1592, %v1504
    %v1605 = vsub.f32 %v1473, %v1601
    %v1606 = vsub.f32 %v1474, %v1602
    %v1607 = vsub.f32 %v1475, %v1603
    %v1608 = vsub.f32 %v1476, %v1604
    %v1609 = vmul.f32 %v1589, %v1521
    %v1610 = vmul.f32 %v1590, %v1522
    %v1611 = vmul.f32 %v1591, %v1523
    %v1612 = vmul.f32 %v1592, %v1524
    %v1613 = vsub.f32 %v1477, %v1609
    %v1614 = vsub.f32 %v1478, %v1610
    %v1615 = vsub.f32 %v1479, %v1611
    %v1616 = vsub.f32 %v1480, %v1612
    %v1617 = vsel %vm1421, %v1597, 0.0
    %v1618 = vrot.slane %v1617, 4
    %v1619 = vadd.f32 %v1617, %v1618
    %v1620 = vrot.slane %v1619, 2
    %v1621 = vadd.f32 %v1619, %v1620
    %v1622 = vrot.slane %v1621, 1
    %v1623 = vadd.f32 %v1621, %v1622
    %v1624 = vsel %vm1421, %v1598, 0.0
    %v1625 = vrot.slane %v1624, 4
    %v1626 = vadd.f32 %v1624, %v1625
    %v1627 = vrot.slane %v1626, 2
    %v1628 = vadd.f32 %v1626, %v1627
    %v1629 = vrot.slane %v1628, 1
    %v1630 = vadd.f32 %v1628, %v1629
    %v1631 = vsel %vm1421, %v1599, 0.0
    %v1632 = vrot.slane %v1631, 4
    %v1633 = vadd.f32 %v1631, %v1632
    %v1634 = vrot.slane %v1633, 2
    %v1635 = vadd.f32 %v1633, %v1634
    %v1636 = vrot.slane %v1635, 1
    %v1637 = vadd.f32 %v1635, %v1636
    %v1638 = vsel %vm1421, %v1600, 0.0
    %v1639 = vrot.slane %v1638, 4
    %v1640 = vadd.f32 %v1638, %v1639
    %v1641 = vrot.slane %v1640, 2
    %v1642 = vadd.f32 %v1640, %v1641
    %v1643 = vrot.slane %v1642, 1
    %v1644 = vadd.f32 %v1642, %v1643
    %v1645 = vrcp.pop 4.0
    %v1646 = vmul.f32 %v1623, %v1645
    %v1647 = vmul.f32 %v1630, %v1645
    %v1648 = vmul.f32 %v1637, %v1645
    %v1649 = vmul.f32 %v1644, %v1645
    %v1650 = vsel %vm1421, %v1605, 0.0
    %v1651 = vrot.slane %v1650, 4
    %v1652 = vadd.f32 %v1650, %v1651
    %v1653 = vrot.slane %v1652, 2
    %v1654 = vadd.f32 %v1652, %v1653
    %v1655 = vrot.slane %v1654, 1
    %v1656 = vadd.f32 %v1654, %v1655
    %v1657 = vsel %vm1421, %v1606, 0.0
    %v1658 = vrot.slane %v1657, 4
    %v1659 = vadd.f32 %v1657, %v1658
    %v1660 = vrot.slane %v1659, 2
    %v1661 = vadd.f32 %v1659, %v1660
    %v1662 = vrot.slane %v1661, 1
    %v1663 = vadd.f32 %v1661, %v1662
    %v1664 = vsel %vm1421, %v1607, 0.0
    %v1665 = vrot.slane %v1664, 4
    %v1666 = vadd.f32 %v1664, %v1665
    %v1667 = vrot.slane %v1666, 2
    %v1668 = vadd.f32 %v1666, %v1667
    %v1669 = vrot.slane %v1668, 1
    %v1670 = vadd.f32 %v1668, %v1669
    %v1671 = vsel %vm1421, %v1608, 0.0
    %v1672 = vrot.slane %v1671, 4
    %v1673 = vadd.f32 %v1671, %v1672
    %v1674 = vrot.slane %v1673, 2
    %v1675 = vadd.f32 %v1673, %v1674
    %v1676 = vrot.slane %v1675, 1
    %v1677 = vadd.f32 %v1675, %v1676
    %v1678 = vmul.f32 %v1656, %v1645
    %v1679 = vmul.f32 %v1663, %v1645
    %v1680 = vmul.f32 %v1670, %v1645
    %v1681 = vmul.f32 %v1677, %v1645
    %v1682 = vsel %vm1421, %v1613, 0.0
    %v1683 = vrot.slane %v1682, 4
    %v1684 = vadd.f32 %v1682, %v1683
    %v1685 = vrot.slane %v1684, 2
    %v1686 = vadd.f32 %v1684, %v1685
    %v1687 = vrot.slane %v1686, 1
    %v1688 = vadd.f32 %v1686, %v1687
    %v1689 = vsel %vm1421, %v1614, 0.0
    %v1690 = vrot.slane %v1689, 4
    %v1691 = vadd.f32 %v1689, %v1690
    %v1692 = vrot.slane %v1691, 2
    %v1693 = vadd.f32 %v1691, %v1692
    %v1694 = vrot.slane %v1693, 1
    %v1695 = vadd.f32 %v1693, %v1694
    %v1696 = vsel %vm1421, %v1615, 0.0
    %v1697 = vrot.slane %v1696, 4
    %v1698 = vadd.f32 %v1696, %v1697
    %v1699 = vrot.slane %v1698, 2
    %v1700 = vadd.f32 %v1698, %v1699
    %v1701 = vrot.slane %v1700, 1
    %v1702 = vadd.f32 %v1700, %v1701
    %v1703 = vsel %vm1421, %v1616, 0.0
    %v1704 = vrot.slane %v1703, 4
    %v1705 = vadd.f32 %v1703, %v1704
    %v1706 = vrot.slane %v1705, 2
    %v1707 = vadd.f32 %v1705, %v1706
    %v1708 = vrot.slane %v1707, 1
    %v1709 = vadd.f32 %v1707, %v1708
    %v1710 = vmul.f32 %v1688, %v1645
    %v1711 = vmul.f32 %v1695, %v1645
    %v1712 = vmul.f32 %v1702, %v1645
    %v1713 = vmul.f32 %v1709, %v1645
    %v1714 = vmul.f32 %v1605, %v1710
    %v1715 = vmul.f32 %v1606, %v1711
    %v1716 = vmul.f32 %v1607, %v1712
    %v1717 = vmul.f32 %v1608, %v1713
    %v1718 = vmul.f32 %v1613, %v1678
    %v1719 = vmul.f32 %v1614, %v1679
    %v1720 = vmul.f32 %v1615, %v1680
    %v1721 = vmul.f32 %v1616, %v1681
    %v1722 = vsub.f32 %v1714, %v1718
    %v1723 = vsub.f32 %v1715, %v1719
    %v1724 = vsub.f32 %v1716, %v1720
    %v1725 = vsub.f32 %v1717, %v1721
    %v1730 = vrot.slane %v1722, 4
    %v1731 = vrot.slane %v1723, 4
    %v1732 = vrot.slane %v1724, 4
    %v1733 = vrot.slane %v1725, 4
    %v1738 = vsel %vm1421, %v1597, %v1730
    %v1739 = vsel %vm1421, %v1598, %v1731
    %v1740 = vsel %vm1421, %v1599, %v1732
    %v1741 = vsel %vm1421, %v1600, %v1733
    %v1742 = vmul.f32 %v1613, %v1646
    %v1743 = vmul.f32 %v1614, %v1647
    %v1744 = vmul.f32 %v1615, %v1648
    %v1745 = vmul.f32 %v1616, %v1649
    %v1746 = vmul.f32 %v1597, %v1710
    %v1747 = vmul.f32 %v1598, %v1711
    %v1748 = vmul.f32 %v1599, %v1712
    %v1749 = vmul.f32 %v1600, %v1713
    %v1750 = vsub.f32 %v1742, %v1746
    %v1751 = vsub.f32 %v1743, %v1747
    %v1752 = vsub.f32 %v1744, %v1748
    %v1753 = vsub.f32 %v1745, %v1749
    %v1758 = vrot.slane %v1750, 4
    %v1759 = vrot.slane %v1751, 4
    %v1760 = vrot.slane %v1752, 4
    %v1761 = vrot.slane %v1753, 4
    %v1766 = vsel %vm1421, %v1605, %v1758
    %v1767 = vsel %vm1421, %v1606, %v1759
    %v1768 = vsel %vm1421, %v1607, %v1760
    %v1769 = vsel %vm1421, %v1608, %v1761
    %v1770 = vmul.f32 %v1597, %v1678
    %v1771 = vmul.f32 %v1598, %v1679
    %v1772 = vmul.f32 %v1599, %v1680
    %v1773 = vmul.f32 %v1600, %v1681
    %v1774 = vmul.f32 %v1605, %v1646
    %v1775 = vmul.f32 %v1606, %v1647
    %v1776 = vmul.f32 %v1607, %v1648
    %v1777 = vmul.f32 %v1608, %v1649
    %v1778 = vsub.f32 %v1770, %v1774
    %v1779 = vsub.f32 %v1771, %v1775
    %v1780 = vsub.f32 %v1772, %v1776
    %v1781 = vsub.f32 %v1773, %v1777
    %v1786 = vrot.slane %v1778, 4
    %v1787 = vrot.slane %v1779, 4
    %v1788 = vrot.slane %v1780, 4
    %v1789 = vrot.slane %v1781, 4
    %v1794 = vsel %vm1421, %v1613, %v1786
    %v1795 = vsel %vm1421, %v1614, %v1787
    %v1796 = vsel %vm1421, %v1615, %v1788
    %v1797 = vsel %vm1421, %v1616, %v1789
    %v1802 = vrot.slane %v1738, 7
    %v1803 = vrot.slane %v1739, 7
    %v1804 = vrot.slane %v1740, 7
    %v1805 = vrot.slane %v1741, 7
    %v1810 = vsel %vm253, %v1802, %v1802
    %v1811 = vsel %vm253, %v1803, %v1803
    %v1812 = vsel %vm253, %v1804, %v1804
    %v1813 = vsel %vm253, %v1805, %v1805
    %v1818 = vrot.slane %v1766, 7
    %v1819 = vrot.slane %v1767, 7
    %v1820 = vrot.slane %v1768, 7
    %v1821 = vrot.slane %v1769, 7
    %v1826 = vsel %vm253, %v1818, %v1818
    %v1827 = vsel %vm253, %v1819, %v1819
    %v1828 = vsel %vm253, %v1820, %v1820
    %v1829 = vsel %vm253, %v1821, %v1821
    %v1834 = vrot.slane %v1794, 7
    %v1835 = vrot.slane %v1795, 7
    %v1836 = vrot.slane %v1796, 7
    %v1837 = vrot.slane %v1797, 7
    %v1842 = vsel %vm253, %v1834, %v1834
    %v1843 = vsel %vm253, %v1835, %v1835
    %v1844 = vsel %vm253, %v1836, %v1836
    %v1845 = vsel %vm253, %v1837, %v1837
    %v1846 = vmul.f32 %v1810, %v1810
    %v1847 = vmul.f32 %v1811, %v1811
    %v1848 = vmul.f32 %v1812, %v1812
    %v1849 = vmul.f32 %v1813, %v1813
    %v1850 = vmul.f32 %v1826, %v1826
    %v1851 = vmul.f32 %v1827, %v1827
    %v1852 = vmul.f32 %v1828, %v1828
    %v1853 = vmul.f32 %v1829, %v1829
    %v1854 = vadd.f32 %v1846, %v1850
    %v1855 = vadd.f32 %v1847, %v1851
    %v1856 = vadd.f32 %v1848, %v1852
    %v1857 = vadd.f32 %v1849, %v1853
    %v1858 = vmul.f32 %v1842, %v1842
    %v1859 = vmul.f32 %v1843, %v1843
    %v1860 = vmul.f32 %v1844, %v1844
    %v1861 = vmul.f32 %v1845, %v1845
    %v1862 = vadd.f32 %v1854, %v1858
    %v1863 = vadd.f32 %v1855, %v1859
    %v1864 = vadd.f32 %v1856, %v1860
    %v1865 = vadd.f32 %v1857, %v1861
    %v1866 = vadd.f32 %v1862, 1e-06
    %v1867 = vadd.f32 %v1863, 1e-06
    %v1868 = vadd.f32 %v1864, 1e-06
    %v1869 = vadd.f32 %v1865, 1e-06
    %v1870 = vrsqrt.pop %v1866
    %v1871 = vrsqrt.pop %v1867
    %v1872 = vrsqrt.pop %v1868
    %v1873 = vrsqrt.pop %v1869
    %v1874 = vmul.f32 %v1826, %v1794
    %v1875 = vmul.f32 %v1827, %v1795
    %v1876 = vmul.f32 %v1828, %v1796
    %v1877 = vmul.f32 %v1829, %v1797
    %v1878 = vmul.f32 %v1842, %v1766
    %v1879 = vmul.f32 %v1843, %v1767
    %v1880 = vmul.f32 %v1844, %v1768
    %v1881 = vmul.f32 %v1845, %v1769
    %v1882 = vsub.f32 %v1874, %v1878
    %v1883 = vsub.f32 %v1875, %v1879
    %v1884 = vsub.f32 %v1876, %v1880
    %v1885 = vsub.f32 %v1877, %v1881
    %v1886 = vmul.f32 %v1882, %v1870
    %v1887 = vmul.f32 %v1883, %v1871
    %v1888 = vmul.f32 %v1884, %v1872
    %v1889 = vmul.f32 %v1885, %v1873
    %v1890 = vmul.f32 %v1842, %v1738
    %v1891 = vmul.f32 %v1843, %v1739
    %v1892 = vmul.f32 %v1844, %v1740
    %v1893 = vmul.f32 %v1845, %v1741
    %v1894 = vmul.f32 %v1810, %v1794
    %v1895 = vmul.f32 %v1811, %v1795
    %v1896 = vmul.f32 %v1812, %v1796
    %v1897 = vmul.f32 %v1813, %v1797
    %v1898 = vsub.f32 %v1890, %v1894
    %v1899 = vsub.f32 %v1891, %v1895
    %v1900 = vsub.f32 %v1892, %v1896
    %v1901 = vsub.f32 %v1893, %v1897
    %v1902 = vmul.f32 %v1898, %v1870
    %v1903 = vmul.f32 %v1899, %v1871
    %v1904 = vmul.f32 %v1900, %v1872
    %v1905 = vmul.f32 %v1901, %v1873
    %v1906 = vmul.f32 %v1810, %v1766
    %v1907 = vmul.f32 %v1811, %v1767
    %v1908 = vmul.f32 %v1812, %v1768
    %v1909 = vmul.f32 %v1813, %v1769
    %v1910 = vmul.f32 %v1826, %v1738
    %v1911 = vmul.f32 %v1827, %v1739
    %v1912 = vmul.f32 %v1828, %v1740
    %v1913 = vmul.f32 %v1829, %v1741
    %v1914 = vsub.f32 %v1906, %v1910
    %v1915 = vsub.f32 %v1907, %v1911
    %v1916 = vsub.f32 %v1908, %v1912
    %v1917 = vsub.f32 %v1909, %v1913
    %v1918 = vmul.f32 %v1914, %v1870
    %v1919 = vmul.f32 %v1915, %v1871
    %v1920 = vmul.f32 %v1916, %v1872
    %v1921 = vmul.f32 %v1917, %v1873
    %vm1922 = vcmask 64512
    %v1924 = vsel %vm1922, %v101, 0
    %1926 = vmatprep.subr.mxu0 %v1739
    %1927 = vmatpush1.msra.mxu0 %v1738
    %1928 = vmatprep.subr.mxu0 0.0
    %1929 = vmatpush1.msra.mxu0 0.0
    %1930 = vmatprep.subr.mxu0 0.0
    %1931 = vmatpush1.msra.mxu0 0.0
    %1932 = vmatprep.subr.mxu0 0.0
    %1933 = vmatpush1.msra.mxu0 0.0
    %1934 = vmatprep.subr.mxu0 0.0
    %1935 = vmatpush1.msra.mxu0 0.0
    %1936 = vmatprep.subr.mxu0 0.0
    %1937 = vmatpush1.msra.mxu0 0.0
    %1938 = vmatprep.subr.mxu0 0.0
    %1939 = vmatpush1.msra.mxu0 0.0
    %1940 = vmatprep.subr.mxu0 0.0
    %1941 = vmatpush1.msra.mxu0 0.0
    %1942 = vmatprep.subr.mxu0 0.0
    %1943 = vmatpush1.msra.mxu0 0.0
    %1944 = vmatprep.subr.mxu0 0.0
    %1945 = vmatpush1.msra.mxu0 0.0
    %1946 = vmatprep.subr.mxu0 0.0
    %1947 = vmatpush1.msra.mxu0 0.0
    %1948 = vmatprep.subr.mxu0 0.0
    %1949 = vmatpush1.msra.mxu0 0.0
    %1950 = vmatprep.subr.mxu0 0.0
    %1951 = vmatpush1.msra.mxu0 0.0
    %1952 = vmatprep.subr.mxu0 0.0
    %1953 = vmatpush1.msra.mxu0 0.0
    %1954 = vmatprep.subr.mxu0 0.0
    %1955 = vmatpush1.msra.mxu0 0.0
    %1956 = vmatprep.subr.mxu0 0.0
    %1957 = vmatpush1.msra.mxu0 0.0
    %1958 = vmatprep.subr.mxu0 0.0
    %1959 = vmatpush1.msra.mxu0 0.0
    %1960 = vmatprep.subr.mxu0 0.0
    %1961 = vmatpush1.msra.mxu0 0.0
    %1962 = vmatprep.subr.mxu0 0.0
    %1963 = vmatpush1.msra.mxu0 0.0
    %1964 = vmatprep.subr.mxu0 0.0
    %1965 = vmatpush1.msra.mxu0 0.0
    %1966 = vmatprep.subr.mxu0 0.0
    %1967 = vmatpush1.msra.mxu0 0.0
    %1968 = vmatprep.subr.mxu0 0.0
    %1969 = vmatpush1.msra.mxu0 0.0
    %1970 = vmatprep.subr.mxu0 0.0
    %1971 = vmatpush1.msra.mxu0 0.0
    %1972 = vmatprep.subr.mxu0 0.0
    %1973 = vmatpush1.msra.mxu0 0.0
    %1974 = vmatprep.subr.mxu0 0.0
    %1975 = vmatpush1.msra.mxu0 0.0
    %1976 = vmatprep.subr.mxu0 0.0
    %1977 = vmatpush1.msra.mxu0 0.0
    %1978 = vmatprep.subr.mxu0 0.0
    %1979 = vmatpush1.msra.mxu0 0.0
    %1980 = vmatprep.subr.mxu0 0.0
    %1981 = vmatpush1.msra.mxu0 0.0
    %1982 = vmatprep.subr.mxu0 0.0
    %1983 = vmatpush1.msra.mxu0 0.0
    %1984 = vmatprep.subr.mxu0 0.0
    %1985 = vmatpush1.msra.mxu0 0.0
    %1986 = vmatprep.subr.mxu0 0.0
    %1987 = vmatpush1.msra.mxu0 0.0
    %1988 = vmatprep.subr.mxu0 0.0
    %1989 = vmatpush1.msra.mxu0 0.0
    %1990 = vmatprep.mubr.f32.mxu0 0.0
    %1991 = vmatmul.mubr.f32.gmra.mrb[0].mxu0 %v1924
    %v1992 = vpop.f32.mrb[0].mxu0
    %v1993 = vadd.f32 0.0, %v1992
    %v1994 = vpop.f32.mrb[0].mxu0
    %v1995 = vadd.f32 0.0, %v1994
    %1996 = vdwg.mxu0
    %1997 = vmatprep.subr.mxu0 %v1741
    %1998 = vmatpush1.msra.mxu0 %v1740
    %1999 = vmatprep.subr.mxu0 0.0
    %2000 = vmatpush1.msra.mxu0 0.0
    %2001 = vmatprep.subr.mxu0 0.0
    %2002 = vmatpush1.msra.mxu0 0.0
    %2003 = vmatprep.subr.mxu0 0.0
    %2004 = vmatpush1.msra.mxu0 0.0
    %2005 = vmatprep.subr.mxu0 0.0
    %2006 = vmatpush1.msra.mxu0 0.0
    %2007 = vmatprep.subr.mxu0 0.0
    %2008 = vmatpush1.msra.mxu0 0.0
    %2009 = vmatprep.subr.mxu0 0.0
    %2010 = vmatpush1.msra.mxu0 0.0
    %2011 = vmatprep.subr.mxu0 0.0
    %2012 = vmatpush1.msra.mxu0 0.0
    %2013 = vmatprep.subr.mxu0 0.0
    %2014 = vmatpush1.msra.mxu0 0.0
    %2015 = vmatprep.subr.mxu0 0.0
    %2016 = vmatpush1.msra.mxu0 0.0
    %2017 = vmatprep.subr.mxu0 0.0
    %2018 = vmatpush1.msra.mxu0 0.0
    %2019 = vmatprep.subr.mxu0 0.0
    %2020 = vmatpush1.msra.mxu0 0.0
    %2021 = vmatprep.subr.mxu0 0.0
    %2022 = vmatpush1.msra.mxu0 0.0
    %2023 = vmatprep.subr.mxu0 0.0
    %2024 = vmatpush1.msra.mxu0 0.0
    %2025 = vmatprep.subr.mxu0 0.0
    %2026 = vmatpush1.msra.mxu0 0.0
    %2027 = vmatprep.subr.mxu0 0.0
    %2028 = vmatpush1.msra.mxu0 0.0
    %2029 = vmatprep.subr.mxu0 0.0
    %2030 = vmatpush1.msra.mxu0 0.0
    %2031 = vmatprep.subr.mxu0 0.0
    %2032 = vmatpush1.msra.mxu0 0.0
    %2033 = vmatprep.subr.mxu0 0.0
    %2034 = vmatpush1.msra.mxu0 0.0
    %2035 = vmatprep.subr.mxu0 0.0
    %2036 = vmatpush1.msra.mxu0 0.0
    %2037 = vmatprep.subr.mxu0 0.0
    %2038 = vmatpush1.msra.mxu0 0.0
    %2039 = vmatprep.subr.mxu0 0.0
    %2040 = vmatpush1.msra.mxu0 0.0
    %2041 = vmatprep.subr.mxu0 0.0
    %2042 = vmatpush1.msra.mxu0 0.0
    %2043 = vmatprep.subr.mxu0 0.0
    %2044 = vmatpush1.msra.mxu0 0.0
    %2045 = vmatprep.subr.mxu0 0.0
    %2046 = vmatpush1.msra.mxu0 0.0
    %2047 = vmatprep.subr.mxu0 0.0
    %2048 = vmatpush1.msra.mxu0 0.0
    %2049 = vmatprep.subr.mxu0 0.0
    %2050 = vmatpush1.msra.mxu0 0.0
    %2051 = vmatprep.subr.mxu0 0.0
    %2052 = vmatpush1.msra.mxu0 0.0
    %2053 = vmatprep.subr.mxu0 0.0
    %2054 = vmatpush1.msra.mxu0 0.0
    %2055 = vmatprep.subr.mxu0 0.0
    %2056 = vmatpush1.msra.mxu0 0.0
    %2057 = vmatprep.subr.mxu0 0.0
    %2058 = vmatpush1.msra.mxu0 0.0
    %2059 = vmatprep.subr.mxu0 0.0
    %2060 = vmatpush1.msra.mxu0 0.0
    %2061 = vmatprep.mubr.f32.mxu0 0.0
    %2062 = vmatmul.mubr.f32.gmra.mrb[0].mxu0 %v1924
    %v2063 = vpop.f32.mrb[0].mxu0
    %v2064 = vadd.f32 0.0, %v2063
    %v2065 = vpop.f32.mrb[0].mxu0
    %v2066 = vadd.f32 0.0, %v2065
    %2067 = vdwg.mxu0
    %2068 = vmatprep.subr.mxu0 %v1767
    %2069 = vmatpush1.msra.mxu0 %v1766
    %2070 = vmatprep.subr.mxu0 0.0
    %2071 = vmatpush1.msra.mxu0 0.0
    %2072 = vmatprep.subr.mxu0 0.0
    %2073 = vmatpush1.msra.mxu0 0.0
    %2074 = vmatprep.subr.mxu0 0.0
    %2075 = vmatpush1.msra.mxu0 0.0
    %2076 = vmatprep.subr.mxu0 0.0
    %2077 = vmatpush1.msra.mxu0 0.0
    %2078 = vmatprep.subr.mxu0 0.0
    %2079 = vmatpush1.msra.mxu0 0.0
    %2080 = vmatprep.subr.mxu0 0.0
    %2081 = vmatpush1.msra.mxu0 0.0
    %2082 = vmatprep.subr.mxu0 0.0
    %2083 = vmatpush1.msra.mxu0 0.0
    %2084 = vmatprep.subr.mxu0 0.0
    %2085 = vmatpush1.msra.mxu0 0.0
    %2086 = vmatprep.subr.mxu0 0.0
    %2087 = vmatpush1.msra.mxu0 0.0
    %2088 = vmatprep.subr.mxu0 0.0
    %2089 = vmatpush1.msra.mxu0 0.0
    %2090 = vmatprep.subr.mxu0 0.0
    %2091 = vmatpush1.msra.mxu0 0.0
    %2092 = vmatprep.subr.mxu0 0.0
    %2093 = vmatpush1.msra.mxu0 0.0
    %2094 = vmatprep.subr.mxu0 0.0
    %2095 = vmatpush1.msra.mxu0 0.0
    %2096 = vmatprep.subr.mxu0 0.0
    %2097 = vmatpush1.msra.mxu0 0.0
    %2098 = vmatprep.subr.mxu0 0.0
    %2099 = vmatpush1.msra.mxu0 0.0
    %2100 = vmatprep.subr.mxu0 0.0
    %2101 = vmatpush1.msra.mxu0 0.0
    %2102 = vmatprep.subr.mxu0 0.0
    %2103 = vmatpush1.msra.mxu0 0.0
    %2104 = vmatprep.subr.mxu0 0.0
    %2105 = vmatpush1.msra.mxu0 0.0
    %2106 = vmatprep.subr.mxu0 0.0
    %2107 = vmatpush1.msra.mxu0 0.0
    %2108 = vmatprep.subr.mxu0 0.0
    %2109 = vmatpush1.msra.mxu0 0.0
    %2110 = vmatprep.subr.mxu0 0.0
    %2111 = vmatpush1.msra.mxu0 0.0
    %2112 = vmatprep.subr.mxu0 0.0
    %2113 = vmatpush1.msra.mxu0 0.0
    %2114 = vmatprep.subr.mxu0 0.0
    %2115 = vmatpush1.msra.mxu0 0.0
    %2116 = vmatprep.subr.mxu0 0.0
    %2117 = vmatpush1.msra.mxu0 0.0
    %2118 = vmatprep.subr.mxu0 0.0
    %2119 = vmatpush1.msra.mxu0 0.0
    %2120 = vmatprep.subr.mxu0 0.0
    %2121 = vmatpush1.msra.mxu0 0.0
    %2122 = vmatprep.subr.mxu0 0.0
    %2123 = vmatpush1.msra.mxu0 0.0
    %2124 = vmatprep.subr.mxu0 0.0
    %2125 = vmatpush1.msra.mxu0 0.0
    %2126 = vmatprep.subr.mxu0 0.0
    %2127 = vmatpush1.msra.mxu0 0.0
    %2128 = vmatprep.subr.mxu0 0.0
    %2129 = vmatpush1.msra.mxu0 0.0
    %2130 = vmatprep.subr.mxu0 0.0
    %2131 = vmatpush1.msra.mxu0 0.0
    %2132 = vmatprep.mubr.f32.mxu0 0.0
    %2133 = vmatmul.mubr.f32.gmra.mrb[0].mxu0 %v1924
    %v2134 = vpop.f32.mrb[0].mxu0
    %v2135 = vadd.f32 0.0, %v2134
    %v2136 = vpop.f32.mrb[0].mxu0
    %v2137 = vadd.f32 0.0, %v2136
    %2138 = vdwg.mxu0
    %2139 = vmatprep.subr.mxu0 %v1769
    %2140 = vmatpush1.msra.mxu0 %v1768
    %2141 = vmatprep.subr.mxu0 0.0
    %2142 = vmatpush1.msra.mxu0 0.0
    %2143 = vmatprep.subr.mxu0 0.0
    %2144 = vmatpush1.msra.mxu0 0.0
    %2145 = vmatprep.subr.mxu0 0.0
    %2146 = vmatpush1.msra.mxu0 0.0
    %2147 = vmatprep.subr.mxu0 0.0
    %2148 = vmatpush1.msra.mxu0 0.0
    %2149 = vmatprep.subr.mxu0 0.0
    %2150 = vmatpush1.msra.mxu0 0.0
    %2151 = vmatprep.subr.mxu0 0.0
    %2152 = vmatpush1.msra.mxu0 0.0
    %2153 = vmatprep.subr.mxu0 0.0
    %2154 = vmatpush1.msra.mxu0 0.0
    %2155 = vmatprep.subr.mxu0 0.0
    %2156 = vmatpush1.msra.mxu0 0.0
    %2157 = vmatprep.subr.mxu0 0.0
    %2158 = vmatpush1.msra.mxu0 0.0
    %2159 = vmatprep.subr.mxu0 0.0
    %2160 = vmatpush1.msra.mxu0 0.0
    %2161 = vmatprep.subr.mxu0 0.0
    %2162 = vmatpush1.msra.mxu0 0.0
    %2163 = vmatprep.subr.mxu0 0.0
    %2164 = vmatpush1.msra.mxu0 0.0
    %2165 = vmatprep.subr.mxu0 0.0
    %2166 = vmatpush1.msra.mxu0 0.0
    %2167 = vmatprep.subr.mxu0 0.0
    %2168 = vmatpush1.msra.mxu0 0.0
    %2169 = vmatprep.subr.mxu0 0.0
    %2170 = vmatpush1.msra.mxu0 0.0
    %2171 = vmatprep.subr.mxu0 0.0
    %2172 = vmatpush1.msra.mxu0 0.0
    %2173 = vmatprep.subr.mxu0 0.0
    %2174 = vmatpush1.msra.mxu0 0.0
    %2175 = vmatprep.subr.mxu0 0.0
    %2176 = vmatpush1.msra.mxu0 0.0
    %2177 = vmatprep.subr.mxu0 0.0
    %2178 = vmatpush1.msra.mxu0 0.0
    %2179 = vmatprep.subr.mxu0 0.0
    %2180 = vmatpush1.msra.mxu0 0.0
    %2181 = vmatprep.subr.mxu0 0.0
    %2182 = vmatpush1.msra.mxu0 0.0
    %2183 = vmatprep.subr.mxu0 0.0
    %2184 = vmatpush1.msra.mxu0 0.0
    %2185 = vmatprep.subr.mxu0 0.0
    %2186 = vmatpush1.msra.mxu0 0.0
    %2187 = vmatprep.subr.mxu0 0.0
    %2188 = vmatpush1.msra.mxu0 0.0
    %2189 = vmatprep.subr.mxu0 0.0
    %2190 = vmatpush1.msra.mxu0 0.0
    %2191 = vmatprep.subr.mxu0 0.0
    %2192 = vmatpush1.msra.mxu0 0.0
    %2193 = vmatprep.subr.mxu0 0.0
    %2194 = vmatpush1.msra.mxu0 0.0
    %2195 = vmatprep.subr.mxu0 0.0
    %2196 = vmatpush1.msra.mxu0 0.0
    %2197 = vmatprep.subr.mxu0 0.0
    %2198 = vmatpush1.msra.mxu0 0.0
    %2199 = vmatprep.subr.mxu0 0.0
    %2200 = vmatpush1.msra.mxu0 0.0
    %2201 = vmatprep.subr.mxu0 0.0
    %2202 = vmatpush1.msra.mxu0 0.0
    %2203 = vmatprep.mubr.f32.mxu0 0.0
    %2204 = vmatmul.mubr.f32.gmra.mrb[0].mxu0 %v1924
    %v2205 = vpop.f32.mrb[0].mxu0
    %v2206 = vadd.f32 0.0, %v2205
    %v2207 = vpop.f32.mrb[0].mxu0
    %v2208 = vadd.f32 0.0, %v2207
    %2209 = vdwg.mxu0
    %2210 = vmatprep.subr.mxu0 %v1795
    %2211 = vmatpush1.msra.mxu0 %v1794
    %2212 = vmatprep.subr.mxu0 0.0
    %2213 = vmatpush1.msra.mxu0 0.0
    %2214 = vmatprep.subr.mxu0 0.0
    %2215 = vmatpush1.msra.mxu0 0.0
    %2216 = vmatprep.subr.mxu0 0.0
    %2217 = vmatpush1.msra.mxu0 0.0
    %2218 = vmatprep.subr.mxu0 0.0
    %2219 = vmatpush1.msra.mxu0 0.0
    %2220 = vmatprep.subr.mxu0 0.0
    %2221 = vmatpush1.msra.mxu0 0.0
    %2222 = vmatprep.subr.mxu0 0.0
    %2223 = vmatpush1.msra.mxu0 0.0
    %2224 = vmatprep.subr.mxu0 0.0
    %2225 = vmatpush1.msra.mxu0 0.0
    %2226 = vmatprep.subr.mxu0 0.0
    %2227 = vmatpush1.msra.mxu0 0.0
    %2228 = vmatprep.subr.mxu0 0.0
    %2229 = vmatpush1.msra.mxu0 0.0
    %2230 = vmatprep.subr.mxu0 0.0
    %2231 = vmatpush1.msra.mxu0 0.0
    %2232 = vmatprep.subr.mxu0 0.0
    %2233 = vmatpush1.msra.mxu0 0.0
    %2234 = vmatprep.subr.mxu0 0.0
    %2235 = vmatpush1.msra.mxu0 0.0
    %2236 = vmatprep.subr.mxu0 0.0
    %2237 = vmatpush1.msra.mxu0 0.0
    %2238 = vmatprep.subr.mxu0 0.0
    %2239 = vmatpush1.msra.mxu0 0.0
    %2240 = vmatprep.subr.mxu0 0.0
    %2241 = vmatpush1.msra.mxu0 0.0
    %2242 = vmatprep.subr.mxu0 0.0
    %2243 = vmatpush1.msra.mxu0 0.0
    %2244 = vmatprep.subr.mxu0 0.0
    %2245 = vmatpush1.msra.mxu0 0.0
    %2246 = vmatprep.subr.mxu0 0.0
    %2247 = vmatpush1.msra.mxu0 0.0
    %2248 = vmatprep.subr.mxu0 0.0
    %2249 = vmatpush1.msra.mxu0 0.0
    %2250 = vmatprep.subr.mxu0 0.0
    %2251 = vmatpush1.msra.mxu0 0.0
    %2252 = vmatprep.subr.mxu0 0.0
    %2253 = vmatpush1.msra.mxu0 0.0
    %2254 = vmatprep.subr.mxu0 0.0
    %2255 = vmatpush1.msra.mxu0 0.0
    %2256 = vmatprep.subr.mxu0 0.0
    %2257 = vmatpush1.msra.mxu0 0.0
    %2258 = vmatprep.subr.mxu0 0.0
    %2259 = vmatpush1.msra.mxu0 0.0
    %2260 = vmatprep.subr.mxu0 0.0
    %2261 = vmatpush1.msra.mxu0 0.0
    %2262 = vmatprep.subr.mxu0 0.0
    %2263 = vmatpush1.msra.mxu0 0.0
    %2264 = vmatprep.subr.mxu0 0.0
    %2265 = vmatpush1.msra.mxu0 0.0
    %2266 = vmatprep.subr.mxu0 0.0
    %2267 = vmatpush1.msra.mxu0 0.0
    %2268 = vmatprep.subr.mxu0 0.0
    %2269 = vmatpush1.msra.mxu0 0.0
    %2270 = vmatprep.subr.mxu0 0.0
    %2271 = vmatpush1.msra.mxu0 0.0
    %2272 = vmatprep.subr.mxu0 0.0
    %2273 = vmatpush1.msra.mxu0 0.0
    %2274 = vmatprep.mubr.f32.mxu0 0.0
    %2275 = vmatmul.mubr.f32.gmra.mrb[0].mxu0 %v1924
    %v2276 = vpop.f32.mrb[0].mxu0
    %v2277 = vadd.f32 0.0, %v2276
    %v2278 = vpop.f32.mrb[0].mxu0
    %v2279 = vadd.f32 0.0, %v2278
    %2280 = vdwg.mxu0
    %2281 = vmatprep.subr.mxu0 %v1797
    %2282 = vmatpush1.msra.mxu0 %v1796
    %2283 = vmatprep.subr.mxu0 0.0
    %2284 = vmatpush1.msra.mxu0 0.0
    %2285 = vmatprep.subr.mxu0 0.0
    %2286 = vmatpush1.msra.mxu0 0.0
    %2287 = vmatprep.subr.mxu0 0.0
    %2288 = vmatpush1.msra.mxu0 0.0
    %2289 = vmatprep.subr.mxu0 0.0
    %2290 = vmatpush1.msra.mxu0 0.0
    %2291 = vmatprep.subr.mxu0 0.0
    %2292 = vmatpush1.msra.mxu0 0.0
    %2293 = vmatprep.subr.mxu0 0.0
    %2294 = vmatpush1.msra.mxu0 0.0
    %2295 = vmatprep.subr.mxu0 0.0
    %2296 = vmatpush1.msra.mxu0 0.0
    %2297 = vmatprep.subr.mxu0 0.0
    %2298 = vmatpush1.msra.mxu0 0.0
    %2299 = vmatprep.subr.mxu0 0.0
    %2300 = vmatpush1.msra.mxu0 0.0
    %2301 = vmatprep.subr.mxu0 0.0
    %2302 = vmatpush1.msra.mxu0 0.0
    %2303 = vmatprep.subr.mxu0 0.0
    %2304 = vmatpush1.msra.mxu0 0.0
    %2305 = vmatprep.subr.mxu0 0.0
    %2306 = vmatpush1.msra.mxu0 0.0
    %2307 = vmatprep.subr.mxu0 0.0
    %2308 = vmatpush1.msra.mxu0 0.0
    %2309 = vmatprep.subr.mxu0 0.0
    %2310 = vmatpush1.msra.mxu0 0.0
    %2311 = vmatprep.subr.mxu0 0.0
    %2312 = vmatpush1.msra.mxu0 0.0
    %2313 = vmatprep.subr.mxu0 0.0
    %2314 = vmatpush1.msra.mxu0 0.0
    %2315 = vmatprep.subr.mxu0 0.0
    %2316 = vmatpush1.msra.mxu0 0.0
    %2317 = vmatprep.subr.mxu0 0.0
    %2318 = vmatpush1.msra.mxu0 0.0
    %2319 = vmatprep.subr.mxu0 0.0
    %2320 = vmatpush1.msra.mxu0 0.0
    %2321 = vmatprep.subr.mxu0 0.0
    %2322 = vmatpush1.msra.mxu0 0.0
    %2323 = vmatprep.subr.mxu0 0.0
    %2324 = vmatpush1.msra.mxu0 0.0
    %2325 = vmatprep.subr.mxu0 0.0
    %2326 = vmatpush1.msra.mxu0 0.0
    %2327 = vmatprep.subr.mxu0 0.0
    %2328 = vmatpush1.msra.mxu0 0.0
    %2329 = vmatprep.subr.mxu0 0.0
    %2330 = vmatpush1.msra.mxu0 0.0
    %2331 = vmatprep.subr.mxu0 0.0
    %2332 = vmatpush1.msra.mxu0 0.0
    %2333 = vmatprep.subr.mxu0 0.0
    %2334 = vmatpush1.msra.mxu0 0.0
    %2335 = vmatprep.subr.mxu0 0.0
    %2336 = vmatpush1.msra.mxu0 0.0
    %2337 = vmatprep.subr.mxu0 0.0
    %2338 = vmatpush1.msra.mxu0 0.0
    %2339 = vmatprep.subr.mxu0 0.0
    %2340 = vmatpush1.msra.mxu0 0.0
    %2341 = vmatprep.subr.mxu0 0.0
    %2342 = vmatpush1.msra.mxu0 0.0
    %2343 = vmatprep.subr.mxu0 0.0
    %2344 = vmatpush1.msra.mxu0 0.0
    %2345 = vmatprep.mubr.f32.mxu0 0.0
    %2346 = vmatmul.mubr.f32.gmra.mrb[0].mxu0 %v1924
    %v2347 = vpop.f32.mrb[0].mxu0
    %v2348 = vadd.f32 0.0, %v2347
    %v2349 = vpop.f32.mrb[0].mxu0
    %v2350 = vadd.f32 0.0, %v2349
    %2351 = vdwg.mxu0
    %v2353 = vsel %vm1922, %v102, 0
    %2355 = vmatprep.subr.mxu0 %v1887
    %2356 = vmatpush1.msra.mxu0 %v1886
    %2357 = vmatprep.subr.mxu0 0.0
    %2358 = vmatpush1.msra.mxu0 0.0
    %2359 = vmatprep.subr.mxu0 0.0
    %2360 = vmatpush1.msra.mxu0 0.0
    %2361 = vmatprep.subr.mxu0 0.0
    %2362 = vmatpush1.msra.mxu0 0.0
    %2363 = vmatprep.subr.mxu0 0.0
    %2364 = vmatpush1.msra.mxu0 0.0
    %2365 = vmatprep.subr.mxu0 0.0
    %2366 = vmatpush1.msra.mxu0 0.0
    %2367 = vmatprep.subr.mxu0 0.0
    %2368 = vmatpush1.msra.mxu0 0.0
    %2369 = vmatprep.subr.mxu0 0.0
    %2370 = vmatpush1.msra.mxu0 0.0
    %2371 = vmatprep.subr.mxu0 0.0
    %2372 = vmatpush1.msra.mxu0 0.0
    %2373 = vmatprep.subr.mxu0 0.0
    %2374 = vmatpush1.msra.mxu0 0.0
    %2375 = vmatprep.subr.mxu0 0.0
    %2376 = vmatpush1.msra.mxu0 0.0
    %2377 = vmatprep.subr.mxu0 0.0
    %2378 = vmatpush1.msra.mxu0 0.0
    %2379 = vmatprep.subr.mxu0 0.0
    %2380 = vmatpush1.msra.mxu0 0.0
    %2381 = vmatprep.subr.mxu0 0.0
    %2382 = vmatpush1.msra.mxu0 0.0
    %2383 = vmatprep.subr.mxu0 0.0
    %2384 = vmatpush1.msra.mxu0 0.0
    %2385 = vmatprep.subr.mxu0 0.0
    %2386 = vmatpush1.msra.mxu0 0.0
    %2387 = vmatprep.subr.mxu0 0.0
    %2388 = vmatpush1.msra.mxu0 0.0
    %2389 = vmatprep.subr.mxu0 0.0
    %2390 = vmatpush1.msra.mxu0 0.0
    %2391 = vmatprep.subr.mxu0 0.0
    %2392 = vmatpush1.msra.mxu0 0.0
    %2393 = vmatprep.subr.mxu0 0.0
    %2394 = vmatpush1.msra.mxu0 0.0
    %2395 = vmatprep.subr.mxu0 0.0
    %2396 = vmatpush1.msra.mxu0 0.0
    %2397 = vmatprep.subr.mxu0 0.0
    %2398 = vmatpush1.msra.mxu0 0.0
    %2399 = vmatprep.subr.mxu0 0.0
    %2400 = vmatpush1.msra.mxu0 0.0
    %2401 = vmatprep.subr.mxu0 0.0
    %2402 = vmatpush1.msra.mxu0 0.0
    %2403 = vmatprep.subr.mxu0 0.0
    %2404 = vmatpush1.msra.mxu0 0.0
    %2405 = vmatprep.subr.mxu0 0.0
    %2406 = vmatpush1.msra.mxu0 0.0
    %2407 = vmatprep.subr.mxu0 0.0
    %2408 = vmatpush1.msra.mxu0 0.0
    %2409 = vmatprep.subr.mxu0 0.0
    %2410 = vmatpush1.msra.mxu0 0.0
    %2411 = vmatprep.subr.mxu0 0.0
    %2412 = vmatpush1.msra.mxu0 0.0
    %2413 = vmatprep.subr.mxu0 0.0
    %2414 = vmatpush1.msra.mxu0 0.0
    %2415 = vmatprep.subr.mxu0 0.0
    %2416 = vmatpush1.msra.mxu0 0.0
    %2417 = vmatprep.subr.mxu0 0.0
    %2418 = vmatpush1.msra.mxu0 0.0
    %2419 = vmatprep.mubr.f32.mxu0 0.0
    %2420 = vmatmul.mubr.f32.gmra.mrb[0].mxu0 %v2353
    %v2421 = vpop.f32.mrb[0].mxu0
    %v2422 = vadd.f32 0.0, %v2421
    %v2423 = vpop.f32.mrb[0].mxu0
    %v2424 = vadd.f32 0.0, %v2423
    %2425 = vdwg.mxu0
    %2426 = vmatprep.subr.mxu0 %v1889
    %2427 = vmatpush1.msra.mxu0 %v1888
    %2428 = vmatprep.subr.mxu0 0.0
    %2429 = vmatpush1.msra.mxu0 0.0
    %2430 = vmatprep.subr.mxu0 0.0
    %2431 = vmatpush1.msra.mxu0 0.0
    %2432 = vmatprep.subr.mxu0 0.0
    %2433 = vmatpush1.msra.mxu0 0.0
    %2434 = vmatprep.subr.mxu0 0.0
    %2435 = vmatpush1.msra.mxu0 0.0
    %2436 = vmatprep.subr.mxu0 0.0
    %2437 = vmatpush1.msra.mxu0 0.0
    %2438 = vmatprep.subr.mxu0 0.0
    %2439 = vmatpush1.msra.mxu0 0.0
    %2440 = vmatprep.subr.mxu0 0.0
    %2441 = vmatpush1.msra.mxu0 0.0
    %2442 = vmatprep.subr.mxu0 0.0
    %2443 = vmatpush1.msra.mxu0 0.0
    %2444 = vmatprep.subr.mxu0 0.0
    %2445 = vmatpush1.msra.mxu0 0.0
    %2446 = vmatprep.subr.mxu0 0.0
    %2447 = vmatpush1.msra.mxu0 0.0
    %2448 = vmatprep.subr.mxu0 0.0
    %2449 = vmatpush1.msra.mxu0 0.0
    %2450 = vmatprep.subr.mxu0 0.0
    %2451 = vmatpush1.msra.mxu0 0.0
    %2452 = vmatprep.subr.mxu0 0.0
    %2453 = vmatpush1.msra.mxu0 0.0
    %2454 = vmatprep.subr.mxu0 0.0
    %2455 = vmatpush1.msra.mxu0 0.0
    %2456 = vmatprep.subr.mxu0 0.0
    %2457 = vmatpush1.msra.mxu0 0.0
    %2458 = vmatprep.subr.mxu0 0.0
    %2459 = vmatpush1.msra.mxu0 0.0
    %2460 = vmatprep.subr.mxu0 0.0
    %2461 = vmatpush1.msra.mxu0 0.0
    %2462 = vmatprep.subr.mxu0 0.0
    %2463 = vmatpush1.msra.mxu0 0.0
    %2464 = vmatprep.subr.mxu0 0.0
    %2465 = vmatpush1.msra.mxu0 0.0
    %2466 = vmatprep.subr.mxu0 0.0
    %2467 = vmatpush1.msra.mxu0 0.0
    %2468 = vmatprep.subr.mxu0 0.0
    %2469 = vmatpush1.msra.mxu0 0.0
    %2470 = vmatprep.subr.mxu0 0.0
    %2471 = vmatpush1.msra.mxu0 0.0
    %2472 = vmatprep.subr.mxu0 0.0
    %2473 = vmatpush1.msra.mxu0 0.0
    %2474 = vmatprep.subr.mxu0 0.0
    %2475 = vmatpush1.msra.mxu0 0.0
    %2476 = vmatprep.subr.mxu0 0.0
    %2477 = vmatpush1.msra.mxu0 0.0
    %2478 = vmatprep.subr.mxu0 0.0
    %2479 = vmatpush1.msra.mxu0 0.0
    %2480 = vmatprep.subr.mxu0 0.0
    %2481 = vmatpush1.msra.mxu0 0.0
    %2482 = vmatprep.subr.mxu0 0.0
    %2483 = vmatpush1.msra.mxu0 0.0
    %2484 = vmatprep.subr.mxu0 0.0
    %2485 = vmatpush1.msra.mxu0 0.0
    %2486 = vmatprep.subr.mxu0 0.0
    %2487 = vmatpush1.msra.mxu0 0.0
    %2488 = vmatprep.subr.mxu0 0.0
    %2489 = vmatpush1.msra.mxu0 0.0
    %2490 = vmatprep.mubr.f32.mxu0 0.0
    %2491 = vmatmul.mubr.f32.gmra.mrb[0].mxu0 %v2353
    %v2492 = vpop.f32.mrb[0].mxu0
    %v2493 = vadd.f32 0.0, %v2492
    %v2494 = vpop.f32.mrb[0].mxu0
    %v2495 = vadd.f32 0.0, %v2494
    %2496 = vdwg.mxu0
    %v2497 = vadd.f32 %v1993, %v2422
    %v2498 = vadd.f32 %v1995, %v2424
    %v2499 = vadd.f32 %v2064, %v2493
    %v2500 = vadd.f32 %v2066, %v2495
    %2501 = vmatprep.subr.mxu0 %v1903
    %2502 = vmatpush1.msra.mxu0 %v1902
    %2503 = vmatprep.subr.mxu0 0.0
    %2504 = vmatpush1.msra.mxu0 0.0
    %2505 = vmatprep.subr.mxu0 0.0
    %2506 = vmatpush1.msra.mxu0 0.0
    %2507 = vmatprep.subr.mxu0 0.0
    %2508 = vmatpush1.msra.mxu0 0.0
    %2509 = vmatprep.subr.mxu0 0.0
    %2510 = vmatpush1.msra.mxu0 0.0
    %2511 = vmatprep.subr.mxu0 0.0
    %2512 = vmatpush1.msra.mxu0 0.0
    %2513 = vmatprep.subr.mxu0 0.0
    %2514 = vmatpush1.msra.mxu0 0.0
    %2515 = vmatprep.subr.mxu0 0.0
    %2516 = vmatpush1.msra.mxu0 0.0
    %2517 = vmatprep.subr.mxu0 0.0
    %2518 = vmatpush1.msra.mxu0 0.0
    %2519 = vmatprep.subr.mxu0 0.0
    %2520 = vmatpush1.msra.mxu0 0.0
    %2521 = vmatprep.subr.mxu0 0.0
    %2522 = vmatpush1.msra.mxu0 0.0
    %2523 = vmatprep.subr.mxu0 0.0
    %2524 = vmatpush1.msra.mxu0 0.0
    %2525 = vmatprep.subr.mxu0 0.0
    %2526 = vmatpush1.msra.mxu0 0.0
    %2527 = vmatprep.subr.mxu0 0.0
    %2528 = vmatpush1.msra.mxu0 0.0
    %2529 = vmatprep.subr.mxu0 0.0
    %2530 = vmatpush1.msra.mxu0 0.0
    %2531 = vmatprep.subr.mxu0 0.0
    %2532 = vmatpush1.msra.mxu0 0.0
    %2533 = vmatprep.subr.mxu0 0.0
    %2534 = vmatpush1.msra.mxu0 0.0
    %2535 = vmatprep.subr.mxu0 0.0
    %2536 = vmatpush1.msra.mxu0 0.0
    %2537 = vmatprep.subr.mxu0 0.0
    %2538 = vmatpush1.msra.mxu0 0.0
    %2539 = vmatprep.subr.mxu0 0.0
    %2540 = vmatpush1.msra.mxu0 0.0
    %2541 = vmatprep.subr.mxu0 0.0
    %2542 = vmatpush1.msra.mxu0 0.0
    %2543 = vmatprep.subr.mxu0 0.0
    %2544 = vmatpush1.msra.mxu0 0.0
    %2545 = vmatprep.subr.mxu0 0.0
    %2546 = vmatpush1.msra.mxu0 0.0
    %2547 = vmatprep.subr.mxu0 0.0
    %2548 = vmatpush1.msra.mxu0 0.0
    %2549 = vmatprep.subr.mxu0 0.0
    %2550 = vmatpush1.msra.mxu0 0.0
    %2551 = vmatprep.subr.mxu0 0.0
    %2552 = vmatpush1.msra.mxu0 0.0
    %2553 = vmatprep.subr.mxu0 0.0
    %2554 = vmatpush1.msra.mxu0 0.0
    %2555 = vmatprep.subr.mxu0 0.0
    %2556 = vmatpush1.msra.mxu0 0.0
    %2557 = vmatprep.subr.mxu0 0.0
    %2558 = vmatpush1.msra.mxu0 0.0
    %2559 = vmatprep.subr.mxu0 0.0
    %2560 = vmatpush1.msra.mxu0 0.0
    %2561 = vmatprep.subr.mxu0 0.0
    %2562 = vmatpush1.msra.mxu0 0.0
    %2563 = vmatprep.subr.mxu0 0.0
    %2564 = vmatpush1.msra.mxu0 0.0
    %2565 = vmatprep.mubr.f32.mxu0 0.0
    %2566 = vmatmul.mubr.f32.gmra.mrb[0].mxu0 %v2353
    %v2567 = vpop.f32.mrb[0].mxu0
    %v2568 = vadd.f32 0.0, %v2567
    %v2569 = vpop.f32.mrb[0].mxu0
    %v2570 = vadd.f32 0.0, %v2569
    %2571 = vdwg.mxu0
    %2572 = vmatprep.subr.mxu0 %v1905
    %2573 = vmatpush1.msra.mxu0 %v1904
    %2574 = vmatprep.subr.mxu0 0.0
    %2575 = vmatpush1.msra.mxu0 0.0
    %2576 = vmatprep.subr.mxu0 0.0
    %2577 = vmatpush1.msra.mxu0 0.0
    %2578 = vmatprep.subr.mxu0 0.0
    %2579 = vmatpush1.msra.mxu0 0.0
    %2580 = vmatprep.subr.mxu0 0.0
    %2581 = vmatpush1.msra.mxu0 0.0
    %2582 = vmatprep.subr.mxu0 0.0
    %2583 = vmatpush1.msra.mxu0 0.0
    %2584 = vmatprep.subr.mxu0 0.0
    %2585 = vmatpush1.msra.mxu0 0.0
    %2586 = vmatprep.subr.mxu0 0.0
    %2587 = vmatpush1.msra.mxu0 0.0
    %2588 = vmatprep.subr.mxu0 0.0
    %2589 = vmatpush1.msra.mxu0 0.0
    %2590 = vmatprep.subr.mxu0 0.0
    %2591 = vmatpush1.msra.mxu0 0.0
    %2592 = vmatprep.subr.mxu0 0.0
    %2593 = vmatpush1.msra.mxu0 0.0
    %2594 = vmatprep.subr.mxu0 0.0
    %2595 = vmatpush1.msra.mxu0 0.0
    %2596 = vmatprep.subr.mxu0 0.0
    %2597 = vmatpush1.msra.mxu0 0.0
    %2598 = vmatprep.subr.mxu0 0.0
    %2599 = vmatpush1.msra.mxu0 0.0
    %2600 = vmatprep.subr.mxu0 0.0
    %2601 = vmatpush1.msra.mxu0 0.0
    %2602 = vmatprep.subr.mxu0 0.0
    %2603 = vmatpush1.msra.mxu0 0.0
    %2604 = vmatprep.subr.mxu0 0.0
    %2605 = vmatpush1.msra.mxu0 0.0
    %2606 = vmatprep.subr.mxu0 0.0
    %2607 = vmatpush1.msra.mxu0 0.0
    %2608 = vmatprep.subr.mxu0 0.0
    %2609 = vmatpush1.msra.mxu0 0.0
    %2610 = vmatprep.subr.mxu0 0.0
    %2611 = vmatpush1.msra.mxu0 0.0
    %2612 = vmatprep.subr.mxu0 0.0
    %2613 = vmatpush1.msra.mxu0 0.0
    %2614 = vmatprep.subr.mxu0 0.0
    %2615 = vmatpush1.msra.mxu0 0.0
    %2616 = vmatprep.subr.mxu0 0.0
    %2617 = vmatpush1.msra.mxu0 0.0
    %2618 = vmatprep.subr.mxu0 0.0
    %2619 = vmatpush1.msra.mxu0 0.0
    %2620 = vmatprep.subr.mxu0 0.0
    %2621 = vmatpush1.msra.mxu0 0.0
    %2622 = vmatprep.subr.mxu0 0.0
    %2623 = vmatpush1.msra.mxu0 0.0
    %2624 = vmatprep.subr.mxu0 0.0
    %2625 = vmatpush1.msra.mxu0 0.0
    %2626 = vmatprep.subr.mxu0 0.0
    %2627 = vmatpush1.msra.mxu0 0.0
    %2628 = vmatprep.subr.mxu0 0.0
    %2629 = vmatpush1.msra.mxu0 0.0
    %2630 = vmatprep.subr.mxu0 0.0
    %2631 = vmatpush1.msra.mxu0 0.0
    %2632 = vmatprep.subr.mxu0 0.0
    %2633 = vmatpush1.msra.mxu0 0.0
    %2634 = vmatprep.subr.mxu0 0.0
    %2635 = vmatpush1.msra.mxu0 0.0
    %2636 = vmatprep.mubr.f32.mxu0 0.0
    %2637 = vmatmul.mubr.f32.gmra.mrb[0].mxu0 %v2353
    %v2638 = vpop.f32.mrb[0].mxu0
    %v2639 = vadd.f32 0.0, %v2638
    %v2640 = vpop.f32.mrb[0].mxu0
    %v2641 = vadd.f32 0.0, %v2640
    %2642 = vdwg.mxu0
    %v2643 = vadd.f32 %v2135, %v2568
    %v2644 = vadd.f32 %v2137, %v2570
    %v2645 = vadd.f32 %v2206, %v2639
    %v2646 = vadd.f32 %v2208, %v2641
    %2647 = vmatprep.subr.mxu0 %v1919
    %2648 = vmatpush1.msra.mxu0 %v1918
    %2649 = vmatprep.subr.mxu0 0.0
    %2650 = vmatpush1.msra.mxu0 0.0
    %2651 = vmatprep.subr.mxu0 0.0
    %2652 = vmatpush1.msra.mxu0 0.0
    %2653 = vmatprep.subr.mxu0 0.0
    %2654 = vmatpush1.msra.mxu0 0.0
    %2655 = vmatprep.subr.mxu0 0.0
    %2656 = vmatpush1.msra.mxu0 0.0
    %2657 = vmatprep.subr.mxu0 0.0
    %2658 = vmatpush1.msra.mxu0 0.0
    %2659 = vmatprep.subr.mxu0 0.0
    %2660 = vmatpush1.msra.mxu0 0.0
    %2661 = vmatprep.subr.mxu0 0.0
    %2662 = vmatpush1.msra.mxu0 0.0
    %2663 = vmatprep.subr.mxu0 0.0
    %2664 = vmatpush1.msra.mxu0 0.0
    %2665 = vmatprep.subr.mxu0 0.0
    %2666 = vmatpush1.msra.mxu0 0.0
    %2667 = vmatprep.subr.mxu0 0.0
    %2668 = vmatpush1.msra.mxu0 0.0
    %2669 = vmatprep.subr.mxu0 0.0
    %2670 = vmatpush1.msra.mxu0 0.0
    %2671 = vmatprep.subr.mxu0 0.0
    %2672 = vmatpush1.msra.mxu0 0.0
    %2673 = vmatprep.subr.mxu0 0.0
    %2674 = vmatpush1.msra.mxu0 0.0
    %2675 = vmatprep.subr.mxu0 0.0
    %2676 = vmatpush1.msra.mxu0 0.0
    %2677 = vmatprep.subr.mxu0 0.0
    %2678 = vmatpush1.msra.mxu0 0.0
    %2679 = vmatprep.subr.mxu0 0.0
    %2680 = vmatpush1.msra.mxu0 0.0
    %2681 = vmatprep.subr.mxu0 0.0
    %2682 = vmatpush1.msra.mxu0 0.0
    %2683 = vmatprep.subr.mxu0 0.0
    %2684 = vmatpush1.msra.mxu0 0.0
    %2685 = vmatprep.subr.mxu0 0.0
    %2686 = vmatpush1.msra.mxu0 0.0
    %2687 = vmatprep.subr.mxu0 0.0
    %2688 = vmatpush1.msra.mxu0 0.0
    %2689 = vmatprep.subr.mxu0 0.0
    %2690 = vmatpush1.msra.mxu0 0.0
    %2691 = vmatprep.subr.mxu0 0.0
    %2692 = vmatpush1.msra.mxu0 0.0
    %2693 = vmatprep.subr.mxu0 0.0
    %2694 = vmatpush1.msra.mxu0 0.0
    %2695 = vmatprep.subr.mxu0 0.0
    %2696 = vmatpush1.msra.mxu0 0.0
    %2697 = vmatprep.subr.mxu0 0.0
    %2698 = vmatpush1.msra.mxu0 0.0
    %2699 = vmatprep.subr.mxu0 0.0
    %2700 = vmatpush1.msra.mxu0 0.0
    %2701 = vmatprep.subr.mxu0 0.0
    %2702 = vmatpush1.msra.mxu0 0.0
    %2703 = vmatprep.subr.mxu0 0.0
    %2704 = vmatpush1.msra.mxu0 0.0
    %2705 = vmatprep.subr.mxu0 0.0
    %2706 = vmatpush1.msra.mxu0 0.0
    %2707 = vmatprep.subr.mxu0 0.0
    %2708 = vmatpush1.msra.mxu0 0.0
    %2709 = vmatprep.subr.mxu0 0.0
    %2710 = vmatpush1.msra.mxu0 0.0
    %2711 = vmatprep.mubr.f32.mxu0 0.0
    %2712 = vmatmul.mubr.f32.gmra.mrb[0].mxu0 %v2353
    %v2713 = vpop.f32.mrb[0].mxu0
    %v2714 = vadd.f32 0.0, %v2713
    %v2715 = vpop.f32.mrb[0].mxu0
    %v2716 = vadd.f32 0.0, %v2715
    %2717 = vdwg.mxu0
    %2718 = vmatprep.subr.mxu0 %v1921
    %2719 = vmatpush1.msra.mxu0 %v1920
    %2720 = vmatprep.subr.mxu0 0.0
    %2721 = vmatpush1.msra.mxu0 0.0
    %2722 = vmatprep.subr.mxu0 0.0
    %2723 = vmatpush1.msra.mxu0 0.0
    %2724 = vmatprep.subr.mxu0 0.0
    %2725 = vmatpush1.msra.mxu0 0.0
    %2726 = vmatprep.subr.mxu0 0.0
    %2727 = vmatpush1.msra.mxu0 0.0
    %2728 = vmatprep.subr.mxu0 0.0
    %2729 = vmatpush1.msra.mxu0 0.0
    %2730 = vmatprep.subr.mxu0 0.0
    %2731 = vmatpush1.msra.mxu0 0.0
    %2732 = vmatprep.subr.mxu0 0.0
    %2733 = vmatpush1.msra.mxu0 0.0
    %2734 = vmatprep.subr.mxu0 0.0
    %2735 = vmatpush1.msra.mxu0 0.0
    %2736 = vmatprep.subr.mxu0 0.0
    %2737 = vmatpush1.msra.mxu0 0.0
    %2738 = vmatprep.subr.mxu0 0.0
    %2739 = vmatpush1.msra.mxu0 0.0
    %2740 = vmatprep.subr.mxu0 0.0
    %2741 = vmatpush1.msra.mxu0 0.0
    %2742 = vmatprep.subr.mxu0 0.0
    %2743 = vmatpush1.msra.mxu0 0.0
    %2744 = vmatprep.subr.mxu0 0.0
    %2745 = vmatpush1.msra.mxu0 0.0
    %2746 = vmatprep.subr.mxu0 0.0
    %2747 = vmatpush1.msra.mxu0 0.0
    %2748 = vmatprep.subr.mxu0 0.0
    %2749 = vmatpush1.msra.mxu0 0.0
    %2750 = vmatprep.subr.mxu0 0.0
    %2751 = vmatpush1.msra.mxu0 0.0
    %2752 = vmatprep.subr.mxu0 0.0
    %2753 = vmatpush1.msra.mxu0 0.0
    %2754 = vmatprep.subr.mxu0 0.0
    %2755 = vmatpush1.msra.mxu0 0.0
    %2756 = vmatprep.subr.mxu0 0.0
    %2757 = vmatpush1.msra.mxu0 0.0
    %2758 = vmatprep.subr.mxu0 0.0
    %2759 = vmatpush1.msra.mxu0 0.0
    %2760 = vmatprep.subr.mxu0 0.0
    %2761 = vmatpush1.msra.mxu0 0.0
    %2762 = vmatprep.subr.mxu0 0.0
    %2763 = vmatpush1.msra.mxu0 0.0
    %2764 = vmatprep.subr.mxu0 0.0
    %2765 = vmatpush1.msra.mxu0 0.0
    %2766 = vmatprep.subr.mxu0 0.0
    %2767 = vmatpush1.msra.mxu0 0.0
    %2768 = vmatprep.subr.mxu0 0.0
    %2769 = vmatpush1.msra.mxu0 0.0
    %2770 = vmatprep.subr.mxu0 0.0
    %2771 = vmatpush1.msra.mxu0 0.0
    %2772 = vmatprep.subr.mxu0 0.0
    %2773 = vmatpush1.msra.mxu0 0.0
    %2774 = vmatprep.subr.mxu0 0.0
    %2775 = vmatpush1.msra.mxu0 0.0
    %2776 = vmatprep.subr.mxu0 0.0
    %2777 = vmatpush1.msra.mxu0 0.0
    %2778 = vmatprep.subr.mxu0 0.0
    %2779 = vmatpush1.msra.mxu0 0.0
    %2780 = vmatprep.subr.mxu0 0.0
    %2781 = vmatpush1.msra.mxu0 0.0
    %2782 = vmatprep.mubr.f32.mxu0 0.0
    %2783 = vmatmul.mubr.f32.gmra.mrb[0].mxu0 %v2353
    %v2784 = vpop.f32.mrb[0].mxu0
    %v2785 = vadd.f32 0.0, %v2784
    %v2786 = vpop.f32.mrb[0].mxu0
    %v2787 = vadd.f32 0.0, %v2786
    %2788 = vdwg.mxu0
    %v2789 = vadd.f32 %v2277, %v2714
    %v2790 = vadd.f32 %v2279, %v2716
    %v2791 = vadd.f32 %v2348, %v2785
    %v2792 = vadd.f32 %v2350, %v2787
    %v2793 = vmul.f32 %v2497, %v2497
    %v2794 = vmul.f32 %v2498, %v2498
    %v2795 = vmul.f32 %v2499, %v2499
    %v2796 = vmul.f32 %v2500, %v2500
    %v2797 = vmul.f32 %v2643, %v2643
    %v2798 = vmul.f32 %v2644, %v2644
    %v2799 = vmul.f32 %v2645, %v2645
    %v2800 = vmul.f32 %v2646, %v2646
    %v2801 = vadd.f32 %v2793, %v2797
    %v2802 = vadd.f32 %v2794, %v2798
    %v2803 = vadd.f32 %v2795, %v2799
    %v2804 = vadd.f32 %v2796, %v2800
    %v2805 = vmul.f32 %v2789, %v2789
    %v2806 = vmul.f32 %v2790, %v2790
    %v2807 = vmul.f32 %v2791, %v2791
    %v2808 = vmul.f32 %v2792, %v2792
    %v2809 = vadd.f32 %v2801, %v2805
    %v2810 = vadd.f32 %v2802, %v2806
    %v2811 = vadd.f32 %v2803, %v2807
    %v2812 = vadd.f32 %v2804, %v2808
    %v2813 = vadd.f32 %v2809, 1e-06
    %v2814 = vadd.f32 %v2810, 1e-06
    %v2815 = vadd.f32 %v2811, 1e-06
    %v2816 = vadd.f32 %v2812, 1e-06
    %v2817 = vrsqrt.pop %v2813
    %v2818 = vmul.f32 %v2813, %v2817
    %vm2819 = vcmp.eq.f32.partialorder %v2813, inf
    %v2820 = vsel %vm2819, %v2813, %v2818
    %vm2821 = vcmp.eq.f32.partialorder %v2813, 0.0
    %v2822 = vand.u32 %v2813, 2147483648
    %v2823 = vsel %vm2821, %v2822, %v2820
    %v2824 = vrsqrt.pop %v2814
    %v2825 = vmul.f32 %v2814, %v2824
    %vm2826 = vcmp.eq.f32.partialorder %v2814, inf
    %v2827 = vsel %vm2826, %v2814, %v2825
    %vm2828 = vcmp.eq.f32.partialorder %v2814, 0.0
    %v2829 = vand.u32 %v2814, 2147483648
    %v2830 = vsel %vm2828, %v2829, %v2827
    %v2831 = vrsqrt.pop %v2815
    %v2832 = vmul.f32 %v2815, %v2831
    %vm2833 = vcmp.eq.f32.partialorder %v2815, inf
    %v2834 = vsel %vm2833, %v2815, %v2832
    %vm2835 = vcmp.eq.f32.partialorder %v2815, 0.0
    %v2836 = vand.u32 %v2815, 2147483648
    %v2837 = vsel %vm2835, %v2836, %v2834
    %v2838 = vrsqrt.pop %v2816
    %v2839 = vmul.f32 %v2816, %v2838
    %vm2840 = vcmp.eq.f32.partialorder %v2816, inf
    %v2841 = vsel %vm2840, %v2816, %v2839
    %vm2842 = vcmp.eq.f32.partialorder %v2816, 0.0
    %v2843 = vand.u32 %v2816, 2147483648
    %v2844 = vsel %vm2842, %v2843, %v2841
    %vm2845 = vcmask 1041408
    %v2846 = vsel %vm2845, %v2823, 0.0
    %v2847 = vsel %vm2845, %v2830, 0.0
    %v2848 = vadd.f32 %v2846, %v2847
    %v2849 = vsel %vm2845, %v2837, 0.0
    %v2850 = vadd.f32 %v2848, %v2849
    %v2851 = vsel %vm2845, %v2844, 0.0
    %v2852 = vadd.f32 %v2850, %v2851
    %2853 = vadd.xlane.f32.xlu0 %v2852
    %v2854 = vpop.xlane.xlu0 %2853
    %v2855 = vmul.f32 %v2854, %v1431
    %v2856 = vsub.f32 %v2823, %v2855
    %v2857 = vsub.f32 %v2830, %v2855
    %v2858 = vsub.f32 %v2837, %v2855
    %v2859 = vsub.f32 %v2844, %v2855
    %v2860 = vmul.f32 %v2856, %v2856
    %v2861 = vmul.f32 %v2857, %v2857
    %v2862 = vmul.f32 %v2858, %v2858
    %v2863 = vmul.f32 %v2859, %v2859
    %v2864 = vsel %vm2845, %v2860, 0.0
    %v2865 = vsel %vm2845, %v2861, 0.0
    %v2866 = vadd.f32 %v2864, %v2865
    %v2867 = vsel %vm2845, %v2862, 0.0
    %v2868 = vadd.f32 %v2866, %v2867
    %v2869 = vsel %vm2845, %v2863, 0.0
    %v2870 = vadd.f32 %v2868, %v2869
    %2871 = vadd.xlane.f32.xlu0 %v2870
    %v2872 = vpop.xlane.xlu0 %2871
    %v2873 = vmul.f32 %v2872, %v1431
    %v2874 = vadd.f32 %v2873, 1e-05
    %v2875 = vrsqrt.pop %v2874
    %v2876 = vmul.f32 %v2856, %v2875
    %v2877 = vmul.f32 %v2857, %v2875
    %v2878 = vmul.f32 %v2858, %v2875
    %v2879 = vmul.f32 %v2859, %v2875
    %v2880 = vadd.f32 %v2823, 1e-06
    %v2881 = vadd.f32 %v2830, 1e-06
    %v2882 = vadd.f32 %v2837, 1e-06
    %v2883 = vadd.f32 %v2844, 1e-06
    %v2884 = vrcp.pop %v2880
    %v2885 = vmul.f32 %v2876, %v2884
    %v2886 = vrcp.pop %v2881
    %v2887 = vmul.f32 %v2877, %v2886
    %v2888 = vrcp.pop %v2882
    %v2889 = vmul.f32 %v2878, %v2888
    %v2890 = vrcp.pop %v2883
    %v2891 = vmul.f32 %v2879, %v2890
    %v2892 = vmul.f32 %v2497, %v2885
    %v2893 = vmul.f32 %v2498, %v2887
    %v2894 = vmul.f32 %v2499, %v2889
    %v2895 = vmul.f32 %v2500, %v2891
    %v2896 = vmul.f32 %v2643, %v2885
    %v2897 = vmul.f32 %v2644, %v2887
    %v2898 = vmul.f32 %v2645, %v2889
    %v2899 = vmul.f32 %v2646, %v2891
    %v2900 = vmul.f32 %v2789, %v2885
    %v2901 = vmul.f32 %v2790, %v2887
    %v2902 = vmul.f32 %v2791, %v2889
    %v2903 = vmul.f32 %v2792, %v2891
    %v2908 = vrot.slane %v1993, 2
    %v2909 = vrot.slane %v1995, 2
    %v2910 = vrot.slane %v2064, 2
    %v2911 = vrot.slane %v2066, 2
    %v2916 = vmul.f32 %v2892, %v2908
    %v2917 = vmul.f32 %v2893, %v2909
    %v2918 = vmul.f32 %v2894, %v2910
    %v2919 = vmul.f32 %v2895, %v2911
    %v2924 = vrot.slane %v2135, 2
    %v2925 = vrot.slane %v2137, 2
    %v2926 = vrot.slane %v2206, 2
    %v2927 = vrot.slane %v2208, 2
    %v2932 = vmul.f32 %v2896, %v2924
    %v2933 = vmul.f32 %v2897, %v2925
    %v2934 = vmul.f32 %v2898, %v2926
    %v2935 = vmul.f32 %v2899, %v2927
    %v2936 = vadd.f32 %v2916, %v2932
    %v2937 = vadd.f32 %v2917, %v2933
    %v2938 = vadd.f32 %v2918, %v2934
    %v2939 = vadd.f32 %v2919, %v2935
    %v2944 = vrot.slane %v2277, 2
    %v2945 = vrot.slane %v2279, 2
    %v2946 = vrot.slane %v2348, 2
    %v2947 = vrot.slane %v2350, 2
    %v2952 = vmul.f32 %v2900, %v2944
    %v2953 = vmul.f32 %v2901, %v2945
    %v2954 = vmul.f32 %v2902, %v2946
    %v2955 = vmul.f32 %v2903, %v2947
    %v2956 = vadd.f32 %v2936, %v2952
    %v2957 = vadd.f32 %v2937, %v2953
    %v2958 = vadd.f32 %v2938, %v2954
    %v2959 = vadd.f32 %v2939, %v2955
    %v2960 = vmul.f32 %v1993, %v1993
    %v2961 = vmul.f32 %v1995, %v1995
    %v2962 = vmul.f32 %v2064, %v2064
    %v2963 = vmul.f32 %v2066, %v2066
    %v2964 = vmul.f32 %v2135, %v2135
    %v2965 = vmul.f32 %v2137, %v2137
    %v2966 = vmul.f32 %v2206, %v2206
    %v2967 = vmul.f32 %v2208, %v2208
    %v2968 = vadd.f32 %v2960, %v2964
    %v2969 = vadd.f32 %v2961, %v2965
    %v2970 = vadd.f32 %v2962, %v2966
    %v2971 = vadd.f32 %v2963, %v2967
    %v2972 = vmul.f32 %v2277, %v2277
    %v2973 = vmul.f32 %v2279, %v2279
    %v2974 = vmul.f32 %v2348, %v2348
    %v2975 = vmul.f32 %v2350, %v2350
    %v2976 = vadd.f32 %v2968, %v2972
    %v2977 = vadd.f32 %v2969, %v2973
    %v2978 = vadd.f32 %v2970, %v2974
    %v2979 = vadd.f32 %v2971, %v2975
    %vm2980 = vcmp.ge.f32.partialorder %v2956, 0.0
    %vm2981 = vcmp.ge.f32.partialorder %v2957, 0.0
    %vm2982 = vcmp.ge.f32.partialorder %v2958, 0.0
    %vm2983 = vcmp.ge.f32.partialorder %v2959, 0.0
    %v2984 = vadd.f32 %v2976, 1e-06
    %v2985 = vadd.f32 %v2977, 1e-06
    %v2986 = vadd.f32 %v2978, 1e-06
    %v2987 = vadd.f32 %v2979, 1e-06
    %v2992 = vrot.slane %v2984, 2
    %v2993 = vrot.slane %v2985, 2
    %v2994 = vrot.slane %v2986, 2
    %v2995 = vrot.slane %v2987, 2
    %v3000 = vrcp.pop %v2992
    %v3001 = vmul.f32 %v2956, %v3000
    %v3002 = vrcp.pop %v2993
    %v3003 = vmul.f32 %v2957, %v3002
    %v3004 = vrcp.pop %v2994
    %v3005 = vmul.f32 %v2958, %v3004
    %v3006 = vrcp.pop %v2995
    %v3007 = vmul.f32 %v2959, %v3006
    %v3008 = vsel %vm2980, 0.0, %v3001
    %v3009 = vsel %vm2981, 0.0, %v3003
    %v3010 = vsel %vm2982, 0.0, %v3005
    %v3011 = vsel %vm2983, 0.0, %v3007
    %v3012 = vmul.f32 %v3008, 0.8
    %v3013 = vmul.f32 %v3009, 0.8
    %v3014 = vmul.f32 %v3010, 0.8
    %v3015 = vmul.f32 %v3011, 0.8
    %v3016 = vmul.f32 %v3012, %v2908
    %v3017 = vmul.f32 %v3013, %v2909
    %v3018 = vmul.f32 %v3014, %v2910
    %v3019 = vmul.f32 %v3015, %v2911
    %v3020 = vsub.f32 %v2892, %v3016
    %v3021 = vsub.f32 %v2893, %v3017
    %v3022 = vsub.f32 %v2894, %v3018
    %v3023 = vsub.f32 %v2895, %v3019
    %v3024 = vmul.f32 %v3012, %v2924
    %v3025 = vmul.f32 %v3013, %v2925
    %v3026 = vmul.f32 %v3014, %v2926
    %v3027 = vmul.f32 %v3015, %v2927
    %v3028 = vsub.f32 %v2896, %v3024
    %v3029 = vsub.f32 %v2897, %v3025
    %v3030 = vsub.f32 %v2898, %v3026
    %v3031 = vsub.f32 %v2899, %v3027
    %v3032 = vmul.f32 %v3012, %v2944
    %v3033 = vmul.f32 %v3013, %v2945
    %v3034 = vmul.f32 %v3014, %v2946
    %v3035 = vmul.f32 %v3015, %v2947
    %v3036 = vsub.f32 %v2900, %v3032
    %v3037 = vsub.f32 %v2901, %v3033
    %v3038 = vsub.f32 %v2902, %v3034
    %v3039 = vsub.f32 %v2903, %v3035
    %vm3040 = vcmask 15360
    %v3042 = vsel %vm3040, %v103, 0
    %v3045 = vsel %vm2845, %v3020, 0
    %v3048 = vsel %vm2845, %v3021, 0
    %3050 = vmatprep.subr.mxu0 %v3048
    %3051 = vmatpush1.msra.mxu0 %v3045
    %3052 = vmatprep.subr.mxu0 0.0
    %3053 = vmatpush1.msra.mxu0 0.0
    %3054 = vmatprep.subr.mxu0 0.0
    %3055 = vmatpush1.msra.mxu0 0.0
    %3056 = vmatprep.subr.mxu0 0.0
    %3057 = vmatpush1.msra.mxu0 0.0
    %3058 = vmatprep.subr.mxu0 0.0
    %3059 = vmatpush1.msra.mxu0 0.0
    %3060 = vmatprep.subr.mxu0 0.0
    %3061 = vmatpush1.msra.mxu0 0.0
    %3062 = vmatprep.subr.mxu0 0.0
    %3063 = vmatpush1.msra.mxu0 0.0
    %3064 = vmatprep.subr.mxu0 0.0
    %3065 = vmatpush1.msra.mxu0 0.0
    %3066 = vmatprep.subr.mxu0 0.0
    %3067 = vmatpush1.msra.mxu0 0.0
    %3068 = vmatprep.subr.mxu0 0.0
    %3069 = vmatpush1.msra.mxu0 0.0
    %3070 = vmatprep.subr.mxu0 0.0
    %3071 = vmatpush1.msra.mxu0 0.0
    %3072 = vmatprep.subr.mxu0 0.0
    %3073 = vmatpush1.msra.mxu0 0.0
    %3074 = vmatprep.subr.mxu0 0.0
    %3075 = vmatpush1.msra.mxu0 0.0
    %3076 = vmatprep.subr.mxu0 0.0
    %3077 = vmatpush1.msra.mxu0 0.0
    %3078 = vmatprep.subr.mxu0 0.0
    %3079 = vmatpush1.msra.mxu0 0.0
    %3080 = vmatprep.subr.mxu0 0.0
    %3081 = vmatpush1.msra.mxu0 0.0
    %3082 = vmatprep.subr.mxu0 0.0
    %3083 = vmatpush1.msra.mxu0 0.0
    %3084 = vmatprep.subr.mxu0 0.0
    %3085 = vmatpush1.msra.mxu0 0.0
    %3086 = vmatprep.subr.mxu0 0.0
    %3087 = vmatpush1.msra.mxu0 0.0
    %3088 = vmatprep.subr.mxu0 0.0
    %3089 = vmatpush1.msra.mxu0 0.0
    %3090 = vmatprep.subr.mxu0 0.0
    %3091 = vmatpush1.msra.mxu0 0.0
    %3092 = vmatprep.subr.mxu0 0.0
    %3093 = vmatpush1.msra.mxu0 0.0
    %3094 = vmatprep.subr.mxu0 0.0
    %3095 = vmatpush1.msra.mxu0 0.0
    %3096 = vmatprep.subr.mxu0 0.0
    %3097 = vmatpush1.msra.mxu0 0.0
    %3098 = vmatprep.subr.mxu0 0.0
    %3099 = vmatpush1.msra.mxu0 0.0
    %3100 = vmatprep.subr.mxu0 0.0
    %3101 = vmatpush1.msra.mxu0 0.0
    %3102 = vmatprep.subr.mxu0 0.0
    %3103 = vmatpush1.msra.mxu0 0.0
    %3104 = vmatprep.subr.mxu0 0.0
    %3105 = vmatpush1.msra.mxu0 0.0
    %3106 = vmatprep.subr.mxu0 0.0
    %3107 = vmatpush1.msra.mxu0 0.0
    %3108 = vmatprep.subr.mxu0 0.0
    %3109 = vmatpush1.msra.mxu0 0.0
    %3110 = vmatprep.subr.mxu0 0.0
    %3111 = vmatpush1.msra.mxu0 0.0
    %3112 = vmatprep.subr.mxu0 0.0
    %3113 = vmatpush1.msra.mxu0 0.0
    %3114 = vmatprep.mubr.f32.mxu0 0.0
    %3115 = vmatmul.mubr.f32.gmra.mrb[0].mxu0 %v3042
    %v3116 = vpop.f32.mrb[0].mxu0
    %v3117 = vadd.f32 0.0, %v3116
    %v3118 = vpop.f32.mrb[0].mxu0
    %v3119 = vadd.f32 0.0, %v3118
    %3120 = vdwg.mxu0
    %v3122 = vsel %vm2845, %v3022, 0
    %v3125 = vsel %vm2845, %v3023, 0
    %3127 = vmatprep.subr.mxu0 %v3125
    %3128 = vmatpush1.msra.mxu0 %v3122
    %3129 = vmatprep.subr.mxu0 0.0
    %3130 = vmatpush1.msra.mxu0 0.0
    %3131 = vmatprep.subr.mxu0 0.0
    %3132 = vmatpush1.msra.mxu0 0.0
    %3133 = vmatprep.subr.mxu0 0.0
    %3134 = vmatpush1.msra.mxu0 0.0
    %3135 = vmatprep.subr.mxu0 0.0
    %3136 = vmatpush1.msra.mxu0 0.0
    %3137 = vmatprep.subr.mxu0 0.0
    %3138 = vmatpush1.msra.mxu0 0.0
    %3139 = vmatprep.subr.mxu0 0.0
    %3140 = vmatpush1.msra.mxu0 0.0
    %3141 = vmatprep.subr.mxu0 0.0
    %3142 = vmatpush1.msra.mxu0 0.0
    %3143 = vmatprep.subr.mxu0 0.0
    %3144 = vmatpush1.msra.mxu0 0.0
    %3145 = vmatprep.subr.mxu0 0.0
    %3146 = vmatpush1.msra.mxu0 0.0
    %3147 = vmatprep.subr.mxu0 0.0
    %3148 = vmatpush1.msra.mxu0 0.0
    %3149 = vmatprep.subr.mxu0 0.0
    %3150 = vmatpush1.msra.mxu0 0.0
    %3151 = vmatprep.subr.mxu0 0.0
    %3152 = vmatpush1.msra.mxu0 0.0
    %3153 = vmatprep.subr.mxu0 0.0
    %3154 = vmatpush1.msra.mxu0 0.0
    %3155 = vmatprep.subr.mxu0 0.0
    %3156 = vmatpush1.msra.mxu0 0.0
    %3157 = vmatprep.subr.mxu0 0.0
    %3158 = vmatpush1.msra.mxu0 0.0
    %3159 = vmatprep.subr.mxu0 0.0
    %3160 = vmatpush1.msra.mxu0 0.0
    %3161 = vmatprep.subr.mxu0 0.0
    %3162 = vmatpush1.msra.mxu0 0.0
    %3163 = vmatprep.subr.mxu0 0.0
    %3164 = vmatpush1.msra.mxu0 0.0
    %3165 = vmatprep.subr.mxu0 0.0
    %3166 = vmatpush1.msra.mxu0 0.0
    %3167 = vmatprep.subr.mxu0 0.0
    %3168 = vmatpush1.msra.mxu0 0.0
    %3169 = vmatprep.subr.mxu0 0.0
    %3170 = vmatpush1.msra.mxu0 0.0
    %3171 = vmatprep.subr.mxu0 0.0
    %3172 = vmatpush1.msra.mxu0 0.0
    %3173 = vmatprep.subr.mxu0 0.0
    %3174 = vmatpush1.msra.mxu0 0.0
    %3175 = vmatprep.subr.mxu0 0.0
    %3176 = vmatpush1.msra.mxu0 0.0
    %3177 = vmatprep.subr.mxu0 0.0
    %3178 = vmatpush1.msra.mxu0 0.0
    %3179 = vmatprep.subr.mxu0 0.0
    %3180 = vmatpush1.msra.mxu0 0.0
    %3181 = vmatprep.subr.mxu0 0.0
    %3182 = vmatpush1.msra.mxu0 0.0
    %3183 = vmatprep.subr.mxu0 0.0
    %3184 = vmatpush1.msra.mxu0 0.0
    %3185 = vmatprep.subr.mxu0 0.0
    %3186 = vmatpush1.msra.mxu0 0.0
    %3187 = vmatprep.subr.mxu0 0.0
    %3188 = vmatpush1.msra.mxu0 0.0
    %3189 = vmatprep.subr.mxu0 0.0
    %3190 = vmatpush1.msra.mxu0 0.0
    %3191 = vmatprep.mubr.f32.mxu0 0.0
    %3192 = vmatmul.mubr.f32.gmra.mrb[0].mxu0 %v3042
    %v3193 = vpop.f32.mrb[0].mxu0
    %v3194 = vadd.f32 0.0, %v3193
    %v3195 = vpop.f32.mrb[0].mxu0
    %v3196 = vadd.f32 0.0, %v3195
    %3197 = vdwg.mxu0
    %v3199 = vsel %vm2845, %v3028, 0
    %v3202 = vsel %vm2845, %v3029, 0
    %3204 = vmatprep.subr.mxu0 %v3202
    %3205 = vmatpush1.msra.mxu0 %v3199
    %3206 = vmatprep.subr.mxu0 0.0
    %3207 = vmatpush1.msra.mxu0 0.0
    %3208 = vmatprep.subr.mxu0 0.0
    %3209 = vmatpush1.msra.mxu0 0.0
    %3210 = vmatprep.subr.mxu0 0.0
    %3211 = vmatpush1.msra.mxu0 0.0
    %3212 = vmatprep.subr.mxu0 0.0
    %3213 = vmatpush1.msra.mxu0 0.0
    %3214 = vmatprep.subr.mxu0 0.0
    %3215 = vmatpush1.msra.mxu0 0.0
    %3216 = vmatprep.subr.mxu0 0.0
    %3217 = vmatpush1.msra.mxu0 0.0
    %3218 = vmatprep.subr.mxu0 0.0
    %3219 = vmatpush1.msra.mxu0 0.0
    %3220 = vmatprep.subr.mxu0 0.0
    %3221 = vmatpush1.msra.mxu0 0.0
    %3222 = vmatprep.subr.mxu0 0.0
    %3223 = vmatpush1.msra.mxu0 0.0
    %3224 = vmatprep.subr.mxu0 0.0
    %3225 = vmatpush1.msra.mxu0 0.0
    %3226 = vmatprep.subr.mxu0 0.0
    %3227 = vmatpush1.msra.mxu0 0.0
    %3228 = vmatprep.subr.mxu0 0.0
    %3229 = vmatpush1.msra.mxu0 0.0
    %3230 = vmatprep.subr.mxu0 0.0
    %3231 = vmatpush1.msra.mxu0 0.0
    %3232 = vmatprep.subr.mxu0 0.0
    %3233 = vmatpush1.msra.mxu0 0.0
    %3234 = vmatprep.subr.mxu0 0.0
    %3235 = vmatpush1.msra.mxu0 0.0
    %3236 = vmatprep.subr.mxu0 0.0
    %3237 = vmatpush1.msra.mxu0 0.0
    %3238 = vmatprep.subr.mxu0 0.0
    %3239 = vmatpush1.msra.mxu0 0.0
    %3240 = vmatprep.subr.mxu0 0.0
    %3241 = vmatpush1.msra.mxu0 0.0
    %3242 = vmatprep.subr.mxu0 0.0
    %3243 = vmatpush1.msra.mxu0 0.0
    %3244 = vmatprep.subr.mxu0 0.0
    %3245 = vmatpush1.msra.mxu0 0.0
    %3246 = vmatprep.subr.mxu0 0.0
    %3247 = vmatpush1.msra.mxu0 0.0
    %3248 = vmatprep.subr.mxu0 0.0
    %3249 = vmatpush1.msra.mxu0 0.0
    %3250 = vmatprep.subr.mxu0 0.0
    %3251 = vmatpush1.msra.mxu0 0.0
    %3252 = vmatprep.subr.mxu0 0.0
    %3253 = vmatpush1.msra.mxu0 0.0
    %3254 = vmatprep.subr.mxu0 0.0
    %3255 = vmatpush1.msra.mxu0 0.0
    %3256 = vmatprep.subr.mxu0 0.0
    %3257 = vmatpush1.msra.mxu0 0.0
    %3258 = vmatprep.subr.mxu0 0.0
    %3259 = vmatpush1.msra.mxu0 0.0
    %3260 = vmatprep.subr.mxu0 0.0
    %3261 = vmatpush1.msra.mxu0 0.0
    %3262 = vmatprep.subr.mxu0 0.0
    %3263 = vmatpush1.msra.mxu0 0.0
    %3264 = vmatprep.subr.mxu0 0.0
    %3265 = vmatpush1.msra.mxu0 0.0
    %3266 = vmatprep.subr.mxu0 0.0
    %3267 = vmatpush1.msra.mxu0 0.0
    %3268 = vmatprep.mubr.f32.mxu0 0.0
    %3269 = vmatmul.mubr.f32.gmra.mrb[0].mxu0 %v3042
    %v3270 = vpop.f32.mrb[0].mxu0
    %v3271 = vadd.f32 0.0, %v3270
    %v3272 = vpop.f32.mrb[0].mxu0
    %v3273 = vadd.f32 0.0, %v3272
    %3274 = vdwg.mxu0
    %v3276 = vsel %vm2845, %v3030, 0
    %v3279 = vsel %vm2845, %v3031, 0
    %3281 = vmatprep.subr.mxu0 %v3279
    %3282 = vmatpush1.msra.mxu0 %v3276
    %3283 = vmatprep.subr.mxu0 0.0
    %3284 = vmatpush1.msra.mxu0 0.0
    %3285 = vmatprep.subr.mxu0 0.0
    %3286 = vmatpush1.msra.mxu0 0.0
    %3287 = vmatprep.subr.mxu0 0.0
    %3288 = vmatpush1.msra.mxu0 0.0
    %3289 = vmatprep.subr.mxu0 0.0
    %3290 = vmatpush1.msra.mxu0 0.0
    %3291 = vmatprep.subr.mxu0 0.0
    %3292 = vmatpush1.msra.mxu0 0.0
    %3293 = vmatprep.subr.mxu0 0.0
    %3294 = vmatpush1.msra.mxu0 0.0
    %3295 = vmatprep.subr.mxu0 0.0
    %3296 = vmatpush1.msra.mxu0 0.0
    %3297 = vmatprep.subr.mxu0 0.0
    %3298 = vmatpush1.msra.mxu0 0.0
    %3299 = vmatprep.subr.mxu0 0.0
    %3300 = vmatpush1.msra.mxu0 0.0
    %3301 = vmatprep.subr.mxu0 0.0
    %3302 = vmatpush1.msra.mxu0 0.0
    %3303 = vmatprep.subr.mxu0 0.0
    %3304 = vmatpush1.msra.mxu0 0.0
    %3305 = vmatprep.subr.mxu0 0.0
    %3306 = vmatpush1.msra.mxu0 0.0
    %3307 = vmatprep.subr.mxu0 0.0
    %3308 = vmatpush1.msra.mxu0 0.0
    %3309 = vmatprep.subr.mxu0 0.0
    %3310 = vmatpush1.msra.mxu0 0.0
    %3311 = vmatprep.subr.mxu0 0.0
    %3312 = vmatpush1.msra.mxu0 0.0
    %3313 = vmatprep.subr.mxu0 0.0
    %3314 = vmatpush1.msra.mxu0 0.0
    %3315 = vmatprep.subr.mxu0 0.0
    %3316 = vmatpush1.msra.mxu0 0.0
    %3317 = vmatprep.subr.mxu0 0.0
    %3318 = vmatpush1.msra.mxu0 0.0
    %3319 = vmatprep.subr.mxu0 0.0
    %3320 = vmatpush1.msra.mxu0 0.0
    %3321 = vmatprep.subr.mxu0 0.0
    %3322 = vmatpush1.msra.mxu0 0.0
    %3323 = vmatprep.subr.mxu0 0.0
    %3324 = vmatpush1.msra.mxu0 0.0
    %3325 = vmatprep.subr.mxu0 0.0
    %3326 = vmatpush1.msra.mxu0 0.0
    %3327 = vmatprep.subr.mxu0 0.0
    %3328 = vmatpush1.msra.mxu0 0.0
    %3329 = vmatprep.subr.mxu0 0.0
    %3330 = vmatpush1.msra.mxu0 0.0
    %3331 = vmatprep.subr.mxu0 0.0
    %3332 = vmatpush1.msra.mxu0 0.0
    %3333 = vmatprep.subr.mxu0 0.0
    %3334 = vmatpush1.msra.mxu0 0.0
    %3335 = vmatprep.subr.mxu0 0.0
    %3336 = vmatpush1.msra.mxu0 0.0
    %3337 = vmatprep.subr.mxu0 0.0
    %3338 = vmatpush1.msra.mxu0 0.0
    %3339 = vmatprep.subr.mxu0 0.0
    %3340 = vmatpush1.msra.mxu0 0.0
    %3341 = vmatprep.subr.mxu0 0.0
    %3342 = vmatpush1.msra.mxu0 0.0
    %3343 = vmatprep.subr.mxu0 0.0
    %3344 = vmatpush1.msra.mxu0 0.0
    %3345 = vmatprep.mubr.f32.mxu0 0.0
    %3346 = vmatmul.mubr.f32.gmra.mrb[0].mxu0 %v3042
    %v3347 = vpop.f32.mrb[0].mxu0
    %v3348 = vadd.f32 0.0, %v3347
    %v3349 = vpop.f32.mrb[0].mxu0
    %v3350 = vadd.f32 0.0, %v3349
    %3351 = vdwg.mxu0
    %v3353 = vsel %vm2845, %v3036, 0
    %v3356 = vsel %vm2845, %v3037, 0
    %3358 = vmatprep.subr.mxu0 %v3356
    %3359 = vmatpush1.msra.mxu0 %v3353
    %3360 = vmatprep.subr.mxu0 0.0
    %3361 = vmatpush1.msra.mxu0 0.0
    %3362 = vmatprep.subr.mxu0 0.0
    %3363 = vmatpush1.msra.mxu0 0.0
    %3364 = vmatprep.subr.mxu0 0.0
    %3365 = vmatpush1.msra.mxu0 0.0
    %3366 = vmatprep.subr.mxu0 0.0
    %3367 = vmatpush1.msra.mxu0 0.0
    %3368 = vmatprep.subr.mxu0 0.0
    %3369 = vmatpush1.msra.mxu0 0.0
    %3370 = vmatprep.subr.mxu0 0.0
    %3371 = vmatpush1.msra.mxu0 0.0
    %3372 = vmatprep.subr.mxu0 0.0
    %3373 = vmatpush1.msra.mxu0 0.0
    %3374 = vmatprep.subr.mxu0 0.0
    %3375 = vmatpush1.msra.mxu0 0.0
    %3376 = vmatprep.subr.mxu0 0.0
    %3377 = vmatpush1.msra.mxu0 0.0
    %3378 = vmatprep.subr.mxu0 0.0
    %3379 = vmatpush1.msra.mxu0 0.0
    %3380 = vmatprep.subr.mxu0 0.0
    %3381 = vmatpush1.msra.mxu0 0.0
    %3382 = vmatprep.subr.mxu0 0.0
    %3383 = vmatpush1.msra.mxu0 0.0
    %3384 = vmatprep.subr.mxu0 0.0
    %3385 = vmatpush1.msra.mxu0 0.0
    %3386 = vmatprep.subr.mxu0 0.0
    %3387 = vmatpush1.msra.mxu0 0.0
    %3388 = vmatprep.subr.mxu0 0.0
    %3389 = vmatpush1.msra.mxu0 0.0
    %3390 = vmatprep.subr.mxu0 0.0
    %3391 = vmatpush1.msra.mxu0 0.0
    %3392 = vmatprep.subr.mxu0 0.0
    %3393 = vmatpush1.msra.mxu0 0.0
    %3394 = vmatprep.subr.mxu0 0.0
    %3395 = vmatpush1.msra.mxu0 0.0
    %3396 = vmatprep.subr.mxu0 0.0
    %3397 = vmatpush1.msra.mxu0 0.0
    %3398 = vmatprep.subr.mxu0 0.0
    %3399 = vmatpush1.msra.mxu0 0.0
    %3400 = vmatprep.subr.mxu0 0.0
    %3401 = vmatpush1.msra.mxu0 0.0
    %3402 = vmatprep.subr.mxu0 0.0
    %3403 = vmatpush1.msra.mxu0 0.0
    %3404 = vmatprep.subr.mxu0 0.0
    %3405 = vmatpush1.msra.mxu0 0.0
    %3406 = vmatprep.subr.mxu0 0.0
    %3407 = vmatpush1.msra.mxu0 0.0
    %3408 = vmatprep.subr.mxu0 0.0
    %3409 = vmatpush1.msra.mxu0 0.0
    %3410 = vmatprep.subr.mxu0 0.0
    %3411 = vmatpush1.msra.mxu0 0.0
    %3412 = vmatprep.subr.mxu0 0.0
    %3413 = vmatpush1.msra.mxu0 0.0
    %3414 = vmatprep.subr.mxu0 0.0
    %3415 = vmatpush1.msra.mxu0 0.0
    %3416 = vmatprep.subr.mxu0 0.0
    %3417 = vmatpush1.msra.mxu0 0.0
    %3418 = vmatprep.subr.mxu0 0.0
    %3419 = vmatpush1.msra.mxu0 0.0
    %3420 = vmatprep.subr.mxu0 0.0
    %3421 = vmatpush1.msra.mxu0 0.0
    %3422 = vmatprep.mubr.f32.mxu0 0.0
    %3423 = vmatmul.mubr.f32.gmra.mrb[0].mxu0 %v3042
    %v3424 = vpop.f32.mrb[0].mxu0
    %v3425 = vadd.f32 0.0, %v3424
    %v3426 = vpop.f32.mrb[0].mxu0
    %v3427 = vadd.f32 0.0, %v3426
    %3428 = vdwg.mxu0
    %v3430 = vsel %vm2845, %v3038, 0
    %v3433 = vsel %vm2845, %v3039, 0
    %3435 = vmatprep.subr.mxu0 %v3433
    %3436 = vmatpush1.msra.mxu0 %v3430
    %3437 = vmatprep.subr.mxu0 0.0
    %3438 = vmatpush1.msra.mxu0 0.0
    %3439 = vmatprep.subr.mxu0 0.0
    %3440 = vmatpush1.msra.mxu0 0.0
    %3441 = vmatprep.subr.mxu0 0.0
    %3442 = vmatpush1.msra.mxu0 0.0
    %3443 = vmatprep.subr.mxu0 0.0
    %3444 = vmatpush1.msra.mxu0 0.0
    %3445 = vmatprep.subr.mxu0 0.0
    %3446 = vmatpush1.msra.mxu0 0.0
    %3447 = vmatprep.subr.mxu0 0.0
    %3448 = vmatpush1.msra.mxu0 0.0
    %3449 = vmatprep.subr.mxu0 0.0
    %3450 = vmatpush1.msra.mxu0 0.0
    %3451 = vmatprep.subr.mxu0 0.0
    %3452 = vmatpush1.msra.mxu0 0.0
    %3453 = vmatprep.subr.mxu0 0.0
    %3454 = vmatpush1.msra.mxu0 0.0
    %3455 = vmatprep.subr.mxu0 0.0
    %3456 = vmatpush1.msra.mxu0 0.0
    %3457 = vmatprep.subr.mxu0 0.0
    %3458 = vmatpush1.msra.mxu0 0.0
    %3459 = vmatprep.subr.mxu0 0.0
    %3460 = vmatpush1.msra.mxu0 0.0
    %3461 = vmatprep.subr.mxu0 0.0
    %3462 = vmatpush1.msra.mxu0 0.0
    %3463 = vmatprep.subr.mxu0 0.0
    %3464 = vmatpush1.msra.mxu0 0.0
    %3465 = vmatprep.subr.mxu0 0.0
    %3466 = vmatpush1.msra.mxu0 0.0
    %3467 = vmatprep.subr.mxu0 0.0
    %3468 = vmatpush1.msra.mxu0 0.0
    %3469 = vmatprep.subr.mxu0 0.0
    %3470 = vmatpush1.msra.mxu0 0.0
    %3471 = vmatprep.subr.mxu0 0.0
    %3472 = vmatpush1.msra.mxu0 0.0
    %3473 = vmatprep.subr.mxu0 0.0
    %3474 = vmatpush1.msra.mxu0 0.0
    %3475 = vmatprep.subr.mxu0 0.0
    %3476 = vmatpush1.msra.mxu0 0.0
    %3477 = vmatprep.subr.mxu0 0.0
    %3478 = vmatpush1.msra.mxu0 0.0
    %3479 = vmatprep.subr.mxu0 0.0
    %3480 = vmatpush1.msra.mxu0 0.0
    %3481 = vmatprep.subr.mxu0 0.0
    %3482 = vmatpush1.msra.mxu0 0.0
    %3483 = vmatprep.subr.mxu0 0.0
    %3484 = vmatpush1.msra.mxu0 0.0
    %3485 = vmatprep.subr.mxu0 0.0
    %3486 = vmatpush1.msra.mxu0 0.0
    %3487 = vmatprep.subr.mxu0 0.0
    %3488 = vmatpush1.msra.mxu0 0.0
    %3489 = vmatprep.subr.mxu0 0.0
    %3490 = vmatpush1.msra.mxu0 0.0
    %3491 = vmatprep.subr.mxu0 0.0
    %3492 = vmatpush1.msra.mxu0 0.0
    %3493 = vmatprep.subr.mxu0 0.0
    %3494 = vmatpush1.msra.mxu0 0.0
    %3495 = vmatprep.subr.mxu0 0.0
    %3496 = vmatpush1.msra.mxu0 0.0
    %3497 = vmatprep.subr.mxu0 0.0
    %3498 = vmatpush1.msra.mxu0 0.0
    %3499 = vmatprep.mubr.f32.mxu0 0.0
    %3500 = vmatmul.mubr.f32.gmra.mrb[0].mxu0 %v3042
    %v3501 = vpop.f32.mrb[0].mxu0
    %v3502 = vadd.f32 0.0, %v3501
    %v3503 = vpop.f32.mrb[0].mxu0
    %v3504 = vadd.f32 0.0, %v3503
    %3505 = vdwg.mxu0
    %v3510 = vcombine.low %v3117, %v3119
    %v3511 = vcombine.low %v3194, %v3196
    %3514 = vst [vmem:[#allocation14] sm:$0x77] %v3510
    %3515 = vst [vmem:[#allocation14 + $0x18] sm:$0x77] %v3511
    %v3520 = vcombine.low %v3271, %v3273
    %v3521 = vcombine.low %v3348, %v3350
    %s3524 = scalar_lea.vmem [#allocation14], 8
    %3525 = vst [vmem:[%s3524] sm:$0x77] %v3520
    %3526 = vst [vmem:[%s3524 + $0x18] sm:$0x77] %v3521
    %v3531 = vcombine.low %v3425, %v3427
    %v3532 = vcombine.low %v3502, %v3504
    %s3535 = scalar_lea.vmem [#allocation14], 16
    %3536 = vst [vmem:[%s3535] sm:$0x77] %v3531
    %3537 = vst [vmem:[%s3535 + $0x18] sm:$0x77] %v3532
    %v3538 = vlaneseq
    %v3539 = vshrl.u32 %v3538, 7
    %v3540 = vsub.s32 0, %v3539
    %v3541 = vrot.slane %v3117, %v3540
    %v3542 = vlaneseq
    %v3543 = vshrl.u32 %v3542, 7
    %v3544 = vsub.s32 0, %v3543
    %v3545 = vrot.slane %v3119, %v3544
    %v3546 = vlaneseq
    %v3547 = vshrl.u32 %v3546, 7
    %v3548 = vsub.s32 0, %v3547
    %v3549 = vrot.slane %v3194, %v3548
    %v3550 = vlaneseq
    %v3551 = vshrl.u32 %v3550, 7
    %v3552 = vsub.s32 0, %v3551
    %v3553 = vrot.slane %v3196, %v3552
    %v3554 = vmul.f32 %v104, %v3541
    %v3555 = vmul.f32 %v105, %v3545
    %v3556 = vmul.f32 %v110, %v3549
    %v3557 = vmul.f32 %v111, %v3553
    %v3558 = vlaneseq
    %v3559 = vshrl.u32 %v3558, 7
    %v3560 = vsub.s32 0, %v3559
    %v3561 = vrot.slane %v3271, %v3560
    %v3562 = vlaneseq
    %v3563 = vshrl.u32 %v3562, 7
    %v3564 = vsub.s32 0, %v3563
    %v3565 = vrot.slane %v3273, %v3564
    %v3566 = vlaneseq
    %v3567 = vshrl.u32 %v3566, 7
    %v3568 = vsub.s32 0, %v3567
    %v3569 = vrot.slane %v3348, %v3568
    %v3570 = vlaneseq
    %v3571 = vshrl.u32 %v3570, 7
    %v3572 = vsub.s32 0, %v3571
    %v3573 = vrot.slane %v3350, %v3572
    %v3574 = vmul.f32 %v106, %v3561
    %v3575 = vmul.f32 %v107, %v3565
    %v3576 = vmul.f32 %v112, %v3569
    %v3577 = vmul.f32 %v113, %v3573
    %v3578 = vadd.f32 %v3554, %v3574
    %v3579 = vadd.f32 %v3555, %v3575
    %v3580 = vadd.f32 %v3556, %v3576
    %v3581 = vadd.f32 %v3557, %v3577
    %v3582 = vlaneseq
    %v3583 = vshrl.u32 %v3582, 7
    %v3584 = vsub.s32 0, %v3583
    %v3585 = vrot.slane %v3425, %v3584
    %v3586 = vlaneseq
    %v3587 = vshrl.u32 %v3586, 7
    %v3588 = vsub.s32 0, %v3587
    %v3589 = vrot.slane %v3427, %v3588
    %v3590 = vlaneseq
    %v3591 = vshrl.u32 %v3590, 7
    %v3592 = vsub.s32 0, %v3591
    %v3593 = vrot.slane %v3502, %v3592
    %v3594 = vlaneseq
    %v3595 = vshrl.u32 %v3594, 7
    %v3596 = vsub.s32 0, %v3595
    %v3597 = vrot.slane %v3504, %v3596
    %v3598 = vmul.f32 %v108, %v3585
    %v3599 = vmul.f32 %v109, %v3589
    %v3600 = vmul.f32 %v114, %v3593
    %v3601 = vmul.f32 %v115, %v3597
    %v3602 = vadd.f32 %v3578, %v3598
    %v3603 = vadd.f32 %v3579, %v3599
    %v3604 = vadd.f32 %v3580, %v3600
    %v3605 = vadd.f32 %v3581, %v3601
    %3606 = vst [vmem:[#allocation13] sm:$0xff] %v3602
    %3607 = vst [vmem:[#allocation13 + $0x8] sm:$0xff] %v3603
    %3608 = vst [vmem:[#allocation13 + $0x30] sm:$0xff] %v3604
    %3609 = vst [vmem:[#allocation13 + $0x38] sm:$0xff] %v3605
    %v3610 = vlaneseq
    %v3611 = vshrl.u32 %v3610, 7
    %v3612 = vsub.s32 1, %v3611
    %v3613 = vrot.slane %v3117, %v3612
    %v3614 = vlaneseq
    %v3615 = vshrl.u32 %v3614, 7
    %v3616 = vsub.s32 1, %v3615
    %v3617 = vrot.slane %v3119, %v3616
    %v3618 = vlaneseq
    %v3619 = vshrl.u32 %v3618, 7
    %v3620 = vsub.s32 1, %v3619
    %v3621 = vrot.slane %v3194, %v3620
    %v3622 = vlaneseq
    %v3623 = vshrl.u32 %v3622, 7
    %v3624 = vsub.s32 1, %v3623
    %v3625 = vrot.slane %v3196, %v3624
    %v3626 = vmul.f32 %v104, %v3613
    %v3627 = vmul.f32 %v105, %v3617
    %v3628 = vmul.f32 %v110, %v3621
    %v3629 = vmul.f32 %v111, %v3625
    %v3630 = vlaneseq
    %v3631 = vshrl.u32 %v3630, 7
    %v3632 = vsub.s32 1, %v3631
    %v3633 = vrot.slane %v3271, %v3632
    %v3634 = vlaneseq
    %v3635 = vshrl.u32 %v3634, 7
    %v3636 = vsub.s32 1, %v3635
    %v3637 = vrot.slane %v3273, %v3636
    %v3638 = vlaneseq
    %v3639 = vshrl.u32 %v3638, 7
    %v3640 = vsub.s32 1, %v3639
    %v3641 = vrot.slane %v3348, %v3640
    %v3642 = vlaneseq
    %v3643 = vshrl.u32 %v3642, 7
    %v3644 = vsub.s32 1, %v3643
    %v3645 = vrot.slane %v3350, %v3644
    %v3646 = vmul.f32 %v106, %v3633
    %v3647 = vmul.f32 %v107, %v3637
    %v3648 = vmul.f32 %v112, %v3641
    %v3649 = vmul.f32 %v113, %v3645
    %v3650 = vadd.f32 %v3626, %v3646
    %v3651 = vadd.f32 %v3627, %v3647
    %v3652 = vadd.f32 %v3628, %v3648
    %v3653 = vadd.f32 %v3629, %v3649
    %v3654 = vlaneseq
    %v3655 = vshrl.u32 %v3654, 7
    %v3656 = vsub.s32 1, %v3655
    %v3657 = vrot.slane %v3425, %v3656
    %v3658 = vlaneseq
    %v3659 = vshrl.u32 %v3658, 7
    %v3660 = vsub.s32 1, %v3659
    %v3661 = vrot.slane %v3427, %v3660
    %v3662 = vlaneseq
    %v3663 = vshrl.u32 %v3662, 7
    %v3664 = vsub.s32 1, %v3663
    %v3665 = vrot.slane %v3502, %v3664
    %v3666 = vlaneseq
    %v3667 = vshrl.u32 %v3666, 7
    %v3668 = vsub.s32 1, %v3667
    %v3669 = vrot.slane %v3504, %v3668
    %v3670 = vmul.f32 %v108, %v3657
    %v3671 = vmul.f32 %v109, %v3661
    %v3672 = vmul.f32 %v114, %v3665
    %v3673 = vmul.f32 %v115, %v3669
    %v3674 = vadd.f32 %v3650, %v3670
    %v3675 = vadd.f32 %v3651, %v3671
    %v3676 = vadd.f32 %v3652, %v3672
    %v3677 = vadd.f32 %v3653, %v3673
    %s3678 = scalar_lea.vmem [#allocation13], 16
    %3679 = vst [vmem:[%s3678] sm:$0xff] %v3674
    %3680 = vst [vmem:[%s3678 + $0x8] sm:$0xff] %v3675
    %3681 = vst [vmem:[%s3678 + $0x30] sm:$0xff] %v3676
    %3682 = vst [vmem:[%s3678 + $0x38] sm:$0xff] %v3677
    %v3683 = vlaneseq
    %v3684 = vshrl.u32 %v3683, 7
    %v3685 = vsub.s32 2, %v3684
    %v3686 = vrot.slane %v3117, %v3685
    %v3687 = vlaneseq
    %v3688 = vshrl.u32 %v3687, 7
    %v3689 = vsub.s32 2, %v3688
    %v3690 = vrot.slane %v3119, %v3689
    %v3691 = vlaneseq
    %v3692 = vshrl.u32 %v3691, 7
    %v3693 = vsub.s32 2, %v3692
    %v3694 = vrot.slane %v3194, %v3693
    %v3695 = vlaneseq
    %v3696 = vshrl.u32 %v3695, 7
    %v3697 = vsub.s32 2, %v3696
    %v3698 = vrot.slane %v3196, %v3697
    %v3699 = vmul.f32 %v104, %v3686
    %v3700 = vmul.f32 %v105, %v3690
    %v3701 = vmul.f32 %v110, %v3694
    %v3702 = vmul.f32 %v111, %v3698
    %v3703 = vlaneseq
    %v3704 = vshrl.u32 %v3703, 7
    %v3705 = vsub.s32 2, %v3704
    %v3706 = vrot.slane %v3271, %v3705
    %v3707 = vlaneseq
    %v3708 = vshrl.u32 %v3707, 7
    %v3709 = vsub.s32 2, %v3708
    %v3710 = vrot.slane %v3273, %v3709
    %v3711 = vlaneseq
    %v3712 = vshrl.u32 %v3711, 7
    %v3713 = vsub.s32 2, %v3712
    %v3714 = vrot.slane %v3348, %v3713
    %v3715 = vlaneseq
    %v3716 = vshrl.u32 %v3715, 7
    %v3717 = vsub.s32 2, %v3716
    %v3718 = vrot.slane %v3350, %v3717
    %v3719 = vmul.f32 %v106, %v3706
    %v3720 = vmul.f32 %v107, %v3710
    %v3721 = vmul.f32 %v112, %v3714
    %v3722 = vmul.f32 %v113, %v3718
    %v3723 = vadd.f32 %v3699, %v3719
    %v3724 = vadd.f32 %v3700, %v3720
    %v3725 = vadd.f32 %v3701, %v3721
    %v3726 = vadd.f32 %v3702, %v3722
    %v3727 = vlaneseq
    %v3728 = vshrl.u32 %v3727, 7
    %v3729 = vsub.s32 2, %v3728
    %v3730 = vrot.slane %v3425, %v3729
    %v3731 = vlaneseq
    %v3732 = vshrl.u32 %v3731, 7
    %v3733 = vsub.s32 2, %v3732
    %v3734 = vrot.slane %v3427, %v3733
    %v3735 = vlaneseq
    %v3736 = vshrl.u32 %v3735, 7
    %v3737 = vsub.s32 2, %v3736
    %v3738 = vrot.slane %v3502, %v3737
    %v3739 = vlaneseq
    %v3740 = vshrl.u32 %v3739, 7
    %v3741 = vsub.s32 2, %v3740
    %v3742 = vrot.slane %v3504, %v3741
    %v3743 = vmul.f32 %v108, %v3730
    %v3744 = vmul.f32 %v109, %v3734
    %v3745 = vmul.f32 %v114, %v3738
    %v3746 = vmul.f32 %v115, %v3742
    %v3747 = vadd.f32 %v3723, %v3743
    %v3748 = vadd.f32 %v3724, %v3744
    %v3749 = vadd.f32 %v3725, %v3745
    %v3750 = vadd.f32 %v3726, %v3746
    %s3751 = scalar_lea.vmem [#allocation13], 32
    %3752 = vst [vmem:[%s3751] sm:$0xff] %v3747
    %3753 = vst [vmem:[%s3751 + $0x8] sm:$0xff] %v3748
    %3754 = vst [vmem:[%s3751 + $0x30] sm:$0xff] %v3749
    %3755 = vst [vmem:[%s3751 + $0x38] sm:$0xff] %v3750
    // Predicated region
    $region50: #{vn_std_feature.1} parent=1 // pred_check
      _
    $region51: #{vn_std_feature.1} parent=1 // pred_check_branch
      %3757 = sbr.rel (0) target = $region53
    $region52: #{vn_std_feature.1} parent=1 // pred_region
      %s3759 = ssub.s32 1536, 1536
      %3760 = vsyncadd [#allocation4], %s3759
      %s3761 = sshll.u32 [#allocation13], 4
      %s3762 = int_to_ptr.vmem [resolvable:$true] %s3761
      %3767 = dma.vmem_to_hbm [thread:$0]  %s3762, 1536, %s6, [#allocation4], 256, 256, 16
    $region53: #{vn_std_feature.1} parent=1 // pred_fallthru
      _
    // Predicated region
    $region54: #{vn_std_feature.1} parent=1 // pred_check
      _
    $region55: #{vn_std_feature.1} parent=1 // pred_check_branch
      %3769 = sbr.rel (0) target = $region57
    $region56: #{vn_std_feature.1} parent=1 // pred_region
      %s3771 = ssub.s32 768, 768
      %3772 = vsyncadd [#allocation15], %s3771
      %s3773 = sshll.u32 [#allocation14], 4
      %s3774 = int_to_ptr.vmem [resolvable:$true] %s3773
      %3779 = dma.vmem_to_hbm [thread:$0]  %s3774, 768, %s7, [#allocation15], 128, 128, 8
    $region57: #{vn_std_feature.1} parent=1 // pred_fallthru
      _
    // Predicated region
    $region58: #{vn_std_feature.1} parent=1 // pred_check
      _
    $region59: #{vn_std_feature.1} parent=1 // pred_check_branch
      %3781 = sbr.rel (0) target = $region61
    $region60: #{vn_std_feature.1} parent=1 // pred_region
      %3782 = dma.done [#allocation4], 1536
    $region61: #{vn_std_feature.1} parent=1 // pred_fallthru
      _
    // Predicated region
    $region62: #{vn_std_feature.1} parent=1 // pred_check
      _
    $region63: #{vn_std_feature.1} parent=1 // pred_check_branch
      %3784 = sbr.rel (0) target = $region65
    $region64: #{vn_std_feature.1} parent=1 // pred_region
      %3785 = dma.done [#allocation15], 768
    $region65: #{vn_std_feature.1} parent=1 // pred_fallthru
      _
    %3786 = vsyncpa [#allocation3], 1
    %3787 = vsyncpa [#allocation6], 1
    %3788 = vsyncpa [#allocation9], 1
    %3789 = vsyncpa [#allocation12], 1
    %3790 = vsyncpa [#allocation4], 1
    %3791 = vsyncpa [#allocation15], 1

</llo_original>
